<compile_context>
chip_gen: v7x
topology: tpu7x:2x2x1
jax: 0.10.0
libtpu: 0.0.40
codegen_flags: <defaults>
</compile_context>

<pallas_src>
import functools
import math

import jax
import jax.numpy as jnp
from jax.experimental import pallas as pl
from jax.experimental.pallas import tpu as pltpu


# Below this contraction width a VPU broadcast-MAC beats a mostly-padded MXU
# matmul (and avoids the flatten/unflatten relayout).
_MXU_MIN_CIN = 16


def _conv1x1_bn(x_ref, w_ref, s_ref, b_ref, *, relu):
    """Pointwise conv + folded BN (+ optional ReLU) on a (1, R, W, Cin) block."""
    f32 = jnp.float32
    _, r, wdim, cin = x_ref.shape
    cout = w_ref.shape[1]
    if cin >= _MXU_MIN_CIN:
        # MXU path: flatten spatial dims, matmul, unflatten.
        xin = x_ref[0].astype(f32).reshape(r * wdim, cin)
        y = jnp.dot(xin, w_ref[...],
                    preferred_element_type=f32).reshape(r, wdim, cout)
    else:
        # VPU path: unrolled broadcast-MAC over the (tiny) input channels.
        y = x_ref[0, :, :, 0:1].astype(f32) * w_ref[0:1, :]
        for c in range(1, cin):
            y = y + x_ref[0, :, :, c:c + 1].astype(f32) * w_ref[c:c + 1, :]
    y = y * s_ref[...] + b_ref[...]
    return jnp.maximum(y, 0.0) if relu else y


# --------------------------------------------------------------------------
# Kernel 1: fused short_conv gate branch (pooled resolution), grid over N.
# --------------------------------------------------------------------------

def _short_kernel(xp_ref, w1_ref, s1_ref, b1_ref,
                  w2_ref, s2_ref, b2_ref,
                  w3_ref, s3_ref, b3_ref,
                  o_ref, pad_scr, *, hp, wp, oup):
    f32 = jnp.float32

    # 1x1 conv + folded BN (short_conv has no ReLU).
    v = _conv1x1_bn(xp_ref, w1_ref, s1_ref, b1_ref, relu=False)

    # Zero-filled scratch supplies the zero padding for both depthwise convs.
    # Re-zeroed every step: the scratch is per-core and persists across grid
    # steps, and under "parallel" semantics no particular step is guaranteed
    # to run first on a given core, so a one-time init would be unsafe.
    pad_scr[...] = jnp.zeros((hp + 4, wp + 4, oup), f32)
    pad_scr[2:hp + 2, 2:wp + 2, :] = v

    # depthwise 1x5 (pad 2 along W) + folded BN, accumulated from ref slices.
    acc = pad_scr[2:hp + 2, 0:wp, :] * w2_ref[0:1, :]
    for k in range(1, 5):
        acc = acc + pad_scr[2:hp + 2, k:k + wp, :] * w2_ref[k:k + 1, :]
    t = acc * s2_ref[...] + b2_ref[...]
    pad_scr[2:hp + 2, 2:wp + 2, :] = t   # H-border rows of the scratch stay 0

    # depthwise 5x1 (pad 2 along H) + folded BN.
    acc = pad_scr[0:hp, 2:wp + 2, :] * w3_ref[0:1, :]
    for k in range(1, 5):
        acc = acc + pad_scr[k:k + hp, 2:wp + 2, :] * w3_ref[k:k + 1, :]
    r = acc * s3_ref[...] + b3_ref[...]

    # Duplicate along the lane axis: a (cheap, contiguous) wrapper reshape of
    # (hp, wp, 2*oup) -> (hp, 2*wp, oup) realizes the nearest W-upsample.
    o_ref[0] = jnp.concatenate([r, r], axis=-1).astype(o_ref.dtype)


def _short_branch(xpool, p):
    n, hp, wp, cin = xpool.shape
    oup = p["w_short1"].shape[1]

    full2 = lambda nn: (0, 0)
    full3 = lambda nn: (0, 0, 0)
    kern = functools.partial(_short_kernel, hp=hp, wp=wp, oup=oup)

    flops = 2 * n * hp * wp * oup * (cin + 10)
    bytes_acc = 4 * (xpool.size + n * hp * wp * 2 * oup)

    out = pl.pallas_call(
        kern,
        out_shape=jax.ShapeDtypeStruct((n, hp, wp, 2 * oup), jnp.float32),
        grid_spec=pltpu.PrefetchScalarGridSpec(
            num_scalar_prefetch=0,
            grid=(n,),
            in_specs=[
                pl.BlockSpec((1, hp, wp, cin), lambda nn: (nn, 0, 0, 0)),
                pl.BlockSpec((cin, oup), full2),
                pl.BlockSpec((1, 1, oup), full3),
                pl.BlockSpec((1, 1, oup), full3),
                pl.BlockSpec((5, oup), full2),
                pl.BlockSpec((1, 1, oup), full3),
                pl.BlockSpec((1, 1, oup), full3),
                pl.BlockSpec((5, oup), full2),
                pl.BlockSpec((1, 1, oup), full3),
                pl.BlockSpec((1, 1, oup), full3),
            ],
            out_specs=pl.BlockSpec((1, hp, wp, 2 * oup),
                                   lambda nn: (nn, 0, 0, 0)),
            scratch_shapes=[pltpu.VMEM((hp + 4, wp + 4, oup), jnp.float32)],
        ),
        compiler_params=pltpu.CompilerParams(
            dimension_semantics=("parallel",),
            vmem_limit_bytes=32 * 1024 * 1024,
        ),
        cost_estimate=pl.CostEstimate(
            flops=flops, transcendentals=0, bytes_accessed=bytes_acc),
    )(xpool, p["w_short1"], p["s_short1"], p["b_short1"],
      p["w_short2"], p["s_short2"], p["b_short2"],
      p["w_short3"], p["s_short3"], p["b_short3"])
    # TODO(synk): for large pooled H, tile this kernel over pooled rows with a
    # +-2 row halo instead of one image per grid step.
    return out.reshape(n, hp, 2 * wp, oup)   # pre-sigmoid, W-upsampled gate


# --------------------------------------------------------------------------
# Kernel 2: fused main branch (primary + cheap + concat + gate), grid (N, H/TH)
# --------------------------------------------------------------------------

def _main_kernel(*refs, th, w, init_ch, oup, gated):
    if gated:
        (xa_ref, xt_ref, xb_ref, g_ref, w1_ref, s1_ref, b1_ref,
         wc_ref, sc_ref, bc_ref, o_ref, x1_scr) = refs
    else:
        (xa_ref, xt_ref, xb_ref, w1_ref, s1_ref, b1_ref,
         wc_ref, sc_ref, bc_ref, o_ref, x1_scr) = refs

    f32 = jnp.float32
    i = pl.program_id(1)
    last = pl.num_programs(1) - 1

    # ---- primary_conv (1x1 + BN + ReLU) written straight into a VMEM scratch
    # that represents x1 zero-padded by 1 for the 3x3 cheap_operation, so
    # neither x1 nor a padded copy of x ever round-trips through HBM.
    zcol = jnp.zeros((th + 2, 1, init_ch), f32)
    x1_scr[:, 0:1, :] = zcol                      # left  W padding column
    x1_scr[:, w + 1:w + 2, :] = zcol              # right W padding column

    x1_scr[1:th + 1, 1:w + 1, :] = _conv1x1_bn(
        xa_ref, w1_ref, s1_ref, b1_ref, relu=True)

    # H halo rows of padded x1: x rows i*th-1 and i*th+th (zero at image edges).
    top = _conv1x1_bn(xt_ref, w1_ref, s1_ref, b1_ref, relu=True)
    bot = _conv1x1_bn(xb_ref, w1_ref, s1_ref, b1_ref, relu=True)
    x1_scr[0:1, 1:w + 1, :] = top * (i > 0).astype(f32)
    x1_scr[th + 1:th + 2, 1:w + 1, :] = bot * (i < last).astype(f32)

    # ---- cheap_operation: depthwise 3x3 + BN + ReLU, accumulated from
    # scratch-ref slices so live vreg ranges stay small.
    acc = x1_scr[0:th, 0:w, :] * wc_ref[0:1, :]
    for k in range(1, 9):
        dh, dw = divmod(k, 3)
        acc = acc + x1_scr[dh:dh + th, dw:dw + w, :] * wc_ref[k:k + 1, :]
    x2 = jnp.maximum(acc * sc_ref[...] + bc_ref[...], 0.0)

    x1 = x1_scr[1:th + 1, 1:w + 1, :]
    out = jnp.concatenate([x1, x2], axis=-1)[:, :, :oup]

    if gated:
        # sigmoid gate (EUP slot) + in-kernel nearest upsample along H
        # (major-axis broadcast + merge; the W upsample was done by layout).
        g = jax.nn.sigmoid(g_ref[0].astype(f32))              # (th//2, w, oup)
        g = jnp.broadcast_to(g[:, None, :, :], (th // 2, 2, w, oup))
        out = out * g.reshape(th, w, oup)

    o_ref[0] = out.astype(o_ref.dtype)


def _main_branch(x, gate_wide, p, oup, th, gated):
    n, h, w, cin = x.shape
    init_ch = p["w_primary"].shape[1]
    grid = (n, h // th)
    const2 = lambda nn, ii: (0, 0)
    const3 = lambda nn, ii: (0, 0, 0)

    in_specs = [
        # th rows of (unpadded) x for this tile
        pl.BlockSpec((1, th, w, cin), lambda nn, ii: (nn, ii, 0, 0)),
        # single halo rows just above / below the tile; the index is clamped at
        # the image border and the kernel zeroes those rows there.  Row-block
        # size 1 means the index map returns the row index directly.
        pl.BlockSpec((1, 1, w, cin),
                     lambda nn, ii: (nn, jnp.maximum(ii * th - 1, 0), 0, 0)),
        pl.BlockSpec((1, 1, w, cin),
                     lambda nn, ii: (nn, jnp.minimum((ii + 1) * th, h - 1), 0, 0)),
    ]
    args = [x, x, x]
    if gated:
        in_specs.append(pl.BlockSpec((1, th // 2, w, oup),
                                     lambda nn, ii: (nn, ii, 0, 0)))
        args.append(gate_wide)
    in_specs += [
        pl.BlockSpec((cin, init_ch), const2),
        pl.BlockSpec((1, 1, init_ch), const3),
        pl.BlockSpec((1, 1, init_ch), const3),
        pl.BlockSpec((9, init_ch), const2),
        pl.BlockSpec((1, 1, init_ch), const3),
        pl.BlockSpec((1, 1, init_ch), const3),
    ]
    args += [p["w_primary"], p["s_primary"], p["b_primary"],
             p["w_cheap"], p["s_cheap"], p["b_cheap"]]

    kern = functools.partial(_main_kernel, th=th, w=w,
                             init_ch=init_ch, oup=oup, gated=gated)

    flops = 2 * n * h * w * init_ch * (cin + 9) + (n * h * w * oup if gated else 0)
    bytes_acc = 4 * (x.size + 2 * n * (h // th) * w * cin
                     + n * h * w * oup
                     + (gate_wide.size if gated else 0))

    return pl.pallas_call(
        kern,
        out_shape=jax.ShapeDtypeStruct((n, h, w, oup), jnp.float32),
        grid_spec=pltpu.PrefetchScalarGridSpec(
            num_scalar_prefetch=0,
            grid=grid,
            in_specs=in_specs,
            out_specs=pl.BlockSpec((1, th, w, oup),
                                   lambda nn, ii: (nn, ii, 0, 0)),
            scratch_shapes=[pltpu.VMEM((th + 2, w + 2, init_ch), jnp.float32)],
        ),
        compiler_params=pltpu.CompilerParams(
            dimension_semantics=("parallel", "parallel"),
            vmem_limit_bytes=32 * 1024 * 1024,
        ),
        cost_estimate=pl.CostEstimate(
            flops=flops,
            transcendentals=(n * (h // 2) * w * oup if gated else 0),
            bytes_accessed=bytes_acc),
    )(*args)


# --------------------------------------------------------------------------
# parameter setup
# --------------------------------------------------------------------------

def make_params(key, inp, oup, ratio=2, dw_size=3, kernel_size=1):
    """Deterministic synthetic parameters matching GhostModuleV2('attn')."""
    assert kernel_size == 1 and ratio == 2, "default GhostModuleV2 config"
    init_ch = math.ceil(oup / ratio)
    eps = 1e-5
    keys = iter(jax.random.split(key, 48))

    def bn(c):
        gamma = 1.0 + 0.1 * jax.random.normal(next(keys), (c,), jnp.float32)
        beta = 0.1 * jax.random.normal(next(keys), (c,), jnp.float32)
        mean = 0.1 * jax.random.normal(next(keys), (c,), jnp.float32)
        var = jax.nn.softplus(jax.random.normal(next(keys), (c,), jnp.float32)) + 0.5
        scale = gamma / jnp.sqrt(var + eps)
        bias = beta - mean * scale
        return scale.reshape(1, 1, c), bias.reshape(1, 1, c)

    p = {"oup": oup, "init_ch": init_ch}
    # primary_conv: Conv2d(inp, init_ch, 1) -> (inp, init_ch)
    p["w_primary"] = 0.3 * jax.random.normal(next(keys), (inp, init_ch), jnp.float32)
    p["s_primary"], p["b_primary"] = bn(init_ch)
    # cheap_operation: depthwise 3x3, (new_ch,1,3,3) -> (9, new_ch); new_ch==init_ch
    p["w_cheap"] = 0.3 * jax.random.normal(next(keys), (dw_size * dw_size, init_ch), jnp.float32)
    p["s_cheap"], p["b_cheap"] = bn(init_ch)
    # short_conv[0]: Conv2d(inp, oup, 1) -> (inp, oup)
    p["w_short1"] = 0.3 * jax.random.normal(next(keys), (inp, oup), jnp.float32)
    p["s_short1"], p["b_short1"] = bn(oup)
    # short_conv[2]: depthwise (1,5) -> (5, oup)
    p["w_short2"] = 0.3 * jax.random.normal(next(keys), (5, oup), jnp.float32)
    p["s_short2"], p["b_short2"] = bn(oup)
    # short_conv[4]: depthwise (5,1) -> (5, oup)
    p["w_short3"] = 0.3 * jax.random.normal(next(keys), (5, oup), jnp.float32)
    p["s_short3"], p["b_short3"] = bn(oup)
    return p


# --------------------------------------------------------------------------
# forward pass
# --------------------------------------------------------------------------

def _pick_tile_h(h, w, cin, init_ch, oup, vmem_budget=4 << 20):
    """Largest even divisor of h whose double-buffered blocks fit the budget
    (sized conservatively for v7x's 64 MiB physical VMEM)."""
    best = 2
    for th in range(2, h + 1, 2):
        if h % th:
            continue
        per_step = 4 * 2 * (th * w * cin + 2 * w * cin
                            + (th // 2) * w * oup
                            + th * w * oup)
        per_step += 4 * (th + 2) * (w + 2) * init_ch
        if per_step <= vmem_budget:
            best = th
    return best


def ghost_module_v2(x_nchw, p, mode="attn", tile_h=None):
    # layout: input/output NCHW (PyTorch convention), internal compute NHWC.
    x = jnp.transpose(x_nchw, (0, 2, 3, 1)).astype(jnp.float32)  # N,H,W,C
    n, h, w, cin = x.shape
    oup = p["oup"]
    init_ch = p["w_primary"].shape[1]

    # TODO(synk): F.avg_pool2d(2,2)/F.interpolate(nearest) path assumes even
    # H and W; odd spatial sizes are not supported here.
    assert h % 2 == 0 and w % 2 == 0
    th = tile_h if tile_h is not None else _pick_tile_h(h, w, cin, init_ch, oup)
    assert th % 2 == 0 and h % th == 0

    if mode == "original":
        out = _main_branch(x, None, p, oup, th, gated=False)
        return jnp.transpose(out, (0, 3, 1, 2))

    # gate branch: 2x2 avg-pool (cheap wrapper reshape-mean) -> fused
    # short_conv kernel at pooled resolution.
    # TODO(synk): the avg-pool itself stays in XLA; fusing it in-kernel would
    # need strided sublane reads.
    hp, wp = h // 2, w // 2
    xpool = x.reshape(n, hp, 2, wp, 2, cin).mean(axis=(2, 4))
    gate_wide = _short_branch(xpool, p)      # (n, h/2, w, oup), pre-sigmoid

    out = _main_branch(x, gate_wide, p, oup, th, gated=True)
    return jnp.transpose(out, (0, 3, 1, 2))  # back to NCHW


# --------------------------------------------------------------------------
# pure-JAX reference (NCHW) for a correctness check
# --------------------------------------------------------------------------

def _reference(x_nchw, p):
    x = x_nchw.astype(jnp.float32)
    n, cin, h, w = x.shape
    oup = p["oup"]

    def conv1x1(t, wm):
        return jnp.einsum("nchw,cd->ndhw", t, wm)

    def bn(t, s, b):
        return t * s.reshape(1, -1, 1, 1) + b.reshape(1, -1, 1, 1)

    def dwconv(t, wk, kh, kw):
        ph, pw = kh // 2, kw // 2
        tp = jnp.pad(t, ((0, 0), (0, 0), (ph, ph), (pw, pw)))
        out = jnp.zeros_like(t)
        for a in range(kh):
            for b in range(kw):
                out = out + tp[:, :, a:a + t.shape[2], b:b + t.shape[3]] * \
                    wk[a * kw + b].reshape(1, -1, 1, 1)
        return out

    x1 = jax.nn.relu(bn(conv1x1(x, p["w_primary"]), p["s_primary"], p["b_primary"]))
    x2 = jax.nn.relu(bn(dwconv(x1, p["w_cheap"], 3, 3), p["s_cheap"], p["b_cheap"]))
    out = jnp.concatenate([x1, x2], axis=1)[:, :oup]

    xp = x.reshape(n, cin, h // 2, 2, w // 2, 2).mean(axis=(3, 5))
    r = bn(conv1x1(xp, p["w_short1"]), p["s_short1"], p["b_short1"])
    r = bn(dwconv(r, p["w_short2"], 1, 5), p["s_short2"], p["b_short2"])
    r = bn(dwconv(r, p["w_short3"], 5, 1), p["s_short3"], p["b_short3"])
    g = jax.nn.sigmoid(r)
    g = jnp.repeat(jnp.repeat(g, 2, axis=2), 2, axis=3)   # nearest x2 upsample
    return out * g


# --------------------------------------------------------------------------
# demo
# --------------------------------------------------------------------------

if __name__ == "__main__":
    key = jax.random.PRNGKey(0)
    kx, kp = jax.random.split(key)

    # GhostModuleV2(inp=4, oup=8, kernel_size=1, ratio=2, dw_size=3,
    #               stride=1, relu=True, mode='attn')
    x = jax.random.normal(kx, (2, 4, 16, 16), jnp.float32)   # NCHW, like PyTorch
    params = make_params(kp, inp=4, oup=8)

    fwd = jax.jit(lambda xx: ghost_module_v2(xx, params, mode="attn", tile_h=8))
    y = jax.block_until_ready(fwd(x))

    assert y.shape == (2, 8, 16, 16), y.shape
    assert bool(jnp.all(jnp.isfinite(y)))

    y_ref = _reference(x, params)
    err = float(jnp.max(jnp.abs(y - y_ref)))
    assert err < 1e-3, f"max abs error vs reference: {err}"
    print("KERNEL_OK")
</pallas_src>

<mosaic_0001>
module attributes {stable_mosaic.version = 11 : i64} {
  func.func @_short_kernel(%arg0: i32, %arg1: memref<1x8x8x4xf32, #tpu.memory_space<vmem>>, %arg2: memref<4x8xf32, #tpu.memory_space<vmem>>, %arg3: memref<1x1x8xf32, #tpu.memory_space<vmem>>, %arg4: memref<1x1x8xf32, #tpu.memory_space<vmem>>, %arg5: memref<5x8xf32, #tpu.memory_space<vmem>>, %arg6: memref<1x1x8xf32, #tpu.memory_space<vmem>>, %arg7: memref<1x1x8xf32, #tpu.memory_space<vmem>>, %arg8: memref<5x8xf32, #tpu.memory_space<vmem>>, %arg9: memref<1x1x8xf32, #tpu.memory_space<vmem>>, %arg10: memref<1x1x8xf32, #tpu.memory_space<vmem>>, %arg11: memref<1x8x8x16xf32, #tpu.memory_space<vmem>>, %arg12: memref<12x12x8xf32, #tpu.memory_space<vmem>>) attributes {dimension_semantics = [#tpu.dimension_semantics<parallel>], iteration_bounds = array<i64: 2>, scalar_prefetch = 0 : i64, scratch_operands = 1 : i64, tpu.core_type = #tpu.core_type<tc>, window_params = [{transform_indices = @transform_0, window_bounds = array<i64: 1, 8, 8, 4>}, {pipeline_mode = #tpu.pipeline_mode<synchronous>, transform_indices = @transform_1, window_bounds = array<i64: 4, 8>}, {pipeline_mode = #tpu.pipeline_mode<synchronous>, transform_indices = @transform_2, window_bounds = array<i64: 1, 1, 8>}, {pipeline_mode = #tpu.pipeline_mode<synchronous>, transform_indices = @transform_3, window_bounds = array<i64: 1, 1, 8>}, {pipeline_mode = #tpu.pipeline_mode<synchronous>, transform_indices = @transform_4, window_bounds = array<i64: 5, 8>}, {pipeline_mode = #tpu.pipeline_mode<synchronous>, transform_indices = @transform_5, window_bounds = array<i64: 1, 1, 8>}, {pipeline_mode = #tpu.pipeline_mode<synchronous>, transform_indices = @transform_6, window_bounds = array<i64: 1, 1, 8>}, {pipeline_mode = #tpu.pipeline_mode<synchronous>, transform_indices = @transform_7, window_bounds = array<i64: 5, 8>}, {pipeline_mode = #tpu.pipeline_mode<synchronous>, transform_indices = @transform_8, window_bounds = array<i64: 1, 1, 8>}, {pipeline_mode = #tpu.pipeline_mode<synchronous>, transform_indices = @transform_9, window_bounds = array<i64: 1, 1, 8>}, {transform_indices = @transform_10, window_bounds = array<i64: 1, 8, 8, 16>}]} {
    %c0 = arith.constant 0 : index
    %c0_0 = arith.constant 0 : index
    %c0_1 = arith.constant 0 : index
    %c0_2 = arith.constant 0 : index
    %0 = vector.load %arg1[%c0, %c0_0, %c0_1, %c0_2] : memref<1x8x8x4xf32, #tpu.memory_space<vmem>>, vector<1x8x8x1xf32>
    %1 = vector.shape_cast %0 : vector<1x8x8x1xf32> to vector<8x8x1xf32>
    %c0_3 = arith.constant 0 : index
    %c0_4 = arith.constant 0 : index
    %2 = vector.load %arg2[%c0_3, %c0_4] : memref<4x8xf32, #tpu.memory_space<vmem>>, vector<1x8xf32>
    %3 = vector.shape_cast %2 : vector<1x8xf32> to vector<1x1x8xf32>
    %4 = vector.broadcast %1 : vector<8x8x1xf32> to vector<8x8x8xf32>
    %5 = vector.broadcast %3 : vector<1x1x8xf32> to vector<8x8x8xf32>
    %6 = arith.mulf %4, %5 : vector<8x8x8xf32>
    %c0_5 = arith.constant 0 : index
    %c0_6 = arith.constant 0 : index
    %c0_7 = arith.constant 0 : index
    %c1 = arith.constant 1 : index
    %7 = vector.load %arg1[%c0_5, %c0_6, %c0_7, %c1] : memref<1x8x8x4xf32, #tpu.memory_space<vmem>>, vector<1x8x8x1xf32>
    %8 = vector.shape_cast %7 : vector<1x8x8x1xf32> to vector<8x8x1xf32>
    %c1_8 = arith.constant 1 : index
    %c0_9 = arith.constant 0 : index
    %9 = vector.load %arg2[%c1_8, %c0_9] : memref<4x8xf32, #tpu.memory_space<vmem>>, vector<1x8xf32>
    %10 = vector.shape_cast %9 : vector<1x8xf32> to vector<1x1x8xf32>
    %11 = vector.broadcast %8 : vector<8x8x1xf32> to vector<8x8x8xf32>
    %12 = vector.broadcast %10 : vector<1x1x8xf32> to vector<8x8x8xf32>
    %13 = arith.mulf %11, %12 : vector<8x8x8xf32>
    %14 = arith.addf %6, %13 : vector<8x8x8xf32>
    %c0_10 = arith.constant 0 : index
    %c0_11 = arith.constant 0 : index
    %c0_12 = arith.constant 0 : index
    %c2 = arith.constant 2 : index
    %15 = vector.load %arg1[%c0_10, %c0_11, %c0_12, %c2] : memref<1x8x8x4xf32, #tpu.memory_space<vmem>>, vector<1x8x8x1xf32>
    %16 = vector.shape_cast %15 : vector<1x8x8x1xf32> to vector<8x8x1xf32>
    %c2_13 = arith.constant 2 : index
    %c0_14 = arith.constant 0 : index
    %17 = vector.load %arg2[%c2_13, %c0_14] : memref<4x8xf32, #tpu.memory_space<vmem>>, vector<1x8xf32>
    %18 = vector.shape_cast %17 : vector<1x8xf32> to vector<1x1x8xf32>
    %19 = vector.broadcast %16 : vector<8x8x1xf32> to vector<8x8x8xf32>
    %20 = vector.broadcast %18 : vector<1x1x8xf32> to vector<8x8x8xf32>
    %21 = arith.mulf %19, %20 : vector<8x8x8xf32>
    %22 = arith.addf %14, %21 : vector<8x8x8xf32>
    %c0_15 = arith.constant 0 : index
    %c0_16 = arith.constant 0 : index
    %c0_17 = arith.constant 0 : index
    %c3 = arith.constant 3 : index
    %23 = vector.load %arg1[%c0_15, %c0_16, %c0_17, %c3] : memref<1x8x8x4xf32, #tpu.memory_space<vmem>>, vector<1x8x8x1xf32>
    %24 = vector.shape_cast %23 : vector<1x8x8x1xf32> to vector<8x8x1xf32>
    %c3_18 = arith.constant 3 : index
    %c0_19 = arith.constant 0 : index
    %25 = vector.load %arg2[%c3_18, %c0_19] : memref<4x8xf32, #tpu.memory_space<vmem>>, vector<1x8xf32>
    %26 = vector.shape_cast %25 : vector<1x8xf32> to vector<1x1x8xf32>
    %27 = vector.broadcast %24 : vector<8x8x1xf32> to vector<8x8x8xf32>
    %28 = vector.broadcast %26 : vector<1x1x8xf32> to vector<8x8x8xf32>
    %29 = arith.mulf %27, %28 : vector<8x8x8xf32>
    %30 = arith.addf %22, %29 : vector<8x8x8xf32>
    %c0_20 = arith.constant 0 : index
    %c0_21 = arith.constant 0 : index
    %c0_22 = arith.constant 0 : index
    %31 = vector.load %arg3[%c0_20, %c0_21, %c0_22] : memref<1x1x8xf32, #tpu.memory_space<vmem>>, vector<1x1x8xf32>
    %32 = vector.broadcast %31 : vector<1x1x8xf32> to vector<8x8x8xf32>
    %33 = arith.mulf %30, %32 : vector<8x8x8xf32>
    %c0_23 = arith.constant 0 : index
    %c0_24 = arith.constant 0 : index
    %c0_25 = arith.constant 0 : index
    %34 = vector.load %arg4[%c0_23, %c0_24, %c0_25] : memref<1x1x8xf32, #tpu.memory_space<vmem>>, vector<1x1x8xf32>
    %35 = vector.broadcast %34 : vector<1x1x8xf32> to vector<8x8x8xf32>
    %36 = arith.addf %33, %35 : vector<8x8x8xf32>
    %cst = arith.constant 0.000000e+00 : f32
    %37 = vector.broadcast %cst : f32 to vector<12x12x8xf32>
    %c0_26 = arith.constant 0 : index
    %c0_27 = arith.constant 0 : index
    %c0_28 = arith.constant 0 : index
    %38 = vector.load %arg12[%c0_26, %c0_27, %c0_28] : memref<12x12x8xf32, #tpu.memory_space<vmem>>, vector<12x12x8xf32>
    tpu.vector_store %arg12[%c0_26, %c0_27, %c0_28], %37 {strides = array<i32>} : memref<12x12x8xf32, #tpu.memory_space<vmem>>, vector<12x12x8xf32>,
    %c2_29 = arith.constant 2 : index
    %c2_30 = arith.constant 2 : index
    %c0_31 = arith.constant 0 : index
    %39 = vector.load %arg12[%c2_29, %c2_30, %c0_31] : memref<12x12x8xf32, #tpu.memory_space<vmem>>, vector<8x8x8xf32>
    tpu.vector_store %arg12[%c2_29, %c2_30, %c0_31], %36 {strides = array<i32>} : memref<12x12x8xf32, #tpu.memory_space<vmem>>, vector<8x8x8xf32>,
    %c2_32 = arith.constant 2 : index
    %c0_33 = arith.constant 0 : index
    %c0_34 = arith.constant 0 : index
    %40 = vector.load %arg12[%c2_32, %c0_33, %c0_34] : memref<12x12x8xf32, #tpu.memory_space<vmem>>, vector<8x8x8xf32>
    %c0_35 = arith.constant 0 : index
    %c0_36 = arith.constant 0 : index
    %41 = vector.load %arg5[%c0_35, %c0_36] : memref<5x8xf32, #tpu.memory_space<vmem>>, vector<1x8xf32>
    %42 = vector.shape_cast %41 : vector<1x8xf32> to vector<1x1x8xf32>
    %43 = vector.broadcast %42 : vector<1x1x8xf32> to vector<8x8x8xf32>
    %44 = arith.mulf %40, %43 : vector<8x8x8xf32>
    %c2_37 = arith.constant 2 : index
    %c1_38 = arith.constant 1 : index
    %c0_39 = arith.constant 0 : index
    %45 = vector.load %arg12[%c2_37, %c1_38, %c0_39] : memref<12x12x8xf32, #tpu.memory_space<vmem>>, vector<8x8x8xf32>
    %c1_40 = arith.constant 1 : index
    %c0_41 = arith.constant 0 : index
    %46 = vector.load %arg5[%c1_40, %c0_41] : memref<5x8xf32, #tpu.memory_space<vmem>>, vector<1x8xf32>
    %47 = vector.shape_cast %46 : vector<1x8xf32> to vector<1x1x8xf32>
    %48 = vector.broadcast %47 : vector<1x1x8xf32> to vector<8x8x8xf32>
    %49 = arith.mulf %45, %48 : vector<8x8x8xf32>
    %50 = arith.addf %44, %49 : vector<8x8x8xf32>
    %c2_42 = arith.constant 2 : index
    %c2_43 = arith.constant 2 : index
    %c0_44 = arith.constant 0 : index
    %51 = vector.load %arg12[%c2_42, %c2_43, %c0_44] : memref<12x12x8xf32, #tpu.memory_space<vmem>>, vector<8x8x8xf32>
    %c2_45 = arith.constant 2 : index
    %c0_46 = arith.constant 0 : index
    %52 = vector.load %arg5[%c2_45, %c0_46] : memref<5x8xf32, #tpu.memory_space<vmem>>, vector<1x8xf32>
    %53 = vector.shape_cast %52 : vector<1x8xf32> to vector<1x1x8xf32>
    %54 = vector.broadcast %53 : vector<1x1x8xf32> to vector<8x8x8xf32>
    %55 = arith.mulf %51, %54 : vector<8x8x8xf32>
    %56 = arith.addf %50, %55 : vector<8x8x8xf32>
    %c2_47 = arith.constant 2 : index
    %c3_48 = arith.constant 3 : index
    %c0_49 = arith.constant 0 : index
    %57 = vector.load %arg12[%c2_47, %c3_48, %c0_49] : memref<12x12x8xf32, #tpu.memory_space<vmem>>, vector<8x8x8xf32>
    %c3_50 = arith.constant 3 : index
    %c0_51 = arith.constant 0 : index
    %58 = vector.load %arg5[%c3_50, %c0_51] : memref<5x8xf32, #tpu.memory_space<vmem>>, vector<1x8xf32>
    %59 = vector.shape_cast %58 : vector<1x8xf32> to vector<1x1x8xf32>
    %60 = vector.broadcast %59 : vector<1x1x8xf32> to vector<8x8x8xf32>
    %61 = arith.mulf %57, %60 : vector<8x8x8xf32>
    %62 = arith.addf %56, %61 : vector<8x8x8xf32>
    %c2_52 = arith.constant 2 : index
    %c4 = arith.constant 4 : index
    %c0_53 = arith.constant 0 : index
    %63 = vector.load %arg12[%c2_52, %c4, %c0_53] : memref<12x12x8xf32, #tpu.memory_space<vmem>>, vector<8x8x8xf32>
    %c4_54 = arith.constant 4 : index
    %c0_55 = arith.constant 0 : index
    %64 = vector.load %arg5[%c4_54, %c0_55] : memref<5x8xf32, #tpu.memory_space<vmem>>, vector<1x8xf32>
    %65 = vector.shape_cast %64 : vector<1x8xf32> to vector<1x1x8xf32>
    %66 = vector.broadcast %65 : vector<1x1x8xf32> to vector<8x8x8xf32>
    %67 = arith.mulf %63, %66 : vector<8x8x8xf32>
    %68 = arith.addf %62, %67 : vector<8x8x8xf32>
    %c0_56 = arith.constant 0 : index
    %c0_57 = arith.constant 0 : index
    %c0_58 = arith.constant 0 : index
    %69 = vector.load %arg6[%c0_56, %c0_57, %c0_58] : memref<1x1x8xf32, #tpu.memory_space<vmem>>, vector<1x1x8xf32>
    %70 = vector.broadcast %69 : vector<1x1x8xf32> to vector<8x8x8xf32>
    %71 = arith.mulf %68, %70 : vector<8x8x8xf32>
    %c0_59 = arith.constant 0 : index
    %c0_60 = arith.constant 0 : index
    %c0_61 = arith.constant 0 : index
    %72 = vector.load %arg7[%c0_59, %c0_60, %c0_61] : memref<1x1x8xf32, #tpu.memory_space<vmem>>, vector<1x1x8xf32>
    %73 = vector.broadcast %72 : vector<1x1x8xf32> to vector<8x8x8xf32>
    %74 = arith.addf %71, %73 : vector<8x8x8xf32>
    %c2_62 = arith.constant 2 : index
    %c2_63 = arith.constant 2 : index
    %c0_64 = arith.constant 0 : index
    %75 = vector.load %arg12[%c2_62, %c2_63, %c0_64] : memref<12x12x8xf32, #tpu.memory_space<vmem>>, vector<8x8x8xf32>
    tpu.vector_store %arg12[%c2_62, %c2_63, %c0_64], %74 {strides = array<i32>} : memref<12x12x8xf32, #tpu.memory_space<vmem>>, vector<8x8x8xf32>,
    %c0_65 = arith.constant 0 : index
    %c2_66 = arith.constant 2 : index
    %c0_67 = arith.constant 0 : index
    %76 = vector.load %arg12[%c0_65, %c2_66, %c0_67] : memref<12x12x8xf32, #tpu.memory_space<vmem>>, vector<8x8x8xf32>
    %c0_68 = arith.constant 0 : index
    %c0_69 = arith.constant 0 : index
    %77 = vector.load %arg8[%c0_68, %c0_69] : memref<5x8xf32, #tpu.memory_space<vmem>>, vector<1x8xf32>
    %78 = vector.shape_cast %77 : vector<1x8xf32> to vector<1x1x8xf32>
    %79 = vector.broadcast %78 : vector<1x1x8xf32> to vector<8x8x8xf32>
    %80 = arith.mulf %76, %79 : vector<8x8x8xf32>
    %c1_70 = arith.constant 1 : index
    %c2_71 = arith.constant 2 : index
    %c0_72 = arith.constant 0 : index
    %81 = vector.load %arg12[%c1_70, %c2_71, %c0_72] : memref<12x12x8xf32, #tpu.memory_space<vmem>>, vector<8x8x8xf32>
    %c1_73 = arith.constant 1 : index
    %c0_74 = arith.constant 0 : index
    %82 = vector.load %arg8[%c1_73, %c0_74] : memref<5x8xf32, #tpu.memory_space<vmem>>, vector<1x8xf32>
    %83 = vector.shape_cast %82 : vector<1x8xf32> to vector<1x1x8xf32>
    %84 = vector.broadcast %83 : vector<1x1x8xf32> to vector<8x8x8xf32>
    %85 = arith.mulf %81, %84 : vector<8x8x8xf32>
    %86 = arith.addf %80, %85 : vector<8x8x8xf32>
    %c2_75 = arith.constant 2 : index
    %c2_76 = arith.constant 2 : index
    %c0_77 = arith.constant 0 : index
    %87 = vector.load %arg12[%c2_75, %c2_76, %c0_77] : memref<12x12x8xf32, #tpu.memory_space<vmem>>, vector<8x8x8xf32>
    %c2_78 = arith.constant 2 : index
    %c0_79 = arith.constant 0 : index
    %88 = vector.load %arg8[%c2_78, %c0_79] : memref<5x8xf32, #tpu.memory_space<vmem>>, vector<1x8xf32>
    %89 = vector.shape_cast %88 : vector<1x8xf32> to vector<1x1x8xf32>
    %90 = vector.broadcast %89 : vector<1x1x8xf32> to vector<8x8x8xf32>
    %91 = arith.mulf %87, %90 : vector<8x8x8xf32>
    %92 = arith.addf %86, %91 : vector<8x8x8xf32>
    %c3_80 = arith.constant 3 : index
    %c2_81 = arith.constant 2 : index
    %c0_82 = arith.constant 0 : index
    %93 = vector.load %arg12[%c3_80, %c2_81, %c0_82] : memref<12x12x8xf32, #tpu.memory_space<vmem>>, vector<8x8x8xf32>
    %c3_83 = arith.constant 3 : index
    %c0_84 = arith.constant 0 : index
    %94 = vector.load %arg8[%c3_83, %c0_84] : memref<5x8xf32, #tpu.memory_space<vmem>>, vector<1x8xf32>
    %95 = vector.shape_cast %94 : vector<1x8xf32> to vector<1x1x8xf32>
    %96 = vector.broadcast %95 : vector<1x1x8xf32> to vector<8x8x8xf32>
    %97 = arith.mulf %93, %96 : vector<8x8x8xf32>
    %98 = arith.addf %92, %97 : vector<8x8x8xf32>
    %c4_85 = arith.constant 4 : index
    %c2_86 = arith.constant 2 : index
    %c0_87 = arith.constant 0 : index
    %99 = vector.load %arg12[%c4_85, %c2_86, %c0_87] : memref<12x12x8xf32, #tpu.memory_space<vmem>>, vector<8x8x8xf32>
    %c4_88 = arith.constant 4 : index
    %c0_89 = arith.constant 0 : index
    %100 = vector.load %arg8[%c4_88, %c0_89] : memref<5x8xf32, #tpu.memory_space<vmem>>, vector<1x8xf32>
    %101 = vector.shape_cast %100 : vector<1x8xf32> to vector<1x1x8xf32>
    %102 = vector.broadcast %101 : vector<1x1x8xf32> to vector<8x8x8xf32>
    %103 = arith.mulf %99, %102 : vector<8x8x8xf32>
    %104 = arith.addf %98, %103 : vector<8x8x8xf32>
    %c0_90 = arith.constant 0 : index
    %c0_91 = arith.constant 0 : index
    %c0_92 = arith.constant 0 : index
    %105 = vector.load %arg9[%c0_90, %c0_91, %c0_92] : memref<1x1x8xf32, #tpu.memory_space<vmem>>, vector<1x1x8xf32>
    %106 = vector.broadcast %105 : vector<1x1x8xf32> to vector<8x8x8xf32>
    %107 = arith.mulf %104, %106 : vector<8x8x8xf32>
    %c0_93 = arith.constant 0 : index
    %c0_94 = arith.constant 0 : index
    %c0_95 = arith.constant 0 : index
    %108 = vector.load %arg10[%c0_93, %c0_94, %c0_95] : memref<1x1x8xf32, #tpu.memory_space<vmem>>, vector<1x1x8xf32>
    %109 = vector.broadcast %108 : vector<1x1x8xf32> to vector<8x8x8xf32>
    %110 = arith.addf %107, %109 : vector<8x8x8xf32>
    %111 = tpu.concatenate %110, %110 in 2 : vector<8x8x8xf32>, vector<8x8x8xf32> -> vector<8x8x16xf32>
    %c0_96 = arith.constant 0 : index
    %c0_97 = arith.constant 0 : index
    %c0_98 = arith.constant 0 : index
    %c0_99 = arith.constant 0 : index
    %112 = vector.load %arg11[%c0_96, %c0_97, %c0_98, %c0_99] : memref<1x8x8x16xf32, #tpu.memory_space<vmem>>, vector<1x8x8x16xf32>
    %113 = vector.shape_cast %112 : vector<1x8x8x16xf32> to vector<8x8x16xf32>
    %114 = vector.shape_cast %111 : vector<8x8x16xf32> to vector<1x8x8x16xf32>
    tpu.vector_store %arg11[%c0_96, %c0_97, %c0_98, %c0_99], %114 {strides = array<i32>} : memref<1x8x8x16xf32, #tpu.memory_space<vmem>>, vector<1x8x8x16xf32>,
    return
  }
  func.func @transform_0(%arg0: i32) -> (i32, i32, i32, i32) {
    %c0_i32 = arith.constant 0 : i32
    %c0_i32_0 = arith.constant 0 : i32
    %c0_i32_1 = arith.constant 0 : i32
    %c0_i32_2 = arith.constant 0 : i32
    return %arg0, %c0_i32, %c0_i32_0, %c0_i32_1 : i32, i32, i32, i32
  }
  func.func @transform_1(%arg0: i32) -> (i32, i32) {
    %c0_i32 = arith.constant 0 : i32
    %c0_i32_0 = arith.constant 0 : i32
    %c0_i32_1 = arith.constant 0 : i32
    return %c0_i32, %c0_i32_0 : i32, i32
  }
  func.func @transform_2(%arg0: i32) -> (i32, i32, i32) {
    %c0_i32 = arith.constant 0 : i32
    %c0_i32_0 = arith.constant 0 : i32
    %c0_i32_1 = arith.constant 0 : i32
    %c0_i32_2 = arith.constant 0 : i32
    return %c0_i32, %c0_i32_0, %c0_i32_1 : i32, i32, i32
  }
  func.func @transform_3(%arg0: i32) -> (i32, i32, i32) {
    %c0_i32 = arith.constant 0 : i32
    %c0_i32_0 = arith.constant 0 : i32
    %c0_i32_1 = arith.constant 0 : i32
    %c0_i32_2 = arith.constant 0 : i32
    return %c0_i32, %c0_i32_0, %c0_i32_1 : i32, i32, i32
  }
  func.func @transform_4(%arg0: i32) -> (i32, i32) {
    %c0_i32 = arith.constant 0 : i32
    %c0_i32_0 = arith.constant 0 : i32
    %c0_i32_1 = arith.constant 0 : i32
    return %c0_i32, %c0_i32_0 : i32, i32
  }
  func.func @transform_5(%arg0: i32) -> (i32, i32, i32) {
    %c0_i32 = arith.constant 0 : i32
    %c0_i32_0 = arith.constant 0 : i32
    %c0_i32_1 = arith.constant 0 : i32
    %c0_i32_2 = arith.constant 0 : i32
    return %c0_i32, %c0_i32_0, %c0_i32_1 : i32, i32, i32
  }
  func.func @transform_6(%arg0: i32) -> (i32, i32, i32) {
    %c0_i32 = arith.constant 0 : i32
    %c0_i32_0 = arith.constant 0 : i32
    %c0_i32_1 = arith.constant 0 : i32
    %c0_i32_2 = arith.constant 0 : i32
    return %c0_i32, %c0_i32_0, %c0_i32_1 : i32, i32, i32
  }
  func.func @transform_7(%arg0: i32) -> (i32, i32) {
    %c0_i32 = arith.constant 0 : i32
    %c0_i32_0 = arith.constant 0 : i32
    %c0_i32_1 = arith.constant 0 : i32
    return %c0_i32, %c0_i32_0 : i32, i32
  }
  func.func @transform_8(%arg0: i32) -> (i32, i32, i32) {
    %c0_i32 = arith.constant 0 : i32
    %c0_i32_0 = arith.constant 0 : i32
    %c0_i32_1 = arith.constant 0 : i32
    %c0_i32_2 = arith.constant 0 : i32
    return %c0_i32, %c0_i32_0, %c0_i32_1 : i32, i32, i32
  }
  func.func @transform_9(%arg0: i32) -> (i32, i32, i32) {
    %c0_i32 = arith.constant 0 : i32
    %c0_i32_0 = arith.constant 0 : i32
    %c0_i32_1 = arith.constant 0 : i32
    %c0_i32_2 = arith.constant 0 : i32
    return %c0_i32, %c0_i32_0, %c0_i32_1 : i32, i32, i32
  }
  func.func @transform_10(%arg0: i32) -> (i32, i32, i32, i32) {
    %c0_i32 = arith.constant 0 : i32
    %c0_i32_0 = arith.constant 0 : i32
    %c0_i32_1 = arith.constant 0 : i32
    %c0_i32_2 = arith.constant 0 : i32
    return %arg0, %c0_i32, %c0_i32_0, %c0_i32_1 : i32, i32, i32, i32
  }
}

module attributes {stable_mosaic.version = 11 : i64} {
  func.func @_main_kernel(%arg0: i32, %arg1: i32, %arg2: memref<1x8x16x4xf32, #tpu.memory_space<vmem>>, %arg3: memref<1x1x16x4xf32, #tpu.memory_space<vmem>>, %arg4: memref<1x1x16x4xf32, #tpu.memory_space<vmem>>, %arg5: memref<1x4x16x8xf32, #tpu.memory_space<vmem>>, %arg6: memref<4x4xf32, #tpu.memory_space<vmem>>, %arg7: memref<1x1x4xf32, #tpu.memory_space<vmem>>, %arg8: memref<1x1x4xf32, #tpu.memory_space<vmem>>, %arg9: memref<9x4xf32, #tpu.memory_space<vmem>>, %arg10: memref<1x1x4xf32, #tpu.memory_space<vmem>>, %arg11: memref<1x1x4xf32, #tpu.memory_space<vmem>>, %arg12: memref<1x8x16x8xf32, #tpu.memory_space<vmem>>, %arg13: memref<10x18x4xf32, #tpu.memory_space<vmem>>) attributes {dimension_semantics = [#tpu.dimension_semantics<parallel>, #tpu.dimension_semantics<parallel>], iteration_bounds = array<i64: 2, 2>, scalar_prefetch = 0 : i64, scratch_operands = 1 : i64, tpu.core_type = #tpu.core_type<tc>, window_params = [{transform_indices = @transform_0, window_bounds = array<i64: 1, 8, 16, 4>}, {transform_indices = @transform_1, window_bounds = array<i64: 1, 1, 16, 4>}, {transform_indices = @transform_2, window_bounds = array<i64: 1, 1, 16, 4>}, {transform_indices = @transform_3, window_bounds = array<i64: 1, 4, 16, 8>}, {pipeline_mode = #tpu.pipeline_mode<synchronous>, transform_indices = @transform_4, window_bounds = array<i64: 4, 4>}, {pipeline_mode = #tpu.pipeline_mode<synchronous>, transform_indices = @transform_5, window_bounds = array<i64: 1, 1, 4>}, {pipeline_mode = #tpu.pipeline_mode<synchronous>, transform_indices = @transform_6, window_bounds = array<i64: 1, 1, 4>}, {pipeline_mode = #tpu.pipeline_mode<synchronous>, transform_indices = @transform_7, window_bounds = array<i64: 9, 4>}, {pipeline_mode = #tpu.pipeline_mode<synchronous>, transform_indices = @transform_8, window_bounds = array<i64: 1, 1, 4>}, {pipeline_mode = #tpu.pipeline_mode<synchronous>, transform_indices = @transform_9, window_bounds = array<i64: 1, 1, 4>}, {transform_indices = @transform_10, window_bounds = array<i64: 1, 8, 16, 8>}]} {
    %cst = arith.constant 0.000000e+00 : f32
    %0 = vector.broadcast %cst : f32 to vector<10x1x4xf32>
    %c0 = arith.constant 0 : index
    %c0_0 = arith.constant 0 : index
    %c0_1 = arith.constant 0 : index
    %1 = vector.load %arg13[%c0, %c0_0, %c0_1] : memref<10x18x4xf32, #tpu.memory_space<vmem>>, vector<10x1x4xf32>
    tpu.vector_store %arg13[%c0, %c0_0, %c0_1], %0 {strides = array<i32>} : memref<10x18x4xf32, #tpu.memory_space<vmem>>, vector<10x1x4xf32>,
    %c0_2 = arith.constant 0 : index
    %c17 = arith.constant 17 : index
    %c0_3 = arith.constant 0 : index
    %2 = vector.load %arg13[%c0_2, %c17, %c0_3] : memref<10x18x4xf32, #tpu.memory_space<vmem>>, vector<10x1x4xf32>
    tpu.vector_store %arg13[%c0_2, %c17, %c0_3], %0 {strides = array<i32>} : memref<10x18x4xf32, #tpu.memory_space<vmem>>, vector<10x1x4xf32>,
    %c0_4 = arith.constant 0 : index
    %c0_5 = arith.constant 0 : index
    %c0_6 = arith.constant 0 : index
    %c0_7 = arith.constant 0 : index
    %3 = vector.load %arg2[%c0_4, %c0_5, %c0_6, %c0_7] : memref<1x8x16x4xf32, #tpu.memory_space<vmem>>, vector<1x8x16x1xf32>
    %4 = vector.shape_cast %3 : vector<1x8x16x1xf32> to vector<8x16x1xf32>
    %c0_8 = arith.constant 0 : index
    %c0_9 = arith.constant 0 : index
    %5 = vector.load %arg6[%c0_8, %c0_9] : memref<4x4xf32, #tpu.memory_space<vmem>>, vector<1x4xf32>
    %6 = vector.shape_cast %5 : vector<1x4xf32> to vector<1x1x4xf32>
    %7 = vector.broadcast %4 : vector<8x16x1xf32> to vector<8x16x4xf32>
    %8 = vector.broadcast %6 : vector<1x1x4xf32> to vector<8x16x4xf32>
    %9 = arith.mulf %7, %8 : vector<8x16x4xf32>
    %c0_10 = arith.constant 0 : index
    %c0_11 = arith.constant 0 : index
    %c0_12 = arith.constant 0 : index
    %c1 = arith.constant 1 : index
    %10 = vector.load %arg2[%c0_10, %c0_11, %c0_12, %c1] : memref<1x8x16x4xf32, #tpu.memory_space<vmem>>, vector<1x8x16x1xf32>
    %11 = vector.shape_cast %10 : vector<1x8x16x1xf32> to vector<8x16x1xf32>
    %c1_13 = arith.constant 1 : index
    %c0_14 = arith.constant 0 : index
    %12 = vector.load %arg6[%c1_13, %c0_14] : memref<4x4xf32, #tpu.memory_space<vmem>>, vector<1x4xf32>
    %13 = vector.shape_cast %12 : vector<1x4xf32> to vector<1x1x4xf32>
    %14 = vector.broadcast %11 : vector<8x16x1xf32> to vector<8x16x4xf32>
    %15 = vector.broadcast %13 : vector<1x1x4xf32> to vector<8x16x4xf32>
    %16 = arith.mulf %14, %15 : vector<8x16x4xf32>
    %17 = arith.addf %9, %16 : vector<8x16x4xf32>
    %c0_15 = arith.constant 0 : index
    %c0_16 = arith.constant 0 : index
    %c0_17 = arith.constant 0 : index
    %c2 = arith.constant 2 : index
    %18 = vector.load %arg2[%c0_15, %c0_16, %c0_17, %c2] : memref<1x8x16x4xf32, #tpu.memory_space<vmem>>, vector<1x8x16x1xf32>
    %19 = vector.shape_cast %18 : vector<1x8x16x1xf32> to vector<8x16x1xf32>
    %c2_18 = arith.constant 2 : index
    %c0_19 = arith.constant 0 : index
    %20 = vector.load %arg6[%c2_18, %c0_19] : memref<4x4xf32, #tpu.memory_space<vmem>>, vector<1x4xf32>
    %21 = vector.shape_cast %20 : vector<1x4xf32> to vector<1x1x4xf32>
    %22 = vector.broadcast %19 : vector<8x16x1xf32> to vector<8x16x4xf32>
    %23 = vector.broadcast %21 : vector<1x1x4xf32> to vector<8x16x4xf32>
    %24 = arith.mulf %22, %23 : vector<8x16x4xf32>
    %25 = arith.addf %17, %24 : vector<8x16x4xf32>
    %c0_20 = arith.constant 0 : index
    %c0_21 = arith.constant 0 : index
    %c0_22 = arith.constant 0 : index
    %c3 = arith.constant 3 : index
    %26 = vector.load %arg2[%c0_20, %c0_21, %c0_22, %c3] : memref<1x8x16x4xf32, #tpu.memory_space<vmem>>, vector<1x8x16x1xf32>
    %27 = vector.shape_cast %26 : vector<1x8x16x1xf32> to vector<8x16x1xf32>
    %c3_23 = arith.constant 3 : index
    %c0_24 = arith.constant 0 : index
    %28 = vector.load %arg6[%c3_23, %c0_24] : memref<4x4xf32, #tpu.memory_space<vmem>>, vector<1x4xf32>
    %29 = vector.shape_cast %28 : vector<1x4xf32> to vector<1x1x4xf32>
    %30 = vector.broadcast %27 : vector<8x16x1xf32> to vector<8x16x4xf32>
    %31 = vector.broadcast %29 : vector<1x1x4xf32> to vector<8x16x4xf32>
    %32 = arith.mulf %30, %31 : vector<8x16x4xf32>
    %33 = arith.addf %25, %32 : vector<8x16x4xf32>
    %c0_25 = arith.constant 0 : index
    %c0_26 = arith.constant 0 : index
    %c0_27 = arith.constant 0 : index
    %34 = vector.load %arg7[%c0_25, %c0_26, %c0_27] : memref<1x1x4xf32, #tpu.memory_space<vmem>>, vector<1x1x4xf32>
    %35 = vector.broadcast %34 : vector<1x1x4xf32> to vector<8x16x4xf32>
    %36 = arith.mulf %33, %35 : vector<8x16x4xf32>
    %c0_28 = arith.constant 0 : index
    %c0_29 = arith.constant 0 : index
    %c0_30 = arith.constant 0 : index
    %37 = vector.load %arg8[%c0_28, %c0_29, %c0_30] : memref<1x1x4xf32, #tpu.memory_space<vmem>>, vector<1x1x4xf32>
    %38 = vector.broadcast %37 : vector<1x1x4xf32> to vector<8x16x4xf32>
    %39 = arith.addf %36, %38 : vector<8x16x4xf32>
    %cst_31 = arith.constant 0.000000e+00 : f32
    %40 = vector.broadcast %cst_31 : f32 to vector<8x16x4xf32>
    %41 = arith.maximumf %39, %40 : vector<8x16x4xf32>
    %c1_32 = arith.constant 1 : index
    %c1_33 = arith.constant 1 : index
    %c0_34 = arith.constant 0 : index
    %42 = vector.load %arg13[%c1_32, %c1_33, %c0_34] : memref<10x18x4xf32, #tpu.memory_space<vmem>>, vector<8x16x4xf32>
    tpu.vector_store %arg13[%c1_32, %c1_33, %c0_34], %41 {strides = array<i32>} : memref<10x18x4xf32, #tpu.memory_space<vmem>>, vector<8x16x4xf32>,
    %c0_35 = arith.constant 0 : index
    %c0_36 = arith.constant 0 : index
    %c0_37 = arith.constant 0 : index
    %c0_38 = arith.constant 0 : index
    %43 = vector.load %arg3[%c0_35, %c0_36, %c0_37, %c0_38] : memref<1x1x16x4xf32, #tpu.memory_space<vmem>>, vector<1x1x16x1xf32>
    %44 = vector.shape_cast %43 : vector<1x1x16x1xf32> to vector<1x16x1xf32>
    %c0_39 = arith.constant 0 : index
    %c0_40 = arith.constant 0 : index
    %45 = vector.load %arg6[%c0_39, %c0_40] : memref<4x4xf32, #tpu.memory_space<vmem>>, vector<1x4xf32>
    %46 = vector.shape_cast %45 : vector<1x4xf32> to vector<1x1x4xf32>
    %47 = vector.broadcast %44 : vector<1x16x1xf32> to vector<1x16x4xf32>
    %48 = vector.broadcast %46 : vector<1x1x4xf32> to vector<1x16x4xf32>
    %49 = arith.mulf %47, %48 : vector<1x16x4xf32>
    %c0_41 = arith.constant 0 : index
    %c0_42 = arith.constant 0 : index
    %c0_43 = arith.constant 0 : index
    %c1_44 = arith.constant 1 : index
    %50 = vector.load %arg3[%c0_41, %c0_42, %c0_43, %c1_44] : memref<1x1x16x4xf32, #tpu.memory_space<vmem>>, vector<1x1x16x1xf32>
    %51 = vector.shape_cast %50 : vector<1x1x16x1xf32> to vector<1x16x1xf32>
    %c1_45 = arith.constant 1 : index
    %c0_46 = arith.constant 0 : index
    %52 = vector.load %arg6[%c1_45, %c0_46] : memref<4x4xf32, #tpu.memory_space<vmem>>, vector<1x4xf32>
    %53 = vector.shape_cast %52 : vector<1x4xf32> to vector<1x1x4xf32>
    %54 = vector.broadcast %51 : vector<1x16x1xf32> to vector<1x16x4xf32>
    %55 = vector.broadcast %53 : vector<1x1x4xf32> to vector<1x16x4xf32>
    %56 = arith.mulf %54, %55 : vector<1x16x4xf32>
    %57 = arith.addf %49, %56 : vector<1x16x4xf32>
    %c0_47 = arith.constant 0 : index
    %c0_48 = arith.constant 0 : index
    %c0_49 = arith.constant 0 : index
    %c2_50 = arith.constant 2 : index
    %58 = vector.load %arg3[%c0_47, %c0_48, %c0_49, %c2_50] : memref<1x1x16x4xf32, #tpu.memory_space<vmem>>, vector<1x1x16x1xf32>
    %59 = vector.shape_cast %58 : vector<1x1x16x1xf32> to vector<1x16x1xf32>
    %c2_51 = arith.constant 2 : index
    %c0_52 = arith.constant 0 : index
    %60 = vector.load %arg6[%c2_51, %c0_52] : memref<4x4xf32, #tpu.memory_space<vmem>>, vector<1x4xf32>
    %61 = vector.shape_cast %60 : vector<1x4xf32> to vector<1x1x4xf32>
    %62 = vector.broadcast %59 : vector<1x16x1xf32> to vector<1x16x4xf32>
    %63 = vector.broadcast %61 : vector<1x1x4xf32> to vector<1x16x4xf32>
    %64 = arith.mulf %62, %63 : vector<1x16x4xf32>
    %65 = arith.addf %57, %64 : vector<1x16x4xf32>
    %c0_53 = arith.constant 0 : index
    %c0_54 = arith.constant 0 : index
    %c0_55 = arith.constant 0 : index
    %c3_56 = arith.constant 3 : index
    %66 = vector.load %arg3[%c0_53, %c0_54, %c0_55, %c3_56] : memref<1x1x16x4xf32, #tpu.memory_space<vmem>>, vector<1x1x16x1xf32>
    %67 = vector.shape_cast %66 : vector<1x1x16x1xf32> to vector<1x16x1xf32>
    %c3_57 = arith.constant 3 : index
    %c0_58 = arith.constant 0 : index
    %68 = vector.load %arg6[%c3_57, %c0_58] : memref<4x4xf32, #tpu.memory_space<vmem>>, vector<1x4xf32>
    %69 = vector.shape_cast %68 : vector<1x4xf32> to vector<1x1x4xf32>
    %70 = vector.broadcast %67 : vector<1x16x1xf32> to vector<1x16x4xf32>
    %71 = vector.broadcast %69 : vector<1x1x4xf32> to vector<1x16x4xf32>
    %72 = arith.mulf %70, %71 : vector<1x16x4xf32>
    %73 = arith.addf %65, %72 : vector<1x16x4xf32>
    %c0_59 = arith.constant 0 : index
    %c0_60 = arith.constant 0 : index
    %c0_61 = arith.constant 0 : index
    %74 = vector.load %arg7[%c0_59, %c0_60, %c0_61] : memref<1x1x4xf32, #tpu.memory_space<vmem>>, vector<1x1x4xf32>
    %75 = vector.broadcast %74 : vector<1x1x4xf32> to vector<1x16x4xf32>
    %76 = arith.mulf %73, %75 : vector<1x16x4xf32>
    %c0_62 = arith.constant 0 : index
    %c0_63 = arith.constant 0 : index
    %c0_64 = arith.constant 0 : index
    %77 = vector.load %arg8[%c0_62, %c0_63, %c0_64] : memref<1x1x4xf32, #tpu.memory_space<vmem>>, vector<1x1x4xf32>
    %78 = vector.broadcast %77 : vector<1x1x4xf32> to vector<1x16x4xf32>
    %79 = arith.addf %76, %78 : vector<1x16x4xf32>
    %cst_65 = arith.constant 0.000000e+00 : f32
    %80 = vector.broadcast %cst_65 : f32 to vector<1x16x4xf32>
    %81 = arith.maximumf %79, %80 : vector<1x16x4xf32>
    %c0_66 = arith.constant 0 : index
    %c0_67 = arith.constant 0 : index
    %c0_68 = arith.constant 0 : index
    %c0_69 = arith.constant 0 : index
    %82 = vector.load %arg4[%c0_66, %c0_67, %c0_68, %c0_69] : memref<1x1x16x4xf32, #tpu.memory_space<vmem>>, vector<1x1x16x1xf32>
    %83 = vector.shape_cast %82 : vector<1x1x16x1xf32> to vector<1x16x1xf32>
    %c0_70 = arith.constant 0 : index
    %c0_71 = arith.constant 0 : index
    %84 = vector.load %arg6[%c0_70, %c0_71] : memref<4x4xf32, #tpu.memory_space<vmem>>, vector<1x4xf32>
    %85 = vector.shape_cast %84 : vector<1x4xf32> to vector<1x1x4xf32>
    %86 = vector.broadcast %83 : vector<1x16x1xf32> to vector<1x16x4xf32>
    %87 = vector.broadcast %85 : vector<1x1x4xf32> to vector<1x16x4xf32>
    %88 = arith.mulf %86, %87 : vector<1x16x4xf32>
    %c0_72 = arith.constant 0 : index
    %c0_73 = arith.constant 0 : index
    %c0_74 = arith.constant 0 : index
    %c1_75 = arith.constant 1 : index
    %89 = vector.load %arg4[%c0_72, %c0_73, %c0_74, %c1_75] : memref<1x1x16x4xf32, #tpu.memory_space<vmem>>, vector<1x1x16x1xf32>
    %90 = vector.shape_cast %89 : vector<1x1x16x1xf32> to vector<1x16x1xf32>
    %c1_76 = arith.constant 1 : index
    %c0_77 = arith.constant 0 : index
    %91 = vector.load %arg6[%c1_76, %c0_77] : memref<4x4xf32, #tpu.memory_space<vmem>>, vector<1x4xf32>
    %92 = vector.shape_cast %91 : vector<1x4xf32> to vector<1x1x4xf32>
    %93 = vector.broadcast %90 : vector<1x16x1xf32> to vector<1x16x4xf32>
    %94 = vector.broadcast %92 : vector<1x1x4xf32> to vector<1x16x4xf32>
    %95 = arith.mulf %93, %94 : vector<1x16x4xf32>
    %96 = arith.addf %88, %95 : vector<1x16x4xf32>
    %c0_78 = arith.constant 0 : index
    %c0_79 = arith.constant 0 : index
    %c0_80 = arith.constant 0 : index
    %c2_81 = arith.constant 2 : index
    %97 = vector.load %arg4[%c0_78, %c0_79, %c0_80, %c2_81] : memref<1x1x16x4xf32, #tpu.memory_space<vmem>>, vector<1x1x16x1xf32>
    %98 = vector.shape_cast %97 : vector<1x1x16x1xf32> to vector<1x16x1xf32>
    %c2_82 = arith.constant 2 : index
    %c0_83 = arith.constant 0 : index
    %99 = vector.load %arg6[%c2_82, %c0_83] : memref<4x4xf32, #tpu.memory_space<vmem>>, vector<1x4xf32>
    %100 = vector.shape_cast %99 : vector<1x4xf32> to vector<1x1x4xf32>
    %101 = vector.broadcast %98 : vector<1x16x1xf32> to vector<1x16x4xf32>
    %102 = vector.broadcast %100 : vector<1x1x4xf32> to vector<1x16x4xf32>
    %103 = arith.mulf %101, %102 : vector<1x16x4xf32>
    %104 = arith.addf %96, %103 : vector<1x16x4xf32>
    %c0_84 = arith.constant 0 : index
    %c0_85 = arith.constant 0 : index
    %c0_86 = arith.constant 0 : index
    %c3_87 = arith.constant 3 : index
    %105 = vector.load %arg4[%c0_84, %c0_85, %c0_86, %c3_87] : memref<1x1x16x4xf32, #tpu.memory_space<vmem>>, vector<1x1x16x1xf32>
    %106 = vector.shape_cast %105 : vector<1x1x16x1xf32> to vector<1x16x1xf32>
    %c3_88 = arith.constant 3 : index
    %c0_89 = arith.constant 0 : index
    %107 = vector.load %arg6[%c3_88, %c0_89] : memref<4x4xf32, #tpu.memory_space<vmem>>, vector<1x4xf32>
    %108 = vector.shape_cast %107 : vector<1x4xf32> to vector<1x1x4xf32>
    %109 = vector.broadcast %106 : vector<1x16x1xf32> to vector<1x16x4xf32>
    %110 = vector.broadcast %108 : vector<1x1x4xf32> to vector<1x16x4xf32>
    %111 = arith.mulf %109, %110 : vector<1x16x4xf32>
    %112 = arith.addf %104, %111 : vector<1x16x4xf32>
    %c0_90 = arith.constant 0 : index
    %c0_91 = arith.constant 0 : index
    %c0_92 = arith.constant 0 : index
    %113 = vector.load %arg7[%c0_90, %c0_91, %c0_92] : memref<1x1x4xf32, #tpu.memory_space<vmem>>, vector<1x1x4xf32>
    %114 = vector.broadcast %113 : vector<1x1x4xf32> to vector<1x16x4xf32>
    %115 = arith.mulf %112, %114 : vector<1x16x4xf32>
    %c0_93 = arith.constant 0 : index
    %c0_94 = arith.constant 0 : index
    %c0_95 = arith.constant 0 : index
    %116 = vector.load %arg8[%c0_93, %c0_94, %c0_95] : memref<1x1x4xf32, #tpu.memory_space<vmem>>, vector<1x1x4xf32>
    %117 = vector.broadcast %116 : vector<1x1x4xf32> to vector<1x16x4xf32>
    %118 = arith.addf %115, %117 : vector<1x16x4xf32>
    %cst_96 = arith.constant 0.000000e+00 : f32
    %119 = vector.broadcast %cst_96 : f32 to vector<1x16x4xf32>
    %120 = arith.maximumf %118, %119 : vector<1x16x4xf32>
    %c0_i32 = arith.constant 0 : i32
    %121 = arith.cmpi sgt, %arg1, %c0_i32 : i32
    %122 = arith.extui %121 : i1 to i32
    %123 = arith.sitofp %122 : i32 to f32
    %124 = vector.broadcast %123 : f32 to vector<1x16x4xf32>
    %125 = arith.mulf %81, %124 : vector<1x16x4xf32>
    %c0_97 = arith.constant 0 : index
    %c1_98 = arith.constant 1 : index
    %c0_99 = arith.constant 0 : index
    %126 = vector.load %arg13[%c0_97, %c1_98, %c0_99] : memref<10x18x4xf32, #tpu.memory_space<vmem>>, vector<1x16x4xf32>
    tpu.vector_store %arg13[%c0_97, %c1_98, %c0_99], %125 {strides = array<i32>} : memref<10x18x4xf32, #tpu.memory_space<vmem>>, vector<1x16x4xf32>,
    %c1_i32 = arith.constant 1 : i32
    %127 = arith.cmpi slt, %arg1, %c1_i32 : i32
    %128 = arith.extui %127 : i1 to i32
    %129 = arith.sitofp %128 : i32 to f32
    %130 = vector.broadcast %129 : f32 to vector<1x16x4xf32>
    %131 = arith.mulf %120, %130 : vector<1x16x4xf32>
    %c9 = arith.constant 9 : index
    %c1_100 = arith.constant 1 : index
    %c0_101 = arith.constant 0 : index
    %132 = vector.load %arg13[%c9, %c1_100, %c0_101] : memref<10x18x4xf32, #tpu.memory_space<vmem>>, vector<1x16x4xf32>
    tpu.vector_store %arg13[%c9, %c1_100, %c0_101], %131 {strides = array<i32>} : memref<10x18x4xf32, #tpu.memory_space<vmem>>, vector<1x16x4xf32>,
    %c0_102 = arith.constant 0 : index
    %c0_103 = arith.constant 0 : index
    %c0_104 = arith.constant 0 : index
    %133 = vector.load %arg13[%c0_102, %c0_103, %c0_104] : memref<10x18x4xf32, #tpu.memory_space<vmem>>, vector<8x16x4xf32>
    %c0_105 = arith.constant 0 : index
    %c0_106 = arith.constant 0 : index
    %134 = vector.load %arg9[%c0_105, %c0_106] : memref<9x4xf32, #tpu.memory_space<vmem>>, vector<1x4xf32>
    %135 = vector.shape_cast %134 : vector<1x4xf32> to vector<1x1x4xf32>
    %136 = vector.broadcast %135 : vector<1x1x4xf32> to vector<8x16x4xf32>
    %137 = arith.mulf %133, %136 : vector<8x16x4xf32>
    %c0_107 = arith.constant 0 : index
    %c1_108 = arith.constant 1 : index
    %c0_109 = arith.constant 0 : index
    %138 = vector.load %arg13[%c0_107, %c1_108, %c0_109] : memref<10x18x4xf32, #tpu.memory_space<vmem>>, vector<8x16x4xf32>
    %c1_110 = arith.constant 1 : index
    %c0_111 = arith.constant 0 : index
    %139 = vector.load %arg9[%c1_110, %c0_111] : memref<9x4xf32, #tpu.memory_space<vmem>>, vector<1x4xf32>
    %140 = vector.shape_cast %139 : vector<1x4xf32> to vector<1x1x4xf32>
    %141 = vector.broadcast %140 : vector<1x1x4xf32> to vector<8x16x4xf32>
    %142 = arith.mulf %138, %141 : vector<8x16x4xf32>
    %143 = arith.addf %137, %142 : vector<8x16x4xf32>
    %c0_112 = arith.constant 0 : index
    %c2_113 = arith.constant 2 : index
    %c0_114 = arith.constant 0 : index
    %144 = vector.load %arg13[%c0_112, %c2_113, %c0_114] : memref<10x18x4xf32, #tpu.memory_space<vmem>>, vector<8x16x4xf32>
    %c2_115 = arith.constant 2 : index
    %c0_116 = arith.constant 0 : index
    %145 = vector.load %arg9[%c2_115, %c0_116] : memref<9x4xf32, #tpu.memory_space<vmem>>, vector<1x4xf32>
    %146 = vector.shape_cast %145 : vector<1x4xf32> to vector<1x1x4xf32>
    %147 = vector.broadcast %146 : vector<1x1x4xf32> to vector<8x16x4xf32>
    %148 = arith.mulf %144, %147 : vector<8x16x4xf32>
    %149 = arith.addf %143, %148 : vector<8x16x4xf32>
    %c1_117 = arith.constant 1 : index
    %c0_118 = arith.constant 0 : index
    %c0_119 = arith.constant 0 : index
    %150 = vector.load %arg13[%c1_117, %c0_118, %c0_119] : memref<10x18x4xf32, #tpu.memory_space<vmem>>, vector<8x16x4xf32>
    %c3_120 = arith.constant 3 : index
    %c0_121 = arith.constant 0 : index
    %151 = vector.load %arg9[%c3_120, %c0_121] : memref<9x4xf32, #tpu.memory_space<vmem>>, vector<1x4xf32>
    %152 = vector.shape_cast %151 : vector<1x4xf32> to vector<1x1x4xf32>
    %153 = vector.broadcast %152 : vector<1x1x4xf32> to vector<8x16x4xf32>
    %154 = arith.mulf %150, %153 : vector<8x16x4xf32>
    %155 = arith.addf %149, %154 : vector<8x16x4xf32>
    %c1_122 = arith.constant 1 : index
    %c1_123 = arith.constant 1 : index
    %c0_124 = arith.constant 0 : index
    %156 = vector.load %arg13[%c1_122, %c1_123, %c0_124] : memref<10x18x4xf32, #tpu.memory_space<vmem>>, vector<8x16x4xf32>
    %c4 = arith.constant 4 : index
    %c0_125 = arith.constant 0 : index
    %157 = vector.load %arg9[%c4, %c0_125] : memref<9x4xf32, #tpu.memory_space<vmem>>, vector<1x4xf32>
    %158 = vector.shape_cast %157 : vector<1x4xf32> to vector<1x1x4xf32>
    %159 = vector.broadcast %158 : vector<1x1x4xf32> to vector<8x16x4xf32>
    %160 = arith.mulf %156, %159 : vector<8x16x4xf32>
    %161 = arith.addf %155, %160 : vector<8x16x4xf32>
    %c1_126 = arith.constant 1 : index
    %c2_127 = arith.constant 2 : index
    %c0_128 = arith.constant 0 : index
    %162 = vector.load %arg13[%c1_126, %c2_127, %c0_128] : memref<10x18x4xf32, #tpu.memory_space<vmem>>, vector<8x16x4xf32>
    %c5 = arith.constant 5 : index
    %c0_129 = arith.constant 0 : index
    %163 = vector.load %arg9[%c5, %c0_129] : memref<9x4xf32, #tpu.memory_space<vmem>>, vector<1x4xf32>
    %164 = vector.shape_cast %163 : vector<1x4xf32> to vector<1x1x4xf32>
    %165 = vector.broadcast %164 : vector<1x1x4xf32> to vector<8x16x4xf32>
    %166 = arith.mulf %162, %165 : vector<8x16x4xf32>
    %167 = arith.addf %161, %166 : vector<8x16x4xf32>
    %c2_130 = arith.constant 2 : index
    %c0_131 = arith.constant 0 : index
    %c0_132 = arith.constant 0 : index
    %168 = vector.load %arg13[%c2_130, %c0_131, %c0_132] : memref<10x18x4xf32, #tpu.memory_space<vmem>>, vector<8x16x4xf32>
    %c6 = arith.constant 6 : index
    %c0_133 = arith.constant 0 : index
    %169 = vector.load %arg9[%c6, %c0_133] : memref<9x4xf32, #tpu.memory_space<vmem>>, vector<1x4xf32>
    %170 = vector.shape_cast %169 : vector<1x4xf32> to vector<1x1x4xf32>
    %171 = vector.broadcast %170 : vector<1x1x4xf32> to vector<8x16x4xf32>
    %172 = arith.mulf %168, %171 : vector<8x16x4xf32>
    %173 = arith.addf %167, %172 : vector<8x16x4xf32>
    %c2_134 = arith.constant 2 : index
    %c1_135 = arith.constant 1 : index
    %c0_136 = arith.constant 0 : index
    %174 = vector.load %arg13[%c2_134, %c1_135, %c0_136] : memref<10x18x4xf32, #tpu.memory_space<vmem>>, vector<8x16x4xf32>
    %c7 = arith.constant 7 : index
    %c0_137 = arith.constant 0 : index
    %175 = vector.load %arg9[%c7, %c0_137] : memref<9x4xf32, #tpu.memory_space<vmem>>, vector<1x4xf32>
    %176 = vector.shape_cast %175 : vector<1x4xf32> to vector<1x1x4xf32>
    %177 = vector.broadcast %176 : vector<1x1x4xf32> to vector<8x16x4xf32>
    %178 = arith.mulf %174, %177 : vector<8x16x4xf32>
    %179 = arith.addf %173, %178 : vector<8x16x4xf32>
    %c2_138 = arith.constant 2 : index
    %c2_139 = arith.constant 2 : index
    %c0_140 = arith.constant 0 : index
    %180 = vector.load %arg13[%c2_138, %c2_139, %c0_140] : memref<10x18x4xf32, #tpu.memory_space<vmem>>, vector<8x16x4xf32>
    %c8 = arith.constant 8 : index
    %c0_141 = arith.constant 0 : index
    %181 = vector.load %arg9[%c8, %c0_141] : memref<9x4xf32, #tpu.memory_space<vmem>>, vector<1x4xf32>
    %182 = vector.shape_cast %181 : vector<1x4xf32> to vector<1x1x4xf32>
    %183 = vector.broadcast %182 : vector<1x1x4xf32> to vector<8x16x4xf32>
    %184 = arith.mulf %180, %183 : vector<8x16x4xf32>
    %185 = arith.addf %179, %184 : vector<8x16x4xf32>
    %c0_142 = arith.constant 0 : index
    %c0_143 = arith.constant 0 : index
    %c0_144 = arith.constant 0 : index
    %186 = vector.load %arg10[%c0_142, %c0_143, %c0_144] : memref<1x1x4xf32, #tpu.memory_space<vmem>>, vector<1x1x4xf32>
    %187 = vector.broadcast %186 : vector<1x1x4xf32> to vector<8x16x4xf32>
    %188 = arith.mulf %185, %187 : vector<8x16x4xf32>
    %c0_145 = arith.constant 0 : index
    %c0_146 = arith.constant 0 : index
    %c0_147 = arith.constant 0 : index
    %189 = vector.load %arg11[%c0_145, %c0_146, %c0_147] : memref<1x1x4xf32, #tpu.memory_space<vmem>>, vector<1x1x4xf32>
    %190 = vector.broadcast %189 : vector<1x1x4xf32> to vector<8x16x4xf32>
    %191 = arith.addf %188, %190 : vector<8x16x4xf32>
    %cst_148 = arith.constant 0.000000e+00 : f32
    %192 = vector.broadcast %cst_148 : f32 to vector<8x16x4xf32>
    %193 = arith.maximumf %191, %192 : vector<8x16x4xf32>
    %c1_149 = arith.constant 1 : index
    %c1_150 = arith.constant 1 : index
    %c0_151 = arith.constant 0 : index
    %194 = vector.load %arg13[%c1_149, %c1_150, %c0_151] : memref<10x18x4xf32, #tpu.memory_space<vmem>>, vector<8x16x4xf32>
    %195 = tpu.concatenate %194, %193 in 2 : vector<8x16x4xf32>, vector<8x16x4xf32> -> vector<8x16x8xf32>
    %c0_152 = arith.constant 0 : index
    %c0_153 = arith.constant 0 : index
    %c0_154 = arith.constant 0 : index
    %c0_155 = arith.constant 0 : index
    %196 = vector.load %arg5[%c0_152, %c0_153, %c0_154, %c0_155] : memref<1x4x16x8xf32, #tpu.memory_space<vmem>>, vector<1x4x16x8xf32>
    %197 = vector.shape_cast %196 : vector<1x4x16x8xf32> to vector<4x16x8xf32>
    %198 = arith.negf %197 : vector<4x16x8xf32>
    %199 = math.exp %198 : vector<4x16x8xf32>
    %cst_156 = arith.constant 1.000000e+00 : f32
    %200 = vector.broadcast %cst_156 : f32 to vector<4x16x8xf32>
    %201 = arith.addf %200, %199 : vector<4x16x8xf32>
    %202 = arith.divf %200, %201 : vector<4x16x8xf32>
    %203 = vector.shape_cast %202 : vector<4x16x8xf32> to vector<4x1x16x8xf32>
    %204 = vector.shape_cast %203 : vector<4x1x16x8xf32> to vector<4x1x16x8xf32>
    %205 = vector.broadcast %204 : vector<4x1x16x8xf32> to vector<4x2x16x8xf32>
    %206 = vector.shape_cast %205 : vector<4x2x16x8xf32> to vector<8x16x8xf32>
    %207 = arith.mulf %195, %206 : vector<8x16x8xf32>
    %c0_157 = arith.constant 0 : index
    %c0_158 = arith.constant 0 : index
    %c0_159 = arith.constant 0 : index
    %c0_160 = arith.constant 0 : index
    %208 = vector.load %arg12[%c0_157, %c0_158, %c0_159, %c0_160] : memref<1x8x16x8xf32, #tpu.memory_space<vmem>>, vector<1x8x16x8xf32>
    %209 = vector.shape_cast %208 : vector<1x8x16x8xf32> to vector<8x16x8xf32>
    %210 = vector.shape_cast %207 : vector<8x16x8xf32> to vector<1x8x16x8xf32>
    tpu.vector_store %arg12[%c0_157, %c0_158, %c0_159, %c0_160], %210 {strides = array<i32>} : memref<1x8x16x8xf32, #tpu.memory_space<vmem>>, vector<1x8x16x8xf32>,
    return
  }
  func.func @transform_0(%arg0: i32, %arg1: i32) -> (i32, i32, i32, i32) {
    %c0_i32 = arith.constant 0 : i32
    %c0_i32_0 = arith.constant 0 : i32
    %c0_i32_1 = arith.constant 0 : i32
    return %arg0, %arg1, %c0_i32, %c0_i32_0 : i32, i32, i32, i32
  }
  func.func @transform_1(%arg0: i32, %arg1: i32) -> (i32, i32, i32, i32) {
    %c8_i32 = arith.constant 8 : i32
    %0 = arith.muli %arg1, %c8_i32 : i32
    %c1_i32 = arith.constant 1 : i32
    %1 = arith.subi %0, %c1_i32 : i32
    %c0_i32 = arith.constant 0 : i32
    %2 = arith.maxsi %1, %c0_i32 : i32
    %c0_i32_0 = arith.constant 0 : i32
    %c0_i32_1 = arith.constant 0 : i32
    %c0_i32_2 = arith.constant 0 : i32
    return %arg0, %2, %c0_i32_0, %c0_i32_1 : i32, i32, i32, i32
  }
  func.func @transform_2(%arg0: i32, %arg1: i32) -> (i32, i32, i32, i32) {
    %c1_i32 = arith.constant 1 : i32
    %0 = arith.addi %arg1, %c1_i32 : i32
    %c8_i32 = arith.constant 8 : i32
    %1 = arith.muli %0, %c8_i32 : i32
    %c15_i32 = arith.constant 15 : i32
    %2 = arith.minsi %1, %c15_i32 : i32
    %c0_i32 = arith.constant 0 : i32
    %c0_i32_0 = arith.constant 0 : i32
    %c0_i32_1 = arith.constant 0 : i32
    return %arg0, %2, %c0_i32, %c0_i32_0 : i32, i32, i32, i32
  }
  func.func @transform_3(%arg0: i32, %arg1: i32) -> (i32, i32, i32, i32) {
    %c0_i32 = arith.constant 0 : i32
    %c0_i32_0 = arith.constant 0 : i32
    %c0_i32_1 = arith.constant 0 : i32
    return %arg0, %arg1, %c0_i32, %c0_i32_0 : i32, i32, i32, i32
  }
  func.func @transform_4(%arg0: i32, %arg1: i32) -> (i32, i32) {
    %c0_i32 = arith.constant 0 : i32
    %c0_i32_0 = arith.constant 0 : i32
    %c0_i32_1 = arith.constant 0 : i32
    return %c0_i32, %c0_i32_0 : i32, i32
  }
  func.func @transform_5(%arg0: i32, %arg1: i32) -> (i32, i32, i32) {
    %c0_i32 = arith.constant 0 : i32
    %c0_i32_0 = arith.constant 0 : i32
    %c0_i32_1 = arith.constant 0 : i32
    %c0_i32_2 = arith.constant 0 : i32
    return %c0_i32, %c0_i32_0, %c0_i32_1 : i32, i32, i32
  }
  func.func @transform_6(%arg0: i32, %arg1: i32) -> (i32, i32, i32) {
    %c0_i32 = arith.constant 0 : i32
    %c0_i32_0 = arith.constant 0 : i32
    %c0_i32_1 = arith.constant 0 : i32
    %c0_i32_2 = arith.constant 0 : i32
    return %c0_i32, %c0_i32_0, %c0_i32_1 : i32, i32, i32
  }
  func.func @transform_7(%arg0: i32, %arg1: i32) -> (i32, i32) {
    %c0_i32 = arith.constant 0 : i32
    %c0_i32_0 = arith.constant 0 : i32
    %c0_i32_1 = arith.constant 0 : i32
    return %c0_i32, %c0_i32_0 : i32, i32
  }
  func.func @transform_8(%arg0: i32, %arg1: i32) -> (i32, i32, i32) {
    %c0_i32 = arith.constant 0 : i32
    %c0_i32_0 = arith.constant 0 : i32
    %c0_i32_1 = arith.constant 0 : i32
    %c0_i32_2 = arith.constant 0 : i32
    return %c0_i32, %c0_i32_0, %c0_i32_1 : i32, i32, i32
  }
  func.func @transform_9(%arg0: i32, %arg1: i32) -> (i32, i32, i32) {
    %c0_i32 = arith.constant 0 : i32
    %c0_i32_0 = arith.constant 0 : i32
    %c0_i32_1 = arith.constant 0 : i32
    %c0_i32_2 = arith.constant 0 : i32
    return %c0_i32, %c0_i32_0, %c0_i32_1 : i32, i32, i32
  }
  func.func @transform_10(%arg0: i32, %arg1: i32) -> (i32, i32, i32, i32) {
    %c0_i32 = arith.constant 0 : i32
    %c0_i32_0 = arith.constant 0 : i32
    %c0_i32_1 = arith.constant 0 : i32
    return %arg0, %arg1, %c0_i32, %c0_i32_0 : i32, i32, i32, i32
  }
}

</mosaic_0001>

<llo_original>
// kernel: _lambda_.2
$region0: #{_lambda_.2}
  #allocation0 [shape = 'u32[]', space=smem, size = 0x4, offset = 0x4, fixed_abs, tag = 'smem constant byte address 0x4 - core index']
  #allocation1 [shape = 'u32[144,128]{1,0:T(1,128)}', space=vmem, size = 0x12000, scoped, tag = 'internal scratch']
  #allocation2 [shape = 'f32[12,12,8]{2,1,0:T(8,128)}', space=vmem, size = 0x18000, scoped, tag = 'scratch operand']
  %s0 = inlined_call_operand.vmem [shape: f32[2,8,8,4], index: 0, kind: input, shape index: {}]
  %s1 = inlined_call_operand.vmem [shape: f32[4,8], index: 1, kind: input, shape index: {}]
  %s2 = inlined_call_operand.vmem [shape: f32[1,1,8], index: 2, kind: input, shape index: {}]
  %s3 = inlined_call_operand.vmem [shape: f32[1,1,8], index: 3, kind: input, shape index: {}]
  %s4 = inlined_call_operand.vmem [shape: f32[5,8], index: 4, kind: input, shape index: {}]
  %s5 = inlined_call_operand.vmem [shape: f32[1,1,8], index: 5, kind: input, shape index: {}]
  %s6 = inlined_call_operand.vmem [shape: f32[1,1,8], index: 6, kind: input, shape index: {}]
  %s7 = inlined_call_operand.vmem [shape: f32[5,8], index: 7, kind: input, shape index: {}]
  %s8 = inlined_call_operand.vmem [shape: f32[1,1,8], index: 8, kind: input, shape index: {}]
  %s9 = inlined_call_operand.vmem [shape: f32[1,1,8], index: 9, kind: input, shape index: {}]
  %s10 = inlined_call_operand.vmem [shape: f32[2,8,8,16], index: 10, kind: output, shape index: {}]
  %s11 = sld [smem:[#allocation0]]
  $region73: #{_lambda_.2} parent=0
    _
  %s13 = ssub.s32 1, %s11
  %s14 = scalar_select 0, %s13, %s11
  loop: start=0, step=1, limit=4
  $region2: #{_lambda_.2} parent=0 // loop_pre_header
    _
  $region3: #{_lambda_.2} parent=0 // loop_header
    %s16 = sphi 0, %s20
    %p17 = scmp.ge.s32.totalorder %s16, 4
    %s26 = sphi 0, %s28
    %s29 = sphi 0, %s26
    %s30 = sphi 0, %s29
    %s46 = sphi 0, %s30
    %s50 = sphi 0, %s50
    %s52 = sphi 0, %s50
    %s53 = sphi 0, %s52
    %s67 = sphi 0, %s53
    %s71 = sphi 0, %s71
    %s73 = sphi 0, %s71
    %s74 = sphi 0, %s73
    %s88 = sphi 0, %s74
    %s92 = sphi 0, %s92
    %s94 = sphi 0, %s92
    %s95 = sphi 0, %s94
    %s109 = sphi 0, %s95
    %s113 = sphi 0, %s113
    %s115 = sphi 0, %s113
    %s116 = sphi 0, %s115
    %s130 = sphi 0, %s116
    %s134 = sphi 0, %s134
    %s136 = sphi 0, %s134
    %s137 = sphi 0, %s136
    %s151 = sphi 0, %s137
    %s155 = sphi 0, %s155
    %s157 = sphi 0, %s155
    %s158 = sphi 0, %s157
    %s172 = sphi 0, %s158
    %s176 = sphi 0, %s176
    %s178 = sphi 0, %s176
    %s179 = sphi 0, %s178
    %s193 = sphi 0, %s179
    %s197 = sphi 0, %s197
    %s199 = sphi 0, %s197
    %s200 = sphi 0, %s199
    %s214 = sphi 0, %s200
    %s218 = sphi 0, %s218
    %s220 = sphi 0, %s218
    %s221 = sphi 0, %s220
    %s235 = sphi 0, %s221
    %s241 = sphi 0, %s243
    %s244 = sphi 0, %s241
    %s245 = sphi 0, %s244
    %s261 = sphi 0, %s245
  $region4: #{_lambda_.2} parent=0 // loop_header_branch
    %19 = sbr.rel (%p17) target = $region8
  $region5: #{_lambda_.2} parent=0 // loop_body
    %s21 = ssub.s32 %s16, 1
    %s22 = ssub.s32 %s16, 2
    %s23 = sadd.s32 %s16, 1
    %s24 = ssub.s32 %s16, %s23
    %p25 = scmp.eq.s32.totalorder %s24, 0
    %s27 = sadd.s32 %s26, 1
    %s28 = scalar_select %p25, %s26, %s27
    %p31 = pneg %p25
    %p32 = scmp.eq.s32.totalorder %s16, 1
    %p33 = por %p31, %p32
    %p34 = scmp.ne.s32.totalorder %s26, %s29
    %p35 = scmp.eq.s32.totalorder %s16, 0
    %p36 = por %p34, %p35
    %p37 = scmp.ne.s32.totalorder %s26, %s29
    %p38 = scmp.eq.s32.totalorder %s21, 1
    %p39 = por %p37, %p38
    %p40 = scmp.ne.s32.totalorder %s29, %s30
    %p41 = scmp.eq.s32.totalorder %s21, 0
    %p42 = por %p40, %p41
    %p43 = scmp.ne.s32.totalorder %s29, %s30
    %p44 = scmp.eq.s32.totalorder %s22, 1
    %p45 = por %p43, %p44
    %p47 = scmp.ne.s32.totalorder %s30, %s46
    %p48 = scmp.eq.s32.totalorder %s22, 0
    %p49 = por %p47, %p48
    %s51 = sadd.s32 %s50, 1
    %p54 = scmp.eq.s32.totalorder %s16, 1
    %p55 = scmp.ne.s32.totalorder %s50, %s52
    %p56 = scmp.eq.s32.totalorder %s16, 0
    %p57 = por %p55, %p56
    %p58 = scmp.ne.s32.totalorder %s50, %s52
    %p59 = scmp.eq.s32.totalorder %s21, 1
    %p60 = por %p58, %p59
    %p61 = scmp.ne.s32.totalorder %s52, %s53
    %p62 = scmp.eq.s32.totalorder %s21, 0
    %p63 = por %p61, %p62
    %p64 = scmp.ne.s32.totalorder %s52, %s53
    %p65 = scmp.eq.s32.totalorder %s22, 1
    %p66 = por %p64, %p65
    %p68 = scmp.ne.s32.totalorder %s53, %s67
    %p69 = scmp.eq.s32.totalorder %s22, 0
    %p70 = por %p68, %p69
    %s72 = sadd.s32 %s71, 1
    %p75 = scmp.eq.s32.totalorder %s16, 1
    %p76 = scmp.ne.s32.totalorder %s71, %s73
    %p77 = scmp.eq.s32.totalorder %s16, 0
    %p78 = por %p76, %p77
    %p79 = scmp.ne.s32.totalorder %s71, %s73
    %p80 = scmp.eq.s32.totalorder %s21, 1
    %p81 = por %p79, %p80
    %p82 = scmp.ne.s32.totalorder %s73, %s74
    %p83 = scmp.eq.s32.totalorder %s21, 0
    %p84 = por %p82, %p83
    %p85 = scmp.ne.s32.totalorder %s73, %s74
    %p86 = scmp.eq.s32.totalorder %s22, 1
    %p87 = por %p85, %p86
    %p89 = scmp.ne.s32.totalorder %s74, %s88
    %p90 = scmp.eq.s32.totalorder %s22, 0
    %p91 = por %p89, %p90
    %s93 = sadd.s32 %s92, 1
    %p96 = scmp.eq.s32.totalorder %s16, 1
    %p97 = scmp.ne.s32.totalorder %s92, %s94
    %p98 = scmp.eq.s32.totalorder %s16, 0
    %p99 = por %p97, %p98
    %p100 = scmp.ne.s32.totalorder %s92, %s94
    %p101 = scmp.eq.s32.totalorder %s21, 1
    %p102 = por %p100, %p101
    %p103 = scmp.ne.s32.totalorder %s94, %s95
    %p104 = scmp.eq.s32.totalorder %s21, 0
    %p105 = por %p103, %p104
    %p106 = scmp.ne.s32.totalorder %s94, %s95
    %p107 = scmp.eq.s32.totalorder %s22, 1
    %p108 = por %p106, %p107
    %p110 = scmp.ne.s32.totalorder %s95, %s109
    %p111 = scmp.eq.s32.totalorder %s22, 0
    %p112 = por %p110, %p111
    %s114 = sadd.s32 %s113, 1
    %p117 = scmp.eq.s32.totalorder %s16, 1
    %p118 = scmp.ne.s32.totalorder %s113, %s115
    %p119 = scmp.eq.s32.totalorder %s16, 0
    %p120 = por %p118, %p119
    %p121 = scmp.ne.s32.totalorder %s113, %s115
    %p122 = scmp.eq.s32.totalorder %s21, 1
    %p123 = por %p121, %p122
    %p124 = scmp.ne.s32.totalorder %s115, %s116
    %p125 = scmp.eq.s32.totalorder %s21, 0
    %p126 = por %p124, %p125
    %p127 = scmp.ne.s32.totalorder %s115, %s116
    %p128 = scmp.eq.s32.totalorder %s22, 1
    %p129 = por %p127, %p128
    %p131 = scmp.ne.s32.totalorder %s116, %s130
    %p132 = scmp.eq.s32.totalorder %s22, 0
    %p133 = por %p131, %p132
    %s135 = sadd.s32 %s134, 1
    %p138 = scmp.eq.s32.totalorder %s16, 1
    %p139 = scmp.ne.s32.totalorder %s134, %s136
    %p140 = scmp.eq.s32.totalorder %s16, 0
    %p141 = por %p139, %p140
    %p142 = scmp.ne.s32.totalorder %s134, %s136
    %p143 = scmp.eq.s32.totalorder %s21, 1
    %p144 = por %p142, %p143
    %p145 = scmp.ne.s32.totalorder %s136, %s137
    %p146 = scmp.eq.s32.totalorder %s21, 0
    %p147 = por %p145, %p146
    %p148 = scmp.ne.s32.totalorder %s136, %s137
    %p149 = scmp.eq.s32.totalorder %s22, 1
    %p150 = por %p148, %p149
    %p152 = scmp.ne.s32.totalorder %s137, %s151
    %p153 = scmp.eq.s32.totalorder %s22, 0
    %p154 = por %p152, %p153
    %s156 = sadd.s32 %s155, 1
    %p159 = scmp.eq.s32.totalorder %s16, 1
    %p160 = scmp.ne.s32.totalorder %s155, %s157
    %p161 = scmp.eq.s32.totalorder %s16, 0
    %p162 = por %p160, %p161
    %p163 = scmp.ne.s32.totalorder %s155, %s157
    %p164 = scmp.eq.s32.totalorder %s21, 1
    %p165 = por %p163, %p164
    %p166 = scmp.ne.s32.totalorder %s157, %s158
    %p167 = scmp.eq.s32.totalorder %s21, 0
    %p168 = por %p166, %p167
    %p169 = scmp.ne.s32.totalorder %s157, %s158
    %p170 = scmp.eq.s32.totalorder %s22, 1
    %p171 = por %p169, %p170
    %p173 = scmp.ne.s32.totalorder %s158, %s172
    %p174 = scmp.eq.s32.totalorder %s22, 0
    %p175 = por %p173, %p174
    %s177 = sadd.s32 %s176, 1
    %p180 = scmp.eq.s32.totalorder %s16, 1
    %p181 = scmp.ne.s32.totalorder %s176, %s178
    %p182 = scmp.eq.s32.totalorder %s16, 0
    %p183 = por %p181, %p182
    %p184 = scmp.ne.s32.totalorder %s176, %s178
    %p185 = scmp.eq.s32.totalorder %s21, 1
    %p186 = por %p184, %p185
    %p187 = scmp.ne.s32.totalorder %s178, %s179
    %p188 = scmp.eq.s32.totalorder %s21, 0
    %p189 = por %p187, %p188
    %p190 = scmp.ne.s32.totalorder %s178, %s179
    %p191 = scmp.eq.s32.totalorder %s22, 1
    %p192 = por %p190, %p191
    %p194 = scmp.ne.s32.totalorder %s179, %s193
    %p195 = scmp.eq.s32.totalorder %s22, 0
    %p196 = por %p194, %p195
    %s198 = sadd.s32 %s197, 1
    %p201 = scmp.eq.s32.totalorder %s16, 1
    %p202 = scmp.ne.s32.totalorder %s197, %s199
    %p203 = scmp.eq.s32.totalorder %s16, 0
    %p204 = por %p202, %p203
    %p205 = scmp.ne.s32.totalorder %s197, %s199
    %p206 = scmp.eq.s32.totalorder %s21, 1
    %p207 = por %p205, %p206
    %p208 = scmp.ne.s32.totalorder %s199, %s200
    %p209 = scmp.eq.s32.totalorder %s21, 0
    %p210 = por %p208, %p209
    %p211 = scmp.ne.s32.totalorder %s199, %s200
    %p212 = scmp.eq.s32.totalorder %s22, 1
    %p213 = por %p211, %p212
    %p215 = scmp.ne.s32.totalorder %s200, %s214
    %p216 = scmp.eq.s32.totalorder %s22, 0
    %p217 = por %p215, %p216
    %s219 = sadd.s32 %s218, 1
    %p222 = scmp.eq.s32.totalorder %s16, 1
    %p223 = scmp.ne.s32.totalorder %s218, %s220
    %p224 = scmp.eq.s32.totalorder %s16, 0
    %p225 = por %p223, %p224
    %p226 = scmp.ne.s32.totalorder %s218, %s220
    %p227 = scmp.eq.s32.totalorder %s21, 1
    %p228 = por %p226, %p227
    %p229 = scmp.ne.s32.totalorder %s220, %s221
    %p230 = scmp.eq.s32.totalorder %s21, 0
    %p231 = por %p229, %p230
    %p232 = scmp.ne.s32.totalorder %s220, %s221
    %p233 = scmp.eq.s32.totalorder %s22, 1
    %p234 = por %p232, %p233
    %p236 = scmp.ne.s32.totalorder %s221, %s235
    %p237 = scmp.eq.s32.totalorder %s22, 0
    %p238 = por %p236, %p237
    %s239 = ssub.s32 %s16, %s23
    %p240 = scmp.eq.s32.totalorder %s239, 0
    %s242 = sadd.s32 %s241, 1
    %s243 = scalar_select %p240, %s241, %s242
    %p246 = pneg %p240
    %p247 = scmp.eq.s32.totalorder %s16, 1
    %p248 = por %p246, %p247
    %p249 = scmp.ne.s32.totalorder %s241, %s244
    %p250 = scmp.eq.s32.totalorder %s16, 0
    %p251 = por %p249, %p250
    %p252 = scmp.ne.s32.totalorder %s241, %s244
    %p253 = scmp.eq.s32.totalorder %s21, 1
    %p254 = por %p252, %p253
    %p255 = scmp.ne.s32.totalorder %s244, %s245
    %p256 = scmp.eq.s32.totalorder %s21, 0
    %p257 = por %p255, %p256
    %p258 = scmp.ne.s32.totalorder %s244, %s245
    %p259 = scmp.eq.s32.totalorder %s22, 1
    %p260 = por %p258, %p259
    %p262 = scmp.ne.s32.totalorder %s245, %s261
    %p263 = scmp.eq.s32.totalorder %s22, 0
    %p264 = por %p262, %p263
    %p265 = scmp.le.s32.totalorder 1, %s16
    %p266 = scmp.lt.s32.totalorder %s16, 3
    %p267 = pnand %p265, %p266
    %p268 = pneg %p267
    // Predicated region
    $region9: #{_lambda_.2} parent=5 // pred_check
      _
    $region10: #{_lambda_.2} parent=5 // pred_check_branch
      %270 = sbr.rel (%p267) target = $region12
    $region11: #{_lambda_.2} parent=5 // pred_region
      %s271 = ssub.s32 %s16, 1
      // Predicated region
      $region13: #{_lambda_.2} parent=11 // pred_check
        %p272 = pneg %p63
      $region14: #{_lambda_.2} parent=11 // pred_check_branch
        %274 = sbr.rel (%p272) target = $region16
      $region15: #{_lambda_.2} parent=11 // pred_region
        _
      $region16: #{_lambda_.2} parent=11 // pred_fallthru
        _
      // Predicated region
      $region17: #{_lambda_.2} parent=11 // pred_check
        %p275 = pneg %p84
      $region18: #{_lambda_.2} parent=11 // pred_check_branch
        %277 = sbr.rel (%p275) target = $region20
      $region19: #{_lambda_.2} parent=11 // pred_region
        _
      $region20: #{_lambda_.2} parent=11 // pred_fallthru
        _
      // Predicated region
      $region21: #{_lambda_.2} parent=11 // pred_check
        %p278 = pneg %p105
      $region22: #{_lambda_.2} parent=11 // pred_check_branch
        %280 = sbr.rel (%p278) target = $region24
      $region23: #{_lambda_.2} parent=11 // pred_region
        _
      $region24: #{_lambda_.2} parent=11 // pred_fallthru
        _
      // Predicated region
      $region25: #{_lambda_.2} parent=11 // pred_check
        %p281 = pneg %p126
      $region26: #{_lambda_.2} parent=11 // pred_check_branch
        %283 = sbr.rel (%p281) target = $region28
      $region27: #{_lambda_.2} parent=11 // pred_region
        _
      $region28: #{_lambda_.2} parent=11 // pred_fallthru
        _
      // Predicated region
      $region29: #{_lambda_.2} parent=11 // pred_check
        %p284 = pneg %p147
      $region30: #{_lambda_.2} parent=11 // pred_check_branch
        %286 = sbr.rel (%p284) target = $region32
      $region31: #{_lambda_.2} parent=11 // pred_region
        _
      $region32: #{_lambda_.2} parent=11 // pred_fallthru
        _
      // Predicated region
      $region33: #{_lambda_.2} parent=11 // pred_check
        %p287 = pneg %p168
      $region34: #{_lambda_.2} parent=11 // pred_check_branch
        %289 = sbr.rel (%p287) target = $region36
      $region35: #{_lambda_.2} parent=11 // pred_region
        _
      $region36: #{_lambda_.2} parent=11 // pred_fallthru
        _
      // Predicated region
      $region37: #{_lambda_.2} parent=11 // pred_check
        %p290 = pneg %p189
      $region38: #{_lambda_.2} parent=11 // pred_check_branch
        %292 = sbr.rel (%p290) target = $region40
      $region39: #{_lambda_.2} parent=11 // pred_region
        _
      $region40: #{_lambda_.2} parent=11 // pred_fallthru
        _
      // Predicated region
      $region41: #{_lambda_.2} parent=11 // pred_check
        %p293 = pneg %p210
      $region42: #{_lambda_.2} parent=11 // pred_check_branch
        %295 = sbr.rel (%p293) target = $region44
      $region43: #{_lambda_.2} parent=11 // pred_region
        _
      $region44: #{_lambda_.2} parent=11 // pred_fallthru
        _
      // Predicated region
      $region45: #{_lambda_.2} parent=11 // pred_check
        %p296 = pneg %p231
      $region46: #{_lambda_.2} parent=11 // pred_check_branch
        %298 = sbr.rel (%p296) target = $region48
      $region47: #{_lambda_.2} parent=11 // pred_region
        _
      $region48: #{_lambda_.2} parent=11 // pred_fallthru
        _
    $region12: #{_lambda_.2} parent=5 // pred_fallthru
      _
    %p299 = scmp.lt.s32.totalorder %s16, 2
    // Predicated region
    $region49: #{_lambda_.2} parent=5 // pred_check
      %p300 = pneg %p299
    $region50: #{_lambda_.2} parent=5 // pred_check_branch
      %302 = sbr.rel (%p300) target = $region52
    $region51: #{_lambda_.2} parent=5 // pred_region
      // Predicated region
      $region53: #{_lambda_.2} parent=51 // pred_check
        %p303 = pneg %p36
      $region54: #{_lambda_.2} parent=51 // pred_check_branch
        %305 = sbr.rel (%p303) target = $region56
      $region55: #{_lambda_.2} parent=51 // pred_region
        %p306 = scmp.lt.s32.totalorder %s16, 1
        %s307 = scalar_select %p306, %s16, 1
        %s308 = smul.addr %s307, 8
        %s309 = smul.addr %s308, 8
        %s310 = scalar_lea.vmem %s0, %s309
      $region56: #{_lambda_.2} parent=51 // pred_fallthru
        _
    $region52: #{_lambda_.2} parent=5 // pred_fallthru
      _
    %p311 = scmp.le.s32.totalorder 1, %s16
    %p312 = scmp.lt.s32.totalorder %s16, 3
    %p313 = pnand %p311, %p312
    %p314 = pneg %p313
    // Predicated region
    $region57: #{_lambda_.2} parent=5 // pred_check
      _
    $region58: #{_lambda_.2} parent=5 // pred_check_branch
      %316 = sbr.rel (%p313) target = $region60
    $region59: #{_lambda_.2} parent=5 // pred_region
      %s317 = ssub.s32 %s16, 1
      %p318 = scmp.lt.s32.totalorder %s21, 1
      %s319 = scalar_select %p318, %s21, 1
      %s320 = smul.addr %s319, 8
      %s321 = smul.addr %s320, 8
      %s322 = scalar_lea.vmem %s0, %s321
      %p323 = pneg %p42
      %p324 = pneg %p39
      %p325 = pneg %p63
      %p326 = pneg %p60
      %p327 = pneg %p84
      %p328 = pneg %p81
      %p329 = pneg %p105
      %p330 = pneg %p102
      %p331 = pneg %p126
      %p332 = pneg %p123
      %p333 = pneg %p147
      %p334 = pneg %p144
      %p335 = pneg %p168
      %p336 = pneg %p165
      %p337 = pneg %p189
      %p338 = pneg %p186
      %p339 = pneg %p210
      %p340 = pneg %p207
      %p341 = pneg %p231
      %p342 = pneg %p228
      %p343 = pneg %p257
      %p344 = pneg %p254
      %p345 = scmp.lt.s32.totalorder %s21, 1
      %s346 = scalar_select %p345, %s21, 1
      %s347 = smul.addr %s346, 8
      %s348 = smul.addr %s347, 8
      %s349 = scalar_lea.vmem %s10, %s348
      %p350 = scmp.lt.s32.totalorder %s21, 1
      %s351 = scalar_select %p350, %s21, 1
      %s352 = smul.addr %s351, 8
      %s353 = smul.addr %s352, 8
      %s354 = scalar_lea.vmem %s0, %s353
      %p355 = scmp.lt.s32.totalorder %s21, 1
      %s356 = scalar_select %p355, %s21, 1
      %s357 = smul.addr %s356, 8
      %s358 = smul.addr %s357, 8
      %s359 = scalar_lea.vmem %s10, %s358
      %v360 = vld [vmem:[%s354] sm:$0xff]
      %v361 = vld [vmem:[%s354 + $0x8] sm:$0xff]
      %v362 = vld [vmem:[%s354 + $0x10] sm:$0xff]
      %v363 = vld [vmem:[%s354 + $0x18] sm:$0xff]
      %v364 = vld [vmem:[%s354 + $0x20] sm:$0xff]
      %v365 = vld [vmem:[%s354 + $0x28] sm:$0xff]
      %v366 = vld [vmem:[%s354 + $0x30] sm:$0xff]
      %v367 = vld [vmem:[%s354 + $0x38] sm:$0xff]
      %v368 = vld [vmem:[%s1] sm:$0x1]
      %370 = vset.pattern.permute.xlu0 0
      %371 = vperm.xlu0 %370, %v360
      %v372 = vpop.permute.xlu0 %371
      %375 = vset.pattern.permute.xlu0 0
      %376 = vperm.xlu0 %375, %v361
      %v377 = vpop.permute.xlu0 %376
      %380 = vset.pattern.permute.xlu0 0
      %381 = vperm.xlu0 %380, %v362
      %v382 = vpop.permute.xlu0 %381
      %385 = vset.pattern.permute.xlu0 0
      %386 = vperm.xlu0 %385, %v363
      %v387 = vpop.permute.xlu0 %386
      %390 = vset.pattern.permute.xlu0 0
      %391 = vperm.xlu0 %390, %v364
      %v392 = vpop.permute.xlu0 %391
      %395 = vset.pattern.permute.xlu0 0
      %396 = vperm.xlu0 %395, %v365
      %v397 = vpop.permute.xlu0 %396
      %400 = vset.pattern.permute.xlu0 0
      %401 = vperm.xlu0 %400, %v366
      %v402 = vpop.permute.xlu0 %401
      %405 = vset.pattern.permute.xlu0 0
      %406 = vperm.xlu0 %405, %v367
      %v407 = vpop.permute.xlu0 %406
      %v409 = vlaneseq
      %v410 = vshrl.u32 %v409, 7
      %v411 = vsub.s32 0, %v410
      %v412 = vrot.slane %v368, %v411
      %v413 = vmul.f32 %v372, %v412
      %v414 = vmul.f32 %v377, %v412
      %v415 = vmul.f32 %v382, %v412
      %v416 = vmul.f32 %v387, %v412
      %v417 = vmul.f32 %v392, %v412
      %v418 = vmul.f32 %v397, %v412
      %v419 = vmul.f32 %v402, %v412
      %v420 = vmul.f32 %v407, %v412
      %v421 = vld [vmem:[%s1 + $0x1] sm:$0x1]
      %422 = vset.pattern.permute.xlu0 1
      %423 = vperm.xlu0 %422, %v360
      %v424 = vpop.permute.xlu0 %423
      %426 = vset.pattern.permute.xlu0 1
      %427 = vperm.xlu0 %426, %v361
      %v428 = vpop.permute.xlu0 %427
      %430 = vset.pattern.permute.xlu0 1
      %431 = vperm.xlu0 %430, %v362
      %v432 = vpop.permute.xlu0 %431
      %434 = vset.pattern.permute.xlu0 1
      %435 = vperm.xlu0 %434, %v363
      %v436 = vpop.permute.xlu0 %435
      %438 = vset.pattern.permute.xlu0 1
      %439 = vperm.xlu0 %438, %v364
      %v440 = vpop.permute.xlu0 %439
      %442 = vset.pattern.permute.xlu0 1
      %443 = vperm.xlu0 %442, %v365
      %v444 = vpop.permute.xlu0 %443
      %446 = vset.pattern.permute.xlu0 1
      %447 = vperm.xlu0 %446, %v366
      %v448 = vpop.permute.xlu0 %447
      %450 = vset.pattern.permute.xlu0 1
      %451 = vperm.xlu0 %450, %v367
      %v452 = vpop.permute.xlu0 %451
      %v454 = vlaneseq
      %v455 = vshrl.u32 %v454, 7
      %v456 = vsub.s32 0, %v455
      %v457 = vrot.slane %v421, %v456
      %v458 = vmul.f32 %v424, %v457
      %v459 = vmul.f32 %v428, %v457
      %v460 = vmul.f32 %v432, %v457
      %v461 = vmul.f32 %v436, %v457
      %v462 = vmul.f32 %v440, %v457
      %v463 = vmul.f32 %v444, %v457
      %v464 = vmul.f32 %v448, %v457
      %v465 = vmul.f32 %v452, %v457
      %v466 = vadd.f32 %v413, %v458
      %v467 = vadd.f32 %v414, %v459
      %v468 = vadd.f32 %v415, %v460
      %v469 = vadd.f32 %v416, %v461
      %v470 = vadd.f32 %v417, %v462
      %v471 = vadd.f32 %v418, %v463
      %v472 = vadd.f32 %v419, %v464
      %v473 = vadd.f32 %v420, %v465
      %v474 = vld [vmem:[%s1 + $0x2] sm:$0x1]
      %475 = vset.pattern.permute.xlu0 2
      %476 = vperm.xlu0 %475, %v360
      %v477 = vpop.permute.xlu0 %476
      %479 = vset.pattern.permute.xlu0 2
      %480 = vperm.xlu0 %479, %v361
      %v481 = vpop.permute.xlu0 %480
      %483 = vset.pattern.permute.xlu0 2
      %484 = vperm.xlu0 %483, %v362
      %v485 = vpop.permute.xlu0 %484
      %487 = vset.pattern.permute.xlu0 2
      %488 = vperm.xlu0 %487, %v363
      %v489 = vpop.permute.xlu0 %488
      %491 = vset.pattern.permute.xlu0 2
      %492 = vperm.xlu0 %491, %v364
      %v493 = vpop.permute.xlu0 %492
      %495 = vset.pattern.permute.xlu0 2
      %496 = vperm.xlu0 %495, %v365
      %v497 = vpop.permute.xlu0 %496
      %499 = vset.pattern.permute.xlu0 2
      %500 = vperm.xlu0 %499, %v366
      %v501 = vpop.permute.xlu0 %500
      %503 = vset.pattern.permute.xlu0 2
      %504 = vperm.xlu0 %503, %v367
      %v505 = vpop.permute.xlu0 %504
      %v507 = vlaneseq
      %v508 = vshrl.u32 %v507, 7
      %v509 = vsub.s32 0, %v508
      %v510 = vrot.slane %v474, %v509
      %v511 = vmul.f32 %v477, %v510
      %v512 = vmul.f32 %v481, %v510
      %v513 = vmul.f32 %v485, %v510
      %v514 = vmul.f32 %v489, %v510
      %v515 = vmul.f32 %v493, %v510
      %v516 = vmul.f32 %v497, %v510
      %v517 = vmul.f32 %v501, %v510
      %v518 = vmul.f32 %v505, %v510
      %v519 = vadd.f32 %v466, %v511
      %v520 = vadd.f32 %v467, %v512
      %v521 = vadd.f32 %v468, %v513
      %v522 = vadd.f32 %v469, %v514
      %v523 = vadd.f32 %v470, %v515
      %v524 = vadd.f32 %v471, %v516
      %v525 = vadd.f32 %v472, %v517
      %v526 = vadd.f32 %v473, %v518
      %v527 = vld [vmem:[%s1 + $0x3] sm:$0x1]
      %528 = vset.pattern.permute.xlu0 3
      %529 = vperm.xlu0 %528, %v360
      %v530 = vpop.permute.xlu0 %529
      %532 = vset.pattern.permute.xlu0 3
      %533 = vperm.xlu0 %532, %v361
      %v534 = vpop.permute.xlu0 %533
      %536 = vset.pattern.permute.xlu0 3
      %537 = vperm.xlu0 %536, %v362
      %v538 = vpop.permute.xlu0 %537
      %540 = vset.pattern.permute.xlu0 3
      %541 = vperm.xlu0 %540, %v363
      %v542 = vpop.permute.xlu0 %541
      %544 = vset.pattern.permute.xlu0 3
      %545 = vperm.xlu0 %544, %v364
      %v546 = vpop.permute.xlu0 %545
      %548 = vset.pattern.permute.xlu0 3
      %549 = vperm.xlu0 %548, %v365
      %v550 = vpop.permute.xlu0 %549
      %552 = vset.pattern.permute.xlu0 3
      %553 = vperm.xlu0 %552, %v366
      %v554 = vpop.permute.xlu0 %553
      %556 = vset.pattern.permute.xlu0 3
      %557 = vperm.xlu0 %556, %v367
      %v558 = vpop.permute.xlu0 %557
      %v560 = vlaneseq
      %v561 = vshrl.u32 %v560, 7
      %v562 = vsub.s32 0, %v561
      %v563 = vrot.slane %v527, %v562
      %v564 = vmul.f32 %v530, %v563
      %v565 = vmul.f32 %v534, %v563
      %v566 = vmul.f32 %v538, %v563
      %v567 = vmul.f32 %v542, %v563
      %v568 = vmul.f32 %v546, %v563
      %v569 = vmul.f32 %v550, %v563
      %v570 = vmul.f32 %v554, %v563
      %v571 = vmul.f32 %v558, %v563
      %v572 = vadd.f32 %v519, %v564
      %v573 = vadd.f32 %v520, %v565
      %v574 = vadd.f32 %v521, %v566
      %v575 = vadd.f32 %v522, %v567
      %v576 = vadd.f32 %v523, %v568
      %v577 = vadd.f32 %v524, %v569
      %v578 = vadd.f32 %v525, %v570
      %v579 = vadd.f32 %v526, %v571
      %v580 = vld [vmem:[%s2] sm:$0x1]
      %v582 = vlaneseq
      %v583 = vshrl.u32 %v582, 7
      %v584 = vsub.s32 0, %v583
      %v585 = vrot.slane %v580, %v584
      %v587 = vmul.f32 %v572, %v585
      %v588 = vmul.f32 %v573, %v585
      %v589 = vmul.f32 %v574, %v585
      %v590 = vmul.f32 %v575, %v585
      %v591 = vmul.f32 %v576, %v585
      %v592 = vmul.f32 %v577, %v585
      %v593 = vmul.f32 %v578, %v585
      %v594 = vmul.f32 %v579, %v585
      %v595 = vld [vmem:[%s3] sm:$0x1]
      %v597 = vlaneseq
      %v598 = vshrl.u32 %v597, 7
      %v599 = vsub.s32 0, %v598
      %v600 = vrot.slane %v595, %v599
      %v602 = vadd.f32 %v587, %v600
      %v603 = vadd.f32 %v588, %v600
      %v604 = vadd.f32 %v589, %v600
      %v605 = vadd.f32 %v590, %v600
      %v606 = vadd.f32 %v591, %v600
      %v607 = vadd.f32 %v592, %v600
      %v608 = vadd.f32 %v593, %v600
      %v609 = vadd.f32 %v594, %v600
      %vm610 = vcmask 64512
      %611 = vst.msk [vmem:[#allocation2] sm:$0xff] %vm610, 0.0
      %vm612 = vcmask 60416
      %613 = vst.msk [vmem:[#allocation2 + $0x8] sm:$0xf] %vm612, 0.0
      %614 = vst.msk [vmem:[#allocation2 + $0x10] sm:$0xff] %vm610, 0.0
      %615 = vst.msk [vmem:[#allocation2 + $0x18] sm:$0xf] %vm612, 0.0
      %616 = vst.msk [vmem:[#allocation2 + $0x20] sm:$0xff] %vm610, 0.0
      %617 = vst.msk [vmem:[#allocation2 + $0x28] sm:$0xf] %vm612, 0.0
      %618 = vst.msk [vmem:[#allocation2 + $0x30] sm:$0xff] %vm610, 0.0
      %619 = vst.msk [vmem:[#allocation2 + $0x38] sm:$0xf] %vm612, 0.0
      %620 = vst.msk [vmem:[#allocation2 + $0x40] sm:$0xff] %vm610, 0.0
      %621 = vst.msk [vmem:[#allocation2 + $0x48] sm:$0xf] %vm612, 0.0
      %622 = vst.msk [vmem:[#allocation2 + $0x50] sm:$0xff] %vm610, 0.0
      %623 = vst.msk [vmem:[#allocation2 + $0x58] sm:$0xf] %vm612, 0.0
      %624 = vst.msk [vmem:[#allocation2 + $0x60] sm:$0xff] %vm610, 0.0
      %625 = vst.msk [vmem:[#allocation2 + $0x68] sm:$0xf] %vm612, 0.0
      %626 = vst.msk [vmem:[#allocation2 + $0x70] sm:$0xff] %vm610, 0.0
      %627 = vst.msk [vmem:[#allocation2 + $0x78] sm:$0xf] %vm612, 0.0
      %628 = vst.msk [vmem:[#allocation2 + $0x80] sm:$0xff] %vm610, 0.0
      %629 = vst.msk [vmem:[#allocation2 + $0x88] sm:$0xf] %vm612, 0.0
      %630 = vst.msk [vmem:[#allocation2 + $0x90] sm:$0xff] %vm610, 0.0
      %631 = vst.msk [vmem:[#allocation2 + $0x98] sm:$0xf] %vm612, 0.0
      %632 = vst.msk [vmem:[#allocation2 + $0xa0] sm:$0xff] %vm610, 0.0
      %633 = vst.msk [vmem:[#allocation2 + $0xa8] sm:$0xf] %vm612, 0.0
      %634 = vst.msk [vmem:[#allocation2 + $0xb0] sm:$0xff] %vm610, 0.0
      %635 = vst.msk [vmem:[#allocation2 + $0xb8] sm:$0xf] %vm612, 0.0
      %s636 = scalar_lea.vmem [#allocation2], 32
      %637 = vst.msk [vmem:[%s636 + $0x2] sm:$0xff] %vm610, %v602
      %638 = vst.msk [vmem:[%s636 + $0x12] sm:$0xff] %vm610, %v603
      %639 = vst.msk [vmem:[%s636 + $0x22] sm:$0xff] %vm610, %v604
      %640 = vst.msk [vmem:[%s636 + $0x32] sm:$0xff] %vm610, %v605
      %641 = vst.msk [vmem:[%s636 + $0x42] sm:$0xff] %vm610, %v606
      %642 = vst.msk [vmem:[%s636 + $0x52] sm:$0xff] %vm610, %v607
      %643 = vst.msk [vmem:[%s636 + $0x62] sm:$0xff] %vm610, %v608
      %644 = vst.msk [vmem:[%s636 + $0x72] sm:$0xff] %vm610, %v609
      %v645 = vld [vmem:[%s636] sm:$0xff]
      %v646 = vld [vmem:[%s636 + $0x10] sm:$0xff]
      %v647 = vld [vmem:[%s636 + $0x20] sm:$0xff]
      %v648 = vld [vmem:[%s636 + $0x30] sm:$0xff]
      %v649 = vld [vmem:[%s636 + $0x40] sm:$0xff]
      %v650 = vld [vmem:[%s636 + $0x50] sm:$0xff]
      %v651 = vld [vmem:[%s636 + $0x60] sm:$0xff]
      %v652 = vld [vmem:[%s636 + $0x70] sm:$0xff]
      %v653 = vld [vmem:[%s4] sm:$0x1]
      %v654 = vlaneseq
      %v655 = vshrl.u32 %v654, 7
      %v656 = vsub.s32 0, %v655
      %v657 = vrot.slane %v653, %v656
      %v658 = vmul.f32 %v645, %v657
      %v659 = vmul.f32 %v646, %v657
      %v660 = vmul.f32 %v647, %v657
      %v661 = vmul.f32 %v648, %v657
      %v662 = vmul.f32 %v649, %v657
      %v663 = vmul.f32 %v650, %v657
      %v664 = vmul.f32 %v651, %v657
      %v665 = vmul.f32 %v652, %v657
      %v666 = vld [vmem:[%s636 + $0x1] sm:$0xff]
      %v667 = vld [vmem:[%s636 + $0x11] sm:$0xff]
      %v668 = vld [vmem:[%s636 + $0x21] sm:$0xff]
      %v669 = vld [vmem:[%s636 + $0x31] sm:$0xff]
      %v670 = vld [vmem:[%s636 + $0x41] sm:$0xff]
      %v671 = vld [vmem:[%s636 + $0x51] sm:$0xff]
      %v672 = vld [vmem:[%s636 + $0x61] sm:$0xff]
      %v673 = vld [vmem:[%s636 + $0x71] sm:$0xff]
      %v674 = vld [vmem:[%s4 + $0x1] sm:$0x1]
      %v675 = vlaneseq
      %v676 = vshrl.u32 %v675, 7
      %v677 = vsub.s32 0, %v676
      %v678 = vrot.slane %v674, %v677
      %v679 = vmul.f32 %v666, %v678
      %v680 = vmul.f32 %v667, %v678
      %v681 = vmul.f32 %v668, %v678
      %v682 = vmul.f32 %v669, %v678
      %v683 = vmul.f32 %v670, %v678
      %v684 = vmul.f32 %v671, %v678
      %v685 = vmul.f32 %v672, %v678
      %v686 = vmul.f32 %v673, %v678
      %v687 = vadd.f32 %v658, %v679
      %v688 = vadd.f32 %v659, %v680
      %v689 = vadd.f32 %v660, %v681
      %v690 = vadd.f32 %v661, %v682
      %v691 = vadd.f32 %v662, %v683
      %v692 = vadd.f32 %v663, %v684
      %v693 = vadd.f32 %v664, %v685
      %v694 = vadd.f32 %v665, %v686
      %v695 = vld [vmem:[%s636 + $0x2] sm:$0xff]
      %v696 = vld [vmem:[%s636 + $0x12] sm:$0xff]
      %v697 = vld [vmem:[%s636 + $0x22] sm:$0xff]
      %v698 = vld [vmem:[%s636 + $0x32] sm:$0xff]
      %v699 = vld [vmem:[%s636 + $0x42] sm:$0xff]
      %v700 = vld [vmem:[%s636 + $0x52] sm:$0xff]
      %v701 = vld [vmem:[%s636 + $0x62] sm:$0xff]
      %v702 = vld [vmem:[%s636 + $0x72] sm:$0xff]
      %v703 = vld [vmem:[%s4 + $0x2] sm:$0x1]
      %v704 = vlaneseq
      %v705 = vshrl.u32 %v704, 7
      %v706 = vsub.s32 0, %v705
      %v707 = vrot.slane %v703, %v706
      %v708 = vmul.f32 %v695, %v707
      %v709 = vmul.f32 %v696, %v707
      %v710 = vmul.f32 %v697, %v707
      %v711 = vmul.f32 %v698, %v707
      %v712 = vmul.f32 %v699, %v707
      %v713 = vmul.f32 %v700, %v707
      %v714 = vmul.f32 %v701, %v707
      %v715 = vmul.f32 %v702, %v707
      %v716 = vadd.f32 %v687, %v708
      %v717 = vadd.f32 %v688, %v709
      %v718 = vadd.f32 %v689, %v710
      %v719 = vadd.f32 %v690, %v711
      %v720 = vadd.f32 %v691, %v712
      %v721 = vadd.f32 %v692, %v713
      %v722 = vadd.f32 %v693, %v714
      %v723 = vadd.f32 %v694, %v715
      %v724 = vld [vmem:[%s636 + $0x3] sm:$0xff]
      %v725 = vld [vmem:[%s636 + $0x13] sm:$0xff]
      %v726 = vld [vmem:[%s636 + $0x23] sm:$0xff]
      %v727 = vld [vmem:[%s636 + $0x33] sm:$0xff]
      %v728 = vld [vmem:[%s636 + $0x43] sm:$0xff]
      %v729 = vld [vmem:[%s636 + $0x53] sm:$0xff]
      %v730 = vld [vmem:[%s636 + $0x63] sm:$0xff]
      %v731 = vld [vmem:[%s636 + $0x73] sm:$0xff]
      %v732 = vld [vmem:[%s4 + $0x3] sm:$0x1]
      %v733 = vlaneseq
      %v734 = vshrl.u32 %v733, 7
      %v735 = vsub.s32 0, %v734
      %v736 = vrot.slane %v732, %v735
      %v737 = vmul.f32 %v724, %v736
      %v738 = vmul.f32 %v725, %v736
      %v739 = vmul.f32 %v726, %v736
      %v740 = vmul.f32 %v727, %v736
      %v741 = vmul.f32 %v728, %v736
      %v742 = vmul.f32 %v729, %v736
      %v743 = vmul.f32 %v730, %v736
      %v744 = vmul.f32 %v731, %v736
      %v745 = vadd.f32 %v716, %v737
      %v746 = vadd.f32 %v717, %v738
      %v747 = vadd.f32 %v718, %v739
      %v748 = vadd.f32 %v719, %v740
      %v749 = vadd.f32 %v720, %v741
      %v750 = vadd.f32 %v721, %v742
      %v751 = vadd.f32 %v722, %v743
      %v752 = vadd.f32 %v723, %v744
      %v753 = vld [vmem:[%s636 + $0x4] sm:$0xff]
      %v754 = vld [vmem:[%s636 + $0x14] sm:$0xff]
      %v755 = vld [vmem:[%s636 + $0x24] sm:$0xff]
      %v756 = vld [vmem:[%s636 + $0x34] sm:$0xff]
      %v757 = vld [vmem:[%s636 + $0x44] sm:$0xff]
      %v758 = vld [vmem:[%s636 + $0x54] sm:$0xff]
      %v759 = vld [vmem:[%s636 + $0x64] sm:$0xff]
      %v760 = vld [vmem:[%s636 + $0x74] sm:$0xff]
      %v761 = vld [vmem:[%s4 + $0x4] sm:$0x1]
      %v762 = vlaneseq
      %v763 = vshrl.u32 %v762, 7
      %v764 = vsub.s32 0, %v763
      %v765 = vrot.slane %v761, %v764
      %v766 = vmul.f32 %v753, %v765
      %v767 = vmul.f32 %v754, %v765
      %v768 = vmul.f32 %v755, %v765
      %v769 = vmul.f32 %v756, %v765
      %v770 = vmul.f32 %v757, %v765
      %v771 = vmul.f32 %v758, %v765
      %v772 = vmul.f32 %v759, %v765
      %v773 = vmul.f32 %v760, %v765
      %v774 = vadd.f32 %v745, %v766
      %v775 = vadd.f32 %v746, %v767
      %v776 = vadd.f32 %v747, %v768
      %v777 = vadd.f32 %v748, %v769
      %v778 = vadd.f32 %v749, %v770
      %v779 = vadd.f32 %v750, %v771
      %v780 = vadd.f32 %v751, %v772
      %v781 = vadd.f32 %v752, %v773
      %v782 = vld [vmem:[%s5] sm:$0x1]
      %v784 = vlaneseq
      %v785 = vshrl.u32 %v784, 7
      %v786 = vsub.s32 0, %v785
      %v787 = vrot.slane %v782, %v786
      %v789 = vmul.f32 %v774, %v787
      %v790 = vmul.f32 %v775, %v787
      %v791 = vmul.f32 %v776, %v787
      %v792 = vmul.f32 %v777, %v787
      %v793 = vmul.f32 %v778, %v787
      %v794 = vmul.f32 %v779, %v787
      %v795 = vmul.f32 %v780, %v787
      %v796 = vmul.f32 %v781, %v787
      %v797 = vld [vmem:[%s6] sm:$0x1]
      %v799 = vlaneseq
      %v800 = vshrl.u32 %v799, 7
      %v801 = vsub.s32 0, %v800
      %v802 = vrot.slane %v797, %v801
      %v804 = vadd.f32 %v789, %v802
      %v805 = vadd.f32 %v790, %v802
      %v806 = vadd.f32 %v791, %v802
      %v807 = vadd.f32 %v792, %v802
      %v808 = vadd.f32 %v793, %v802
      %v809 = vadd.f32 %v794, %v802
      %v810 = vadd.f32 %v795, %v802
      %v811 = vadd.f32 %v796, %v802
      %812 = vst.msk [vmem:[%s636 + $0x2] sm:$0xff] %vm610, %v804
      %813 = vst.msk [vmem:[%s636 + $0x12] sm:$0xff] %vm610, %v805
      %814 = vst.msk [vmem:[%s636 + $0x22] sm:$0xff] %vm610, %v806
      %815 = vst.msk [vmem:[%s636 + $0x32] sm:$0xff] %vm610, %v807
      %816 = vst.msk [vmem:[%s636 + $0x42] sm:$0xff] %vm610, %v808
      %817 = vst.msk [vmem:[%s636 + $0x52] sm:$0xff] %vm610, %v809
      %818 = vst.msk [vmem:[%s636 + $0x62] sm:$0xff] %vm610, %v810
      %819 = vst.msk [vmem:[%s636 + $0x72] sm:$0xff] %vm610, %v811
      %v820 = vld [vmem:[#allocation2 + $0x2] sm:$0xff]
      %v821 = vld [vmem:[#allocation2 + $0x12] sm:$0xff]
      %v822 = vld [vmem:[#allocation2 + $0x22] sm:$0xff]
      %v823 = vld [vmem:[#allocation2 + $0x32] sm:$0xff]
      %v824 = vld [vmem:[#allocation2 + $0x42] sm:$0xff]
      %v825 = vld [vmem:[#allocation2 + $0x52] sm:$0xff]
      %v826 = vld [vmem:[#allocation2 + $0x62] sm:$0xff]
      %v827 = vld [vmem:[#allocation2 + $0x72] sm:$0xff]
      %v828 = vld [vmem:[%s7] sm:$0x1]
      %v829 = vlaneseq
      %v830 = vshrl.u32 %v829, 7
      %v831 = vsub.s32 0, %v830
      %v832 = vrot.slane %v828, %v831
      %v833 = vmul.f32 %v820, %v832
      %v834 = vmul.f32 %v821, %v832
      %v835 = vmul.f32 %v822, %v832
      %v836 = vmul.f32 %v823, %v832
      %v837 = vmul.f32 %v824, %v832
      %v838 = vmul.f32 %v825, %v832
      %v839 = vmul.f32 %v826, %v832
      %v840 = vmul.f32 %v827, %v832
      %s841 = scalar_lea.vmem [#allocation2], 16
      %v842 = vld [vmem:[%s841 + $0x2] sm:$0xff]
      %v843 = vld [vmem:[%s841 + $0x12] sm:$0xff]
      %v844 = vld [vmem:[%s841 + $0x22] sm:$0xff]
      %v845 = vld [vmem:[%s841 + $0x32] sm:$0xff]
      %v846 = vld [vmem:[%s841 + $0x42] sm:$0xff]
      %v847 = vld [vmem:[%s841 + $0x52] sm:$0xff]
      %v848 = vld [vmem:[%s841 + $0x62] sm:$0xff]
      %v849 = vld [vmem:[%s841 + $0x72] sm:$0xff]
      %v850 = vld [vmem:[%s7 + $0x1] sm:$0x1]
      %v851 = vlaneseq
      %v852 = vshrl.u32 %v851, 7
      %v853 = vsub.s32 0, %v852
      %v854 = vrot.slane %v850, %v853
      %v855 = vmul.f32 %v842, %v854
      %v856 = vmul.f32 %v843, %v854
      %v857 = vmul.f32 %v844, %v854
      %v858 = vmul.f32 %v845, %v854
      %v859 = vmul.f32 %v846, %v854
      %v860 = vmul.f32 %v847, %v854
      %v861 = vmul.f32 %v848, %v854
      %v862 = vmul.f32 %v849, %v854
      %v863 = vadd.f32 %v833, %v855
      %v864 = vadd.f32 %v834, %v856
      %v865 = vadd.f32 %v835, %v857
      %v866 = vadd.f32 %v836, %v858
      %v867 = vadd.f32 %v837, %v859
      %v868 = vadd.f32 %v838, %v860
      %v869 = vadd.f32 %v839, %v861
      %v870 = vadd.f32 %v840, %v862
      %v871 = vld [vmem:[%s636 + $0x2] sm:$0xff]
      %v872 = vld [vmem:[%s636 + $0x12] sm:$0xff]
      %v873 = vld [vmem:[%s636 + $0x22] sm:$0xff]
      %v874 = vld [vmem:[%s636 + $0x32] sm:$0xff]
      %v875 = vld [vmem:[%s636 + $0x42] sm:$0xff]
      %v876 = vld [vmem:[%s636 + $0x52] sm:$0xff]
      %v877 = vld [vmem:[%s636 + $0x62] sm:$0xff]
      %v878 = vld [vmem:[%s636 + $0x72] sm:$0xff]
      %v879 = vld [vmem:[%s7 + $0x2] sm:$0x1]
      %v880 = vlaneseq
      %v881 = vshrl.u32 %v880, 7
      %v882 = vsub.s32 0, %v881
      %v883 = vrot.slane %v879, %v882
      %v884 = vmul.f32 %v871, %v883
      %v885 = vmul.f32 %v872, %v883
      %v886 = vmul.f32 %v873, %v883
      %v887 = vmul.f32 %v874, %v883
      %v888 = vmul.f32 %v875, %v883
      %v889 = vmul.f32 %v876, %v883
      %v890 = vmul.f32 %v877, %v883
      %v891 = vmul.f32 %v878, %v883
      %v892 = vadd.f32 %v863, %v884
      %v893 = vadd.f32 %v864, %v885
      %v894 = vadd.f32 %v865, %v886
      %v895 = vadd.f32 %v866, %v887
      %v896 = vadd.f32 %v867, %v888
      %v897 = vadd.f32 %v868, %v889
      %v898 = vadd.f32 %v869, %v890
      %v899 = vadd.f32 %v870, %v891
      %s900 = scalar_lea.vmem [#allocation2], 48
      %v901 = vld [vmem:[%s900 + $0x2] sm:$0xff]
      %v902 = vld [vmem:[%s900 + $0x12] sm:$0xff]
      %v903 = vld [vmem:[%s900 + $0x22] sm:$0xff]
      %v904 = vld [vmem:[%s900 + $0x32] sm:$0xff]
      %v905 = vld [vmem:[%s900 + $0x42] sm:$0xff]
      %v906 = vld [vmem:[%s900 + $0x52] sm:$0xff]
      %v907 = vld [vmem:[%s900 + $0x62] sm:$0xff]
      %v908 = vld [vmem:[%s900 + $0x72] sm:$0xff]
      %v909 = vld [vmem:[%s7 + $0x3] sm:$0x1]
      %v910 = vlaneseq
      %v911 = vshrl.u32 %v910, 7
      %v912 = vsub.s32 0, %v911
      %v913 = vrot.slane %v909, %v912
      %v914 = vmul.f32 %v901, %v913
      %v915 = vmul.f32 %v902, %v913
      %v916 = vmul.f32 %v903, %v913
      %v917 = vmul.f32 %v904, %v913
      %v918 = vmul.f32 %v905, %v913
      %v919 = vmul.f32 %v906, %v913
      %v920 = vmul.f32 %v907, %v913
      %v921 = vmul.f32 %v908, %v913
      %v922 = vadd.f32 %v892, %v914
      %v923 = vadd.f32 %v893, %v915
      %v924 = vadd.f32 %v894, %v916
      %v925 = vadd.f32 %v895, %v917
      %v926 = vadd.f32 %v896, %v918
      %v927 = vadd.f32 %v897, %v919
      %v928 = vadd.f32 %v898, %v920
      %v929 = vadd.f32 %v899, %v921
      %s930 = scalar_lea.vmem [#allocation2], 64
      %v931 = vld [vmem:[%s930 + $0x2] sm:$0xff]
      %v932 = vld [vmem:[%s930 + $0x12] sm:$0xff]
      %v933 = vld [vmem:[%s930 + $0x22] sm:$0xff]
      %v934 = vld [vmem:[%s930 + $0x32] sm:$0xff]
      %v935 = vld [vmem:[%s930 + $0x42] sm:$0xff]
      %v936 = vld [vmem:[%s930 + $0x52] sm:$0xff]
      %v937 = vld [vmem:[%s930 + $0x62] sm:$0xff]
      %v938 = vld [vmem:[%s930 + $0x72] sm:$0xff]
      %v939 = vld [vmem:[%s7 + $0x4] sm:$0x1]
      %v940 = vlaneseq
      %v941 = vshrl.u32 %v940, 7
      %v942 = vsub.s32 0, %v941
      %v943 = vrot.slane %v939, %v942
      %v944 = vmul.f32 %v931, %v943
      %v945 = vmul.f32 %v932, %v943
      %v946 = vmul.f32 %v933, %v943
      %v947 = vmul.f32 %v934, %v943
      %v948 = vmul.f32 %v935, %v943
      %v949 = vmul.f32 %v936, %v943
      %v950 = vmul.f32 %v937, %v943
      %v951 = vmul.f32 %v938, %v943
      %v952 = vadd.f32 %v922, %v944
      %v953 = vadd.f32 %v923, %v945
      %v954 = vadd.f32 %v924, %v946
      %v955 = vadd.f32 %v925, %v947
      %v956 = vadd.f32 %v926, %v948
      %v957 = vadd.f32 %v927, %v949
      %v958 = vadd.f32 %v928, %v950
      %v959 = vadd.f32 %v929, %v951
      %v960 = vld [vmem:[%s8] sm:$0x1]
      %v962 = vlaneseq
      %v963 = vshrl.u32 %v962, 7
      %v964 = vsub.s32 0, %v963
      %v965 = vrot.slane %v960, %v964
      %v967 = vmul.f32 %v952, %v965
      %v968 = vmul.f32 %v953, %v965
      %v969 = vmul.f32 %v954, %v965
      %v970 = vmul.f32 %v955, %v965
      %v971 = vmul.f32 %v956, %v965
      %v972 = vmul.f32 %v957, %v965
      %v973 = vmul.f32 %v958, %v965
      %v974 = vmul.f32 %v959, %v965
      %v975 = vld [vmem:[%s9] sm:$0x1]
      %v977 = vlaneseq
      %v978 = vshrl.u32 %v977, 7
      %v979 = vsub.s32 0, %v978
      %v980 = vrot.slane %v975, %v979
      %v982 = vadd.f32 %v967, %v980
      %v983 = vadd.f32 %v968, %v980
      %v984 = vadd.f32 %v969, %v980
      %v985 = vadd.f32 %v970, %v980
      %v986 = vadd.f32 %v971, %v980
      %v987 = vadd.f32 %v972, %v980
      %v988 = vadd.f32 %v973, %v980
      %v989 = vadd.f32 %v974, %v980
      %998 = vrot.lane.b32.xlu0 %v982, 8
      %v999 = vpop.permute.xlu0 %998
      %1000 = vrot.lane.b32.xlu0 %v983, 8
      %v1001 = vpop.permute.xlu0 %1000
      %1002 = vrot.lane.b32.xlu0 %v984, 8
      %v1003 = vpop.permute.xlu0 %1002
      %1004 = vrot.lane.b32.xlu0 %v985, 8
      %v1005 = vpop.permute.xlu0 %1004
      %1006 = vrot.lane.b32.xlu0 %v986, 8
      %v1007 = vpop.permute.xlu0 %1006
      %1008 = vrot.lane.b32.xlu0 %v987, 8
      %v1009 = vpop.permute.xlu0 %1008
      %1010 = vrot.lane.b32.xlu0 %v988, 8
      %v1011 = vpop.permute.xlu0 %1010
      %1012 = vrot.lane.b32.xlu0 %v989, 8
      %v1013 = vpop.permute.xlu0 %1012
      %v1022 = vsel %vm610, %v982, %v999
      %v1023 = vsel %vm610, %v983, %v1001
      %v1024 = vsel %vm610, %v984, %v1003
      %v1025 = vsel %vm610, %v985, %v1005
      %v1026 = vsel %vm610, %v986, %v1007
      %v1027 = vsel %vm610, %v987, %v1009
      %v1028 = vsel %vm610, %v988, %v1011
      %v1029 = vsel %vm610, %v989, %v1013
      %vm1030 = vcmask 130048
      %1031 = vst.msk [vmem:[%s359] sm:$0xff] %vm1030, %v1022
      %1032 = vst.msk [vmem:[%s359 + $0x8] sm:$0xff] %vm1030, %v1023
      %1033 = vst.msk [vmem:[%s359 + $0x10] sm:$0xff] %vm1030, %v1024
      %1034 = vst.msk [vmem:[%s359 + $0x18] sm:$0xff] %vm1030, %v1025
      %1035 = vst.msk [vmem:[%s359 + $0x20] sm:$0xff] %vm1030, %v1026
      %1036 = vst.msk [vmem:[%s359 + $0x28] sm:$0xff] %vm1030, %v1027
      %1037 = vst.msk [vmem:[%s359 + $0x30] sm:$0xff] %vm1030, %v1028
      %1038 = vst.msk [vmem:[%s359 + $0x38] sm:$0xff] %vm1030, %v1029
      %p1039 = scmp.lt.s32.totalorder %s21, 1
      %s1040 = scalar_select %p1039, %s21, 1
      %s1041 = smul.addr %s1040, 8
      %s1042 = smul.addr %s1041, 8
      %s1043 = scalar_lea.vmem %s10, %s1042
      // Predicated region
      $region61: #{_lambda_.2} parent=59 // pred_check
        %p1044 = pneg %p254
      $region62: #{_lambda_.2} parent=59 // pred_check_branch
        %1046 = sbr.rel (%p1044) target = $region64
      $region63: #{_lambda_.2} parent=59 // pred_region
        _
      $region64: #{_lambda_.2} parent=59 // pred_fallthru
        _
    $region60: #{_lambda_.2} parent=5 // pred_fallthru
      _
    %p1047 = scmp.le.s32.totalorder 2, %s16
    // Predicated region
    $region65: #{_lambda_.2} parent=5 // pred_check
      %p1048 = pneg %p1047
    $region66: #{_lambda_.2} parent=5 // pred_check_branch
      %1050 = sbr.rel (%p1048) target = $region68
    $region67: #{_lambda_.2} parent=5 // pred_region
      %s1051 = ssub.s32 %s16, 2
      // Predicated region
      $region69: #{_lambda_.2} parent=67 // pred_check
        %p1052 = pneg %p260
      $region70: #{_lambda_.2} parent=67 // pred_check_branch
        %1054 = sbr.rel (%p1052) target = $region72
      $region71: #{_lambda_.2} parent=67 // pred_region
        %p1055 = scmp.lt.s32.totalorder %s22, 1
        %s1056 = scalar_select %p1055, %s22, 1
        %s1057 = smul.addr %s1056, 8
        %s1058 = smul.addr %s1057, 8
        %s1059 = scalar_lea.vmem %s10, %s1058
      $region72: #{_lambda_.2} parent=67 // pred_fallthru
        _
    $region68: #{_lambda_.2} parent=5 // pred_fallthru
      _
  $region6: #{_lambda_.2} parent=0 // loop_footer
    %s20 = sadd.s32 1, %s16
  $region7: #{_lambda_.2} parent=0 // loop_footer_branch
    %15 = sbr.rel target = $region3
  $region8: #{_lambda_.2} parent=0 // loop_exit
    _

// kernel: _lambda_.3
$region0: #{_lambda_.3}
  #allocation0 [shape = 'u32[]', space=smem, size = 0x4, offset = 0x4, fixed_abs, tag = 'smem constant byte address 0x4 - core index']
  #allocation1 [shape = 'u32[144,128]{1,0:T(1,128)}', space=vmem, size = 0x12000, scoped, tag = 'internal scratch']
  #allocation2 [shape = 'f32[10,18,4]{2,1,0:T(8,128)}', space=vmem, size = 0x1e000, scoped, tag = 'scratch operand']
  %s0 = inlined_call_operand.vmem [shape: f32[2,16,16,4], index: 0, kind: input, shape index: {}, may-alias: {0,1,2}]
  %s1 = inlined_call_operand.vmem [shape: f32[2,16,16,4], index: 1, kind: input, shape index: {}, may-alias: {0,1,2}]
  %s2 = inlined_call_operand.vmem [shape: f32[2,16,16,4], index: 2, kind: input, shape index: {}, may-alias: {0,1,2}]
  %s3 = inlined_call_operand.vmem [shape: f32[2,8,16,8], index: 3, kind: input, shape index: {}]
  %s4 = inlined_call_operand.vmem [shape: f32[4,4], index: 4, kind: input, shape index: {}]
  %s5 = inlined_call_operand.vmem [shape: f32[1,1,4], index: 5, kind: input, shape index: {}]
  %s6 = inlined_call_operand.vmem [shape: f32[1,1,4], index: 6, kind: input, shape index: {}]
  %s7 = inlined_call_operand.vmem [shape: f32[9,4], index: 7, kind: input, shape index: {}]
  %s8 = inlined_call_operand.vmem [shape: f32[1,1,4], index: 8, kind: input, shape index: {}]
  %s9 = inlined_call_operand.vmem [shape: f32[1,1,4], index: 9, kind: input, shape index: {}]
  %s10 = inlined_call_operand.vmem [shape: f32[2,16,16,8], index: 10, kind: output, shape index: {}]
  %s11 = sld [smem:[#allocation0]]
  $region73: #{_lambda_.3} parent=0
    _
  %s13 = ssub.s32 1, %s11
  %s14 = scalar_select 0, %s13, %s11
  loop: start=0, step=1, limit=6
  $region2: #{_lambda_.3} parent=0 // loop_pre_header
    _
  $region3: #{_lambda_.3} parent=0 // loop_header
    %s16 = sphi 0, %s20
    %p17 = scmp.ge.s32.totalorder %s16, 6
    %s23 = sphi 0, %s35
    %s24 = sphi 0, %s31
    %s25 = sphi 0, %s23
    %s26 = sphi 0, %s24
    %s27 = sphi 0, %s25
    %s28 = sphi 0, %s26
    %s40 = sphi 0, %s42
    %s43 = sphi 0, %s40
    %s44 = sphi 0, %s43
    %s60 = sphi 0, %s44
    %s76 = sphi 0, %s78
    %s79 = sphi 0, %s76
    %s80 = sphi 0, %s79
    %s96 = sphi 0, %s80
    %s112 = sphi 0, %s114
    %s115 = sphi 0, %s112
    %s116 = sphi 0, %s115
    %s132 = sphi 0, %s116
    %s140 = sphi 0, %s142
    %s143 = sphi 0, %s140
    %s144 = sphi 0, %s143
    %s160 = sphi 0, %s144
    %s164 = sphi 0, %s164
    %s166 = sphi 0, %s164
    %s167 = sphi 0, %s166
    %s181 = sphi 0, %s167
    %s185 = sphi 0, %s185
    %s187 = sphi 0, %s185
    %s188 = sphi 0, %s187
    %s202 = sphi 0, %s188
    %s206 = sphi 0, %s206
    %s208 = sphi 0, %s206
    %s209 = sphi 0, %s208
    %s223 = sphi 0, %s209
    %s227 = sphi 0, %s227
    %s229 = sphi 0, %s227
    %s230 = sphi 0, %s229
    %s244 = sphi 0, %s230
    %s248 = sphi 0, %s248
    %s250 = sphi 0, %s248
    %s251 = sphi 0, %s250
    %s265 = sphi 0, %s251
    %s269 = sphi 0, %s269
    %s271 = sphi 0, %s269
    %s272 = sphi 0, %s271
    %s286 = sphi 0, %s272
    %s294 = sphi 0, %s296
    %s297 = sphi 0, %s294
    %s298 = sphi 0, %s297
    %s314 = sphi 0, %s298
  $region4: #{_lambda_.3} parent=0 // loop_header_branch
    %19 = sbr.rel (%p17) target = $region8
  $region5: #{_lambda_.3} parent=0 // loop_body
    %s21 = ssub.s32 %s16, 1
    %s22 = ssub.s32 %s16, 2
    %s29 = sadd.s32 1, %s24
    %p30 = scmp.ge.s32.totalorder %s29, 2
    %s31 = scalar_select %p30, 0, %s29
    %s32 = sadd.s32 1, %s23
    %s33 = scalar_select %p30, %s32, %s23
    %p34 = scmp.ge.s32.totalorder %s33, 2
    %s35 = scalar_select %p34, 0, %s33
    %s36 = ssub.s32 %s23, %s35
    %s37 = ssub.s32 %s24, %s31
    %s38 = sor.u32 %s36, %s37
    %p39 = scmp.eq.s32.totalorder %s38, 0
    %s41 = sadd.s32 %s40, 1
    %s42 = scalar_select %p39, %s40, %s41
    %p45 = pneg %p39
    %p46 = scmp.eq.s32.totalorder %s16, 3
    %p47 = por %p45, %p46
    %p48 = scmp.ne.s32.totalorder %s40, %s43
    %p49 = scmp.eq.s32.totalorder %s16, 0
    %p50 = por %p48, %p49
    %p51 = scmp.ne.s32.totalorder %s40, %s43
    %p52 = scmp.eq.s32.totalorder %s21, 3
    %p53 = por %p51, %p52
    %p54 = scmp.ne.s32.totalorder %s43, %s44
    %p55 = scmp.eq.s32.totalorder %s21, 0
    %p56 = por %p54, %p55
    %p57 = scmp.ne.s32.totalorder %s43, %s44
    %p58 = scmp.eq.s32.totalorder %s22, 3
    %p59 = por %p57, %p58
    %p61 = scmp.ne.s32.totalorder %s44, %s60
    %p62 = scmp.eq.s32.totalorder %s22, 0
    %p63 = por %p61, %p62
    %s64 = smul.u32 %s24, 8
    %s65 = ssub.s32 %s64, 1
    %p66 = scmp.gt.s32.totalorder %s65, 0
    %s67 = scalar_select %p66, %s65, 0
    %s68 = smul.u32 %s31, 8
    %s69 = ssub.s32 %s68, 1
    %p70 = scmp.gt.s32.totalorder %s69, 0
    %s71 = scalar_select %p70, %s69, 0
    %s72 = ssub.s32 %s23, %s35
    %s73 = ssub.s32 %s67, %s71
    %s74 = sor.u32 %s72, %s73
    %p75 = scmp.eq.s32.totalorder %s74, 0
    %s77 = sadd.s32 %s76, 1
    %s78 = scalar_select %p75, %s76, %s77
    %p81 = pneg %p75
    %p82 = scmp.eq.s32.totalorder %s16, 3
    %p83 = por %p81, %p82
    %p84 = scmp.ne.s32.totalorder %s76, %s79
    %p85 = scmp.eq.s32.totalorder %s16, 0
    %p86 = por %p84, %p85
    %p87 = scmp.ne.s32.totalorder %s76, %s79
    %p88 = scmp.eq.s32.totalorder %s21, 3
    %p89 = por %p87, %p88
    %p90 = scmp.ne.s32.totalorder %s79, %s80
    %p91 = scmp.eq.s32.totalorder %s21, 0
    %p92 = por %p90, %p91
    %p93 = scmp.ne.s32.totalorder %s79, %s80
    %p94 = scmp.eq.s32.totalorder %s22, 3
    %p95 = por %p93, %p94
    %p97 = scmp.ne.s32.totalorder %s80, %s96
    %p98 = scmp.eq.s32.totalorder %s22, 0
    %p99 = por %p97, %p98
    %s100 = sadd.s32 %s24, 1
    %s101 = smul.u32 %s100, 8
    %p102 = scmp.lt.s32.totalorder %s101, 15
    %s103 = scalar_select %p102, %s101, 15
    %s104 = sadd.s32 %s31, 1
    %s105 = smul.u32 %s104, 8
    %p106 = scmp.lt.s32.totalorder %s105, 15
    %s107 = scalar_select %p106, %s105, 15
    %s108 = ssub.s32 %s23, %s35
    %s109 = ssub.s32 %s103, %s107
    %s110 = sor.u32 %s108, %s109
    %p111 = scmp.eq.s32.totalorder %s110, 0
    %s113 = sadd.s32 %s112, 1
    %s114 = scalar_select %p111, %s112, %s113
    %p117 = pneg %p111
    %p118 = scmp.eq.s32.totalorder %s16, 3
    %p119 = por %p117, %p118
    %p120 = scmp.ne.s32.totalorder %s112, %s115
    %p121 = scmp.eq.s32.totalorder %s16, 0
    %p122 = por %p120, %p121
    %p123 = scmp.ne.s32.totalorder %s112, %s115
    %p124 = scmp.eq.s32.totalorder %s21, 3
    %p125 = por %p123, %p124
    %p126 = scmp.ne.s32.totalorder %s115, %s116
    %p127 = scmp.eq.s32.totalorder %s21, 0
    %p128 = por %p126, %p127
    %p129 = scmp.ne.s32.totalorder %s115, %s116
    %p130 = scmp.eq.s32.totalorder %s22, 3
    %p131 = por %p129, %p130
    %p133 = scmp.ne.s32.totalorder %s116, %s132
    %p134 = scmp.eq.s32.totalorder %s22, 0
    %p135 = por %p133, %p134
    %s136 = ssub.s32 %s23, %s35
    %s137 = ssub.s32 %s24, %s31
    %s138 = sor.u32 %s136, %s137
    %p139 = scmp.eq.s32.totalorder %s138, 0
    %s141 = sadd.s32 %s140, 1
    %s142 = scalar_select %p139, %s140, %s141
    %p145 = pneg %p139
    %p146 = scmp.eq.s32.totalorder %s16, 3
    %p147 = por %p145, %p146
    %p148 = scmp.ne.s32.totalorder %s140, %s143
    %p149 = scmp.eq.s32.totalorder %s16, 0
    %p150 = por %p148, %p149
    %p151 = scmp.ne.s32.totalorder %s140, %s143
    %p152 = scmp.eq.s32.totalorder %s21, 3
    %p153 = por %p151, %p152
    %p154 = scmp.ne.s32.totalorder %s143, %s144
    %p155 = scmp.eq.s32.totalorder %s21, 0
    %p156 = por %p154, %p155
    %p157 = scmp.ne.s32.totalorder %s143, %s144
    %p158 = scmp.eq.s32.totalorder %s22, 3
    %p159 = por %p157, %p158
    %p161 = scmp.ne.s32.totalorder %s144, %s160
    %p162 = scmp.eq.s32.totalorder %s22, 0
    %p163 = por %p161, %p162
    %s165 = sadd.s32 %s164, 1
    %p168 = scmp.eq.s32.totalorder %s16, 3
    %p169 = scmp.ne.s32.totalorder %s164, %s166
    %p170 = scmp.eq.s32.totalorder %s16, 0
    %p171 = por %p169, %p170
    %p172 = scmp.ne.s32.totalorder %s164, %s166
    %p173 = scmp.eq.s32.totalorder %s21, 3
    %p174 = por %p172, %p173
    %p175 = scmp.ne.s32.totalorder %s166, %s167
    %p176 = scmp.eq.s32.totalorder %s21, 0
    %p177 = por %p175, %p176
    %p178 = scmp.ne.s32.totalorder %s166, %s167
    %p179 = scmp.eq.s32.totalorder %s22, 3
    %p180 = por %p178, %p179
    %p182 = scmp.ne.s32.totalorder %s167, %s181
    %p183 = scmp.eq.s32.totalorder %s22, 0
    %p184 = por %p182, %p183
    %s186 = sadd.s32 %s185, 1
    %p189 = scmp.eq.s32.totalorder %s16, 3
    %p190 = scmp.ne.s32.totalorder %s185, %s187
    %p191 = scmp.eq.s32.totalorder %s16, 0
    %p192 = por %p190, %p191
    %p193 = scmp.ne.s32.totalorder %s185, %s187
    %p194 = scmp.eq.s32.totalorder %s21, 3
    %p195 = por %p193, %p194
    %p196 = scmp.ne.s32.totalorder %s187, %s188
    %p197 = scmp.eq.s32.totalorder %s21, 0
    %p198 = por %p196, %p197
    %p199 = scmp.ne.s32.totalorder %s187, %s188
    %p200 = scmp.eq.s32.totalorder %s22, 3
    %p201 = por %p199, %p200
    %p203 = scmp.ne.s32.totalorder %s188, %s202
    %p204 = scmp.eq.s32.totalorder %s22, 0
    %p205 = por %p203, %p204
    %s207 = sadd.s32 %s206, 1
    %p210 = scmp.eq.s32.totalorder %s16, 3
    %p211 = scmp.ne.s32.totalorder %s206, %s208
    %p212 = scmp.eq.s32.totalorder %s16, 0
    %p213 = por %p211, %p212
    %p214 = scmp.ne.s32.totalorder %s206, %s208
    %p215 = scmp.eq.s32.totalorder %s21, 3
    %p216 = por %p214, %p215
    %p217 = scmp.ne.s32.totalorder %s208, %s209
    %p218 = scmp.eq.s32.totalorder %s21, 0
    %p219 = por %p217, %p218
    %p220 = scmp.ne.s32.totalorder %s208, %s209
    %p221 = scmp.eq.s32.totalorder %s22, 3
    %p222 = por %p220, %p221
    %p224 = scmp.ne.s32.totalorder %s209, %s223
    %p225 = scmp.eq.s32.totalorder %s22, 0
    %p226 = por %p224, %p225
    %s228 = sadd.s32 %s227, 1
    %p231 = scmp.eq.s32.totalorder %s16, 3
    %p232 = scmp.ne.s32.totalorder %s227, %s229
    %p233 = scmp.eq.s32.totalorder %s16, 0
    %p234 = por %p232, %p233
    %p235 = scmp.ne.s32.totalorder %s227, %s229
    %p236 = scmp.eq.s32.totalorder %s21, 3
    %p237 = por %p235, %p236
    %p238 = scmp.ne.s32.totalorder %s229, %s230
    %p239 = scmp.eq.s32.totalorder %s21, 0
    %p240 = por %p238, %p239
    %p241 = scmp.ne.s32.totalorder %s229, %s230
    %p242 = scmp.eq.s32.totalorder %s22, 3
    %p243 = por %p241, %p242
    %p245 = scmp.ne.s32.totalorder %s230, %s244
    %p246 = scmp.eq.s32.totalorder %s22, 0
    %p247 = por %p245, %p246
    %s249 = sadd.s32 %s248, 1
    %p252 = scmp.eq.s32.totalorder %s16, 3
    %p253 = scmp.ne.s32.totalorder %s248, %s250
    %p254 = scmp.eq.s32.totalorder %s16, 0
    %p255 = por %p253, %p254
    %p256 = scmp.ne.s32.totalorder %s248, %s250
    %p257 = scmp.eq.s32.totalorder %s21, 3
    %p258 = por %p256, %p257
    %p259 = scmp.ne.s32.totalorder %s250, %s251
    %p260 = scmp.eq.s32.totalorder %s21, 0
    %p261 = por %p259, %p260
    %p262 = scmp.ne.s32.totalorder %s250, %s251
    %p263 = scmp.eq.s32.totalorder %s22, 3
    %p264 = por %p262, %p263
    %p266 = scmp.ne.s32.totalorder %s251, %s265
    %p267 = scmp.eq.s32.totalorder %s22, 0
    %p268 = por %p266, %p267
    %s270 = sadd.s32 %s269, 1
    %p273 = scmp.eq.s32.totalorder %s16, 3
    %p274 = scmp.ne.s32.totalorder %s269, %s271
    %p275 = scmp.eq.s32.totalorder %s16, 0
    %p276 = por %p274, %p275
    %p277 = scmp.ne.s32.totalorder %s269, %s271
    %p278 = scmp.eq.s32.totalorder %s21, 3
    %p279 = por %p277, %p278
    %p280 = scmp.ne.s32.totalorder %s271, %s272
    %p281 = scmp.eq.s32.totalorder %s21, 0
    %p282 = por %p280, %p281
    %p283 = scmp.ne.s32.totalorder %s271, %s272
    %p284 = scmp.eq.s32.totalorder %s22, 3
    %p285 = por %p283, %p284
    %p287 = scmp.ne.s32.totalorder %s272, %s286
    %p288 = scmp.eq.s32.totalorder %s22, 0
    %p289 = por %p287, %p288
    %s290 = ssub.s32 %s23, %s35
    %s291 = ssub.s32 %s24, %s31
    %s292 = sor.u32 %s290, %s291
    %p293 = scmp.eq.s32.totalorder %s292, 0
    %s295 = sadd.s32 %s294, 1
    %s296 = scalar_select %p293, %s294, %s295
    %p299 = pneg %p293
    %p300 = scmp.eq.s32.totalorder %s16, 3
    %p301 = por %p299, %p300
    %p302 = scmp.ne.s32.totalorder %s294, %s297
    %p303 = scmp.eq.s32.totalorder %s16, 0
    %p304 = por %p302, %p303
    %p305 = scmp.ne.s32.totalorder %s294, %s297
    %p306 = scmp.eq.s32.totalorder %s21, 3
    %p307 = por %p305, %p306
    %p308 = scmp.ne.s32.totalorder %s297, %s298
    %p309 = scmp.eq.s32.totalorder %s21, 0
    %p310 = por %p308, %p309
    %p311 = scmp.ne.s32.totalorder %s297, %s298
    %p312 = scmp.eq.s32.totalorder %s22, 3
    %p313 = por %p311, %p312
    %p315 = scmp.ne.s32.totalorder %s298, %s314
    %p316 = scmp.eq.s32.totalorder %s22, 0
    %p317 = por %p315, %p316
    %p318 = scmp.le.s32.totalorder 1, %s16
    %p319 = scmp.lt.s32.totalorder %s16, 5
    %p320 = pnand %p318, %p319
    %p321 = pneg %p320
    // Predicated region
    $region9: #{_lambda_.3} parent=5 // pred_check
      _
    $region10: #{_lambda_.3} parent=5 // pred_check_branch
      %323 = sbr.rel (%p320) target = $region12
    $region11: #{_lambda_.3} parent=5 // pred_region
      %s324 = ssub.s32 %s16, 1
      // Predicated region
      $region13: #{_lambda_.3} parent=11 // pred_check
        %p325 = pneg %p177
      $region14: #{_lambda_.3} parent=11 // pred_check_branch
        %327 = sbr.rel (%p325) target = $region16
      $region15: #{_lambda_.3} parent=11 // pred_region
        _
      $region16: #{_lambda_.3} parent=11 // pred_fallthru
        _
      // Predicated region
      $region17: #{_lambda_.3} parent=11 // pred_check
        %p328 = pneg %p198
      $region18: #{_lambda_.3} parent=11 // pred_check_branch
        %330 = sbr.rel (%p328) target = $region20
      $region19: #{_lambda_.3} parent=11 // pred_region
        _
      $region20: #{_lambda_.3} parent=11 // pred_fallthru
        _
      // Predicated region
      $region21: #{_lambda_.3} parent=11 // pred_check
        %p331 = pneg %p219
      $region22: #{_lambda_.3} parent=11 // pred_check_branch
        %333 = sbr.rel (%p331) target = $region24
      $region23: #{_lambda_.3} parent=11 // pred_region
        _
      $region24: #{_lambda_.3} parent=11 // pred_fallthru
        _
      // Predicated region
      $region25: #{_lambda_.3} parent=11 // pred_check
        %p334 = pneg %p240
      $region26: #{_lambda_.3} parent=11 // pred_check_branch
        %336 = sbr.rel (%p334) target = $region28
      $region27: #{_lambda_.3} parent=11 // pred_region
        _
      $region28: #{_lambda_.3} parent=11 // pred_fallthru
        _
      // Predicated region
      $region29: #{_lambda_.3} parent=11 // pred_check
        %p337 = pneg %p261
      $region30: #{_lambda_.3} parent=11 // pred_check_branch
        %339 = sbr.rel (%p337) target = $region32
      $region31: #{_lambda_.3} parent=11 // pred_region
        _
      $region32: #{_lambda_.3} parent=11 // pred_fallthru
        _
      // Predicated region
      $region33: #{_lambda_.3} parent=11 // pred_check
        %p340 = pneg %p282
      $region34: #{_lambda_.3} parent=11 // pred_check_branch
        %342 = sbr.rel (%p340) target = $region36
      $region35: #{_lambda_.3} parent=11 // pred_region
        _
      $region36: #{_lambda_.3} parent=11 // pred_fallthru
        _
    $region12: #{_lambda_.3} parent=5 // pred_fallthru
      _
    %p343 = scmp.lt.s32.totalorder %s16, 4
    // Predicated region
    $region37: #{_lambda_.3} parent=5 // pred_check
      %p344 = pneg %p343
    $region38: #{_lambda_.3} parent=5 // pred_check_branch
      %346 = sbr.rel (%p344) target = $region40
    $region39: #{_lambda_.3} parent=5 // pred_region
      // Predicated region
      $region41: #{_lambda_.3} parent=39 // pred_check
        %p347 = pneg %p50
      $region42: #{_lambda_.3} parent=39 // pred_check_branch
        %349 = sbr.rel (%p347) target = $region44
      $region43: #{_lambda_.3} parent=39 // pred_region
        %s350 = smul.u32 8, %s24
        %p351 = scmp.lt.s32.totalorder %s23, 1
        %s352 = scalar_select %p351, %s23, 1
        %p353 = scmp.lt.s32.totalorder %s350, 15
        %s354 = scalar_select %p353, %s350, 15
        %s355 = smul.addr %s354, 2
        %s356 = smul.addr %s352, 32
        %s357 = sadd.s32 %s355, %s356
        %s358 = smul.addr %s357, 8
        %s359 = scalar_lea.vmem %s0, %s358
        %s360 = smul.u32 8, %s24
      $region44: #{_lambda_.3} parent=39 // pred_fallthru
        _
      // Predicated region
      $region45: #{_lambda_.3} parent=39 // pred_check
        %p361 = pneg %p86
      $region46: #{_lambda_.3} parent=39 // pred_check_branch
        %363 = sbr.rel (%p361) target = $region48
      $region47: #{_lambda_.3} parent=39 // pred_region
        %s364 = smul.u32 %s24, 8
        %s365 = ssub.s32 %s364, 1
        %p366 = scmp.gt.s32.totalorder %s365, 0
        %s367 = scalar_select %p366, %s365, 0
        %p368 = scmp.lt.s32.totalorder %s23, 1
        %s369 = scalar_select %p368, %s23, 1
        %p370 = scmp.lt.s32.totalorder %s367, 15
        %s371 = scalar_select %p370, %s367, 15
        %s372 = smul.addr %s371, 2
        %s373 = smul.addr %s369, 32
        %s374 = sadd.s32 %s372, %s373
        %s375 = smul.addr %s374, 8
        %s376 = scalar_lea.vmem %s1, %s375
        %s377 = smul.u32 %s24, 8
        %s378 = ssub.s32 %s377, 1
        %p379 = scmp.gt.s32.totalorder %s378, 0
        %s380 = scalar_select %p379, %s378, 0
      $region48: #{_lambda_.3} parent=39 // pred_fallthru
        _
      // Predicated region
      $region49: #{_lambda_.3} parent=39 // pred_check
        %p381 = pneg %p122
      $region50: #{_lambda_.3} parent=39 // pred_check_branch
        %383 = sbr.rel (%p381) target = $region52
      $region51: #{_lambda_.3} parent=39 // pred_region
        %s384 = sadd.s32 %s24, 1
        %s385 = smul.u32 %s384, 8
        %p386 = scmp.lt.s32.totalorder %s385, 15
        %s387 = scalar_select %p386, %s385, 15
        %p388 = scmp.lt.s32.totalorder %s23, 1
        %s389 = scalar_select %p388, %s23, 1
        %p390 = scmp.lt.s32.totalorder %s387, 15
        %s391 = scalar_select %p390, %s387, 15
        %s392 = smul.addr %s391, 2
        %s393 = smul.addr %s389, 32
        %s394 = sadd.s32 %s392, %s393
        %s395 = smul.addr %s394, 8
        %s396 = scalar_lea.vmem %s2, %s395
        %s397 = sadd.s32 %s24, 1
        %s398 = smul.u32 %s397, 8
        %p399 = scmp.lt.s32.totalorder %s398, 15
        %s400 = scalar_select %p399, %s398, 15
      $region52: #{_lambda_.3} parent=39 // pred_fallthru
        _
      // Predicated region
      $region53: #{_lambda_.3} parent=39 // pred_check
        %p401 = pneg %p150
      $region54: #{_lambda_.3} parent=39 // pred_check_branch
        %403 = sbr.rel (%p401) target = $region56
      $region55: #{_lambda_.3} parent=39 // pred_region
        %s404 = smul.u32 4, %s24
        %p405 = scmp.lt.s32.totalorder %s23, 1
        %s406 = scalar_select %p405, %s23, 1
        %p407 = scmp.lt.s32.totalorder %s404, 7
        %s408 = scalar_select %p407, %s404, 7
        %s409 = smul.addr %s408, 2
        %s410 = smul.addr %s406, 16
        %s411 = sadd.s32 %s409, %s410
        %s412 = smul.addr %s411, 8
        %s413 = scalar_lea.vmem %s3, %s412
        %s414 = smul.u32 4, %s24
      $region56: #{_lambda_.3} parent=39 // pred_fallthru
        _
    $region40: #{_lambda_.3} parent=5 // pred_fallthru
      _
    %p415 = scmp.le.s32.totalorder 1, %s16
    %p416 = scmp.lt.s32.totalorder %s16, 5
    %p417 = pnand %p415, %p416
    %p418 = pneg %p417
    // Predicated region
    $region57: #{_lambda_.3} parent=5 // pred_check
      _
    $region58: #{_lambda_.3} parent=5 // pred_check_branch
      %420 = sbr.rel (%p417) target = $region60
    $region59: #{_lambda_.3} parent=5 // pred_region
      %s421 = ssub.s32 %s16, 1
      %s422 = smul.u32 8, %s26
      %p423 = scmp.lt.s32.totalorder %s25, 1
      %s424 = scalar_select %p423, %s25, 1
      %p425 = scmp.lt.s32.totalorder %s422, 15
      %s426 = scalar_select %p425, %s422, 15
      %s427 = smul.addr %s426, 2
      %s428 = smul.addr %s424, 32
      %s429 = sadd.s32 %s427, %s428
      %s430 = smul.addr %s429, 8
      %s431 = scalar_lea.vmem %s0, %s430
      %p432 = pneg %p56
      %p433 = pneg %p53
      %s434 = smul.u32 %s26, 8
      %s435 = ssub.s32 %s434, 1
      %p436 = scmp.gt.s32.totalorder %s435, 0
      %s437 = scalar_select %p436, %s435, 0
      %p438 = scmp.lt.s32.totalorder %s25, 1
      %s439 = scalar_select %p438, %s25, 1
      %p440 = scmp.lt.s32.totalorder %s437, 15
      %s441 = scalar_select %p440, %s437, 15
      %s442 = smul.addr %s441, 2
      %s443 = smul.addr %s439, 32
      %s444 = sadd.s32 %s442, %s443
      %s445 = smul.addr %s444, 8
      %s446 = scalar_lea.vmem %s1, %s445
      %p447 = pneg %p92
      %p448 = pneg %p89
      %s449 = sadd.s32 %s26, 1
      %s450 = smul.u32 %s449, 8
      %p451 = scmp.lt.s32.totalorder %s450, 15
      %s452 = scalar_select %p451, %s450, 15
      %p453 = scmp.lt.s32.totalorder %s25, 1
      %s454 = scalar_select %p453, %s25, 1
      %p455 = scmp.lt.s32.totalorder %s452, 15
      %s456 = scalar_select %p455, %s452, 15
      %s457 = smul.addr %s456, 2
      %s458 = smul.addr %s454, 32
      %s459 = sadd.s32 %s457, %s458
      %s460 = smul.addr %s459, 8
      %s461 = scalar_lea.vmem %s2, %s460
      %p462 = pneg %p128
      %p463 = pneg %p125
      %s464 = smul.u32 4, %s26
      %p465 = scmp.lt.s32.totalorder %s25, 1
      %s466 = scalar_select %p465, %s25, 1
      %p467 = scmp.lt.s32.totalorder %s464, 7
      %s468 = scalar_select %p467, %s464, 7
      %s469 = smul.addr %s468, 2
      %s470 = smul.addr %s466, 16
      %s471 = sadd.s32 %s469, %s470
      %s472 = smul.addr %s471, 8
      %s473 = scalar_lea.vmem %s3, %s472
      %p474 = pneg %p156
      %p475 = pneg %p153
      %p476 = pneg %p177
      %p477 = pneg %p174
      %p478 = pneg %p198
      %p479 = pneg %p195
      %p480 = pneg %p219
      %p481 = pneg %p216
      %p482 = pneg %p240
      %p483 = pneg %p237
      %p484 = pneg %p261
      %p485 = pneg %p258
      %p486 = pneg %p282
      %p487 = pneg %p279
      %p488 = pneg %p310
      %p489 = pneg %p307
      %s490 = smul.u32 8, %s26
      %p491 = scmp.lt.s32.totalorder %s25, 1
      %s492 = scalar_select %p491, %s25, 1
      %p493 = scmp.lt.s32.totalorder %s490, 15
      %s494 = scalar_select %p493, %s490, 15
      %s495 = smul.addr %s494, 2
      %s496 = smul.addr %s492, 32
      %s497 = sadd.s32 %s495, %s496
      %s498 = smul.addr %s497, 8
      %s499 = scalar_lea.vmem %s10, %s498
      %s500 = smul.u32 8, %s26
      %p501 = scmp.lt.s32.totalorder %s25, 1
      %s502 = scalar_select %p501, %s25, 1
      %p503 = scmp.lt.s32.totalorder %s500, 15
      %s504 = scalar_select %p503, %s500, 15
      %s505 = smul.addr %s504, 2
      %s506 = smul.addr %s502, 32
      %s507 = sadd.s32 %s505, %s506
      %s508 = smul.addr %s507, 8
      %s509 = scalar_lea.vmem %s0, %s508
      %s510 = smul.u32 8, %s26
      %s511 = smul.u32 %s26, 8
      %s512 = ssub.s32 %s511, 1
      %p513 = scmp.gt.s32.totalorder %s512, 0
      %s514 = scalar_select %p513, %s512, 0
      %p515 = scmp.lt.s32.totalorder %s25, 1
      %s516 = scalar_select %p515, %s25, 1
      %p517 = scmp.lt.s32.totalorder %s514, 15
      %s518 = scalar_select %p517, %s514, 15
      %s519 = smul.addr %s518, 2
      %s520 = smul.addr %s516, 32
      %s521 = sadd.s32 %s519, %s520
      %s522 = smul.addr %s521, 8
      %s523 = scalar_lea.vmem %s1, %s522
      %s524 = smul.u32 %s26, 8
      %s525 = ssub.s32 %s524, 1
      %p526 = scmp.gt.s32.totalorder %s525, 0
      %s527 = scalar_select %p526, %s525, 0
      %s528 = sadd.s32 %s26, 1
      %s529 = smul.u32 %s528, 8
      %p530 = scmp.lt.s32.totalorder %s529, 15
      %s531 = scalar_select %p530, %s529, 15
      %p532 = scmp.lt.s32.totalorder %s25, 1
      %s533 = scalar_select %p532, %s25, 1
      %p534 = scmp.lt.s32.totalorder %s531, 15
      %s535 = scalar_select %p534, %s531, 15
      %s536 = smul.addr %s535, 2
      %s537 = smul.addr %s533, 32
      %s538 = sadd.s32 %s536, %s537
      %s539 = smul.addr %s538, 8
      %s540 = scalar_lea.vmem %s2, %s539
      %s541 = sadd.s32 %s26, 1
      %s542 = smul.u32 %s541, 8
      %p543 = scmp.lt.s32.totalorder %s542, 15
      %s544 = scalar_select %p543, %s542, 15
      %s545 = smul.u32 4, %s26
      %p546 = scmp.lt.s32.totalorder %s25, 1
      %s547 = scalar_select %p546, %s25, 1
      %p548 = scmp.lt.s32.totalorder %s545, 7
      %s549 = scalar_select %p548, %s545, 7
      %s550 = smul.addr %s549, 2
      %s551 = smul.addr %s547, 16
      %s552 = sadd.s32 %s550, %s551
      %s553 = smul.addr %s552, 8
      %s554 = scalar_lea.vmem %s3, %s553
      %s555 = smul.u32 4, %s26
      %s556 = smul.u32 8, %s26
      %p557 = scmp.lt.s32.totalorder %s25, 1
      %s558 = scalar_select %p557, %s25, 1
      %p559 = scmp.lt.s32.totalorder %s556, 15
      %s560 = scalar_select %p559, %s556, 15
      %s561 = smul.addr %s560, 2
      %s562 = smul.addr %s558, 32
      %s563 = sadd.s32 %s561, %s562
      %s564 = smul.addr %s563, 8
      %s565 = scalar_lea.vmem %s10, %s564
      %s566 = smul.u32 8, %s26
      %vm567 = vcmask 24576
      %568 = vst.msk [vmem:[#allocation2] sm:$0x1] %vm567, 0.0
      %569 = vst.msk [vmem:[#allocation2 + $0x18] sm:$0x1] %vm567, 0.0
      %570 = vst.msk [vmem:[#allocation2 + $0x30] sm:$0x1] %vm567, 0.0
      %571 = vst.msk [vmem:[#allocation2 + $0x48] sm:$0x1] %vm567, 0.0
      %572 = vst.msk [vmem:[#allocation2 + $0x60] sm:$0x1] %vm567, 0.0
      %573 = vst.msk [vmem:[#allocation2 + $0x78] sm:$0x1] %vm567, 0.0
      %574 = vst.msk [vmem:[#allocation2 + $0x90] sm:$0x1] %vm567, 0.0
      %575 = vst.msk [vmem:[#allocation2 + $0xa8] sm:$0x1] %vm567, 0.0
      %576 = vst.msk [vmem:[#allocation2 + $0xc0] sm:$0x1] %vm567, 0.0
      %577 = vst.msk [vmem:[#allocation2 + $0xd8] sm:$0x1] %vm567, 0.0
      %578 = vst.msk [vmem:[#allocation2 + $0x11] sm:$0x1] %vm567, 0.0
      %579 = vst.msk [vmem:[#allocation2 + $0x29] sm:$0x1] %vm567, 0.0
      %580 = vst.msk [vmem:[#allocation2 + $0x41] sm:$0x1] %vm567, 0.0
      %581 = vst.msk [vmem:[#allocation2 + $0x59] sm:$0x1] %vm567, 0.0
      %582 = vst.msk [vmem:[#allocation2 + $0x71] sm:$0x1] %vm567, 0.0
      %583 = vst.msk [vmem:[#allocation2 + $0x89] sm:$0x1] %vm567, 0.0
      %584 = vst.msk [vmem:[#allocation2 + $0xa1] sm:$0x1] %vm567, 0.0
      %585 = vst.msk [vmem:[#allocation2 + $0xb9] sm:$0x1] %vm567, 0.0
      %586 = vst.msk [vmem:[#allocation2 + $0xd1] sm:$0x1] %vm567, 0.0
      %587 = vst.msk [vmem:[#allocation2 + $0xe9] sm:$0x1] %vm567, 0.0
      %v588 = vld [vmem:[%s509] sm:$0xff]
      %v589 = vld [vmem:[%s509 + $0x8] sm:$0xff]
      %v590 = vld [vmem:[%s509 + $0x10] sm:$0xff]
      %v591 = vld [vmem:[%s509 + $0x18] sm:$0xff]
      %v592 = vld [vmem:[%s509 + $0x20] sm:$0xff]
      %v593 = vld [vmem:[%s509 + $0x28] sm:$0xff]
      %v594 = vld [vmem:[%s509 + $0x30] sm:$0xff]
      %v595 = vld [vmem:[%s509 + $0x38] sm:$0xff]
      %v596 = vld [vmem:[%s509 + $0x40] sm:$0xff]
      %v597 = vld [vmem:[%s509 + $0x48] sm:$0xff]
      %v598 = vld [vmem:[%s509 + $0x50] sm:$0xff]
      %v599 = vld [vmem:[%s509 + $0x58] sm:$0xff]
      %v600 = vld [vmem:[%s509 + $0x60] sm:$0xff]
      %v601 = vld [vmem:[%s509 + $0x68] sm:$0xff]
      %v602 = vld [vmem:[%s509 + $0x70] sm:$0xff]
      %v603 = vld [vmem:[%s509 + $0x78] sm:$0xff]
      %v604 = vld [vmem:[%s4] sm:$0x1]
      %606 = vset.pattern.permute.xlu0 0
      %607 = vperm.xlu0 %606, %v588
      %v608 = vpop.permute.xlu0 %607
      %611 = vset.pattern.permute.xlu0 0
      %612 = vperm.xlu0 %611, %v589
      %v613 = vpop.permute.xlu0 %612
      %616 = vset.pattern.permute.xlu0 0
      %617 = vperm.xlu0 %616, %v590
      %v618 = vpop.permute.xlu0 %617
      %621 = vset.pattern.permute.xlu0 0
      %622 = vperm.xlu0 %621, %v591
      %v623 = vpop.permute.xlu0 %622
      %626 = vset.pattern.permute.xlu0 0
      %627 = vperm.xlu0 %626, %v592
      %v628 = vpop.permute.xlu0 %627
      %631 = vset.pattern.permute.xlu0 0
      %632 = vperm.xlu0 %631, %v593
      %v633 = vpop.permute.xlu0 %632
      %636 = vset.pattern.permute.xlu0 0
      %637 = vperm.xlu0 %636, %v594
      %v638 = vpop.permute.xlu0 %637
      %641 = vset.pattern.permute.xlu0 0
      %642 = vperm.xlu0 %641, %v595
      %v643 = vpop.permute.xlu0 %642
      %646 = vset.pattern.permute.xlu0 0
      %647 = vperm.xlu0 %646, %v596
      %v648 = vpop.permute.xlu0 %647
      %651 = vset.pattern.permute.xlu0 0
      %652 = vperm.xlu0 %651, %v597
      %v653 = vpop.permute.xlu0 %652
      %656 = vset.pattern.permute.xlu0 0
      %657 = vperm.xlu0 %656, %v598
      %v658 = vpop.permute.xlu0 %657
      %661 = vset.pattern.permute.xlu0 0
      %662 = vperm.xlu0 %661, %v599
      %v663 = vpop.permute.xlu0 %662
      %666 = vset.pattern.permute.xlu0 0
      %667 = vperm.xlu0 %666, %v600
      %v668 = vpop.permute.xlu0 %667
      %671 = vset.pattern.permute.xlu0 0
      %672 = vperm.xlu0 %671, %v601
      %v673 = vpop.permute.xlu0 %672
      %676 = vset.pattern.permute.xlu0 0
      %677 = vperm.xlu0 %676, %v602
      %v678 = vpop.permute.xlu0 %677
      %681 = vset.pattern.permute.xlu0 0
      %682 = vperm.xlu0 %681, %v603
      %v683 = vpop.permute.xlu0 %682
      %v685 = vlaneseq
      %v686 = vshrl.u32 %v685, 7
      %v687 = vsub.s32 0, %v686
      %v688 = vrot.slane %v604, %v687
      %v689 = vmul.f32 %v608, %v688
      %v690 = vmul.f32 %v613, %v688
      %v691 = vmul.f32 %v618, %v688
      %v692 = vmul.f32 %v623, %v688
      %v693 = vmul.f32 %v628, %v688
      %v694 = vmul.f32 %v633, %v688
      %v695 = vmul.f32 %v638, %v688
      %v696 = vmul.f32 %v643, %v688
      %v697 = vmul.f32 %v648, %v688
      %v698 = vmul.f32 %v653, %v688
      %v699 = vmul.f32 %v658, %v688
      %v700 = vmul.f32 %v663, %v688
      %v701 = vmul.f32 %v668, %v688
      %v702 = vmul.f32 %v673, %v688
      %v703 = vmul.f32 %v678, %v688
      %v704 = vmul.f32 %v683, %v688
      %v705 = vld [vmem:[%s4 + $0x1] sm:$0x1]
      %706 = vset.pattern.permute.xlu0 1
      %707 = vperm.xlu0 %706, %v588
      %v708 = vpop.permute.xlu0 %707
      %710 = vset.pattern.permute.xlu0 1
      %711 = vperm.xlu0 %710, %v589
      %v712 = vpop.permute.xlu0 %711
      %714 = vset.pattern.permute.xlu0 1
      %715 = vperm.xlu0 %714, %v590
      %v716 = vpop.permute.xlu0 %715
      %718 = vset.pattern.permute.xlu0 1
      %719 = vperm.xlu0 %718, %v591
      %v720 = vpop.permute.xlu0 %719
      %722 = vset.pattern.permute.xlu0 1
      %723 = vperm.xlu0 %722, %v592
      %v724 = vpop.permute.xlu0 %723
      %726 = vset.pattern.permute.xlu0 1
      %727 = vperm.xlu0 %726, %v593
      %v728 = vpop.permute.xlu0 %727
      %730 = vset.pattern.permute.xlu0 1
      %731 = vperm.xlu0 %730, %v594
      %v732 = vpop.permute.xlu0 %731
      %734 = vset.pattern.permute.xlu0 1
      %735 = vperm.xlu0 %734, %v595
      %v736 = vpop.permute.xlu0 %735
      %738 = vset.pattern.permute.xlu0 1
      %739 = vperm.xlu0 %738, %v596
      %v740 = vpop.permute.xlu0 %739
      %742 = vset.pattern.permute.xlu0 1
      %743 = vperm.xlu0 %742, %v597
      %v744 = vpop.permute.xlu0 %743
      %746 = vset.pattern.permute.xlu0 1
      %747 = vperm.xlu0 %746, %v598
      %v748 = vpop.permute.xlu0 %747
      %750 = vset.pattern.permute.xlu0 1
      %751 = vperm.xlu0 %750, %v599
      %v752 = vpop.permute.xlu0 %751
      %754 = vset.pattern.permute.xlu0 1
      %755 = vperm.xlu0 %754, %v600
      %v756 = vpop.permute.xlu0 %755
      %758 = vset.pattern.permute.xlu0 1
      %759 = vperm.xlu0 %758, %v601
      %v760 = vpop.permute.xlu0 %759
      %762 = vset.pattern.permute.xlu0 1
      %763 = vperm.xlu0 %762, %v602
      %v764 = vpop.permute.xlu0 %763
      %766 = vset.pattern.permute.xlu0 1
      %767 = vperm.xlu0 %766, %v603
      %v768 = vpop.permute.xlu0 %767
      %v770 = vlaneseq
      %v771 = vshrl.u32 %v770, 7
      %v772 = vsub.s32 0, %v771
      %v773 = vrot.slane %v705, %v772
      %v774 = vmul.f32 %v708, %v773
      %v775 = vmul.f32 %v712, %v773
      %v776 = vmul.f32 %v716, %v773
      %v777 = vmul.f32 %v720, %v773
      %v778 = vmul.f32 %v724, %v773
      %v779 = vmul.f32 %v728, %v773
      %v780 = vmul.f32 %v732, %v773
      %v781 = vmul.f32 %v736, %v773
      %v782 = vmul.f32 %v740, %v773
      %v783 = vmul.f32 %v744, %v773
      %v784 = vmul.f32 %v748, %v773
      %v785 = vmul.f32 %v752, %v773
      %v786 = vmul.f32 %v756, %v773
      %v787 = vmul.f32 %v760, %v773
      %v788 = vmul.f32 %v764, %v773
      %v789 = vmul.f32 %v768, %v773
      %v790 = vadd.f32 %v689, %v774
      %v791 = vadd.f32 %v690, %v775
      %v792 = vadd.f32 %v691, %v776
      %v793 = vadd.f32 %v692, %v777
      %v794 = vadd.f32 %v693, %v778
      %v795 = vadd.f32 %v694, %v779
      %v796 = vadd.f32 %v695, %v780
      %v797 = vadd.f32 %v696, %v781
      %v798 = vadd.f32 %v697, %v782
      %v799 = vadd.f32 %v698, %v783
      %v800 = vadd.f32 %v699, %v784
      %v801 = vadd.f32 %v700, %v785
      %v802 = vadd.f32 %v701, %v786
      %v803 = vadd.f32 %v702, %v787
      %v804 = vadd.f32 %v703, %v788
      %v805 = vadd.f32 %v704, %v789
      %v806 = vld [vmem:[%s4 + $0x2] sm:$0x1]
      %807 = vset.pattern.permute.xlu0 2
      %808 = vperm.xlu0 %807, %v588
      %v809 = vpop.permute.xlu0 %808
      %811 = vset.pattern.permute.xlu0 2
      %812 = vperm.xlu0 %811, %v589
      %v813 = vpop.permute.xlu0 %812
      %815 = vset.pattern.permute.xlu0 2
      %816 = vperm.xlu0 %815, %v590
      %v817 = vpop.permute.xlu0 %816
      %819 = vset.pattern.permute.xlu0 2
      %820 = vperm.xlu0 %819, %v591
      %v821 = vpop.permute.xlu0 %820
      %823 = vset.pattern.permute.xlu0 2
      %824 = vperm.xlu0 %823, %v592
      %v825 = vpop.permute.xlu0 %824
      %827 = vset.pattern.permute.xlu0 2
      %828 = vperm.xlu0 %827, %v593
      %v829 = vpop.permute.xlu0 %828
      %831 = vset.pattern.permute.xlu0 2
      %832 = vperm.xlu0 %831, %v594
      %v833 = vpop.permute.xlu0 %832
      %835 = vset.pattern.permute.xlu0 2
      %836 = vperm.xlu0 %835, %v595
      %v837 = vpop.permute.xlu0 %836
      %839 = vset.pattern.permute.xlu0 2
      %840 = vperm.xlu0 %839, %v596
      %v841 = vpop.permute.xlu0 %840
      %843 = vset.pattern.permute.xlu0 2
      %844 = vperm.xlu0 %843, %v597
      %v845 = vpop.permute.xlu0 %844
      %847 = vset.pattern.permute.xlu0 2
      %848 = vperm.xlu0 %847, %v598
      %v849 = vpop.permute.xlu0 %848
      %851 = vset.pattern.permute.xlu0 2
      %852 = vperm.xlu0 %851, %v599
      %v853 = vpop.permute.xlu0 %852
      %855 = vset.pattern.permute.xlu0 2
      %856 = vperm.xlu0 %855, %v600
      %v857 = vpop.permute.xlu0 %856
      %859 = vset.pattern.permute.xlu0 2
      %860 = vperm.xlu0 %859, %v601
      %v861 = vpop.permute.xlu0 %860
      %863 = vset.pattern.permute.xlu0 2
      %864 = vperm.xlu0 %863, %v602
      %v865 = vpop.permute.xlu0 %864
      %867 = vset.pattern.permute.xlu0 2
      %868 = vperm.xlu0 %867, %v603
      %v869 = vpop.permute.xlu0 %868
      %v871 = vlaneseq
      %v872 = vshrl.u32 %v871, 7
      %v873 = vsub.s32 0, %v872
      %v874 = vrot.slane %v806, %v873
      %v875 = vmul.f32 %v809, %v874
      %v876 = vmul.f32 %v813, %v874
      %v877 = vmul.f32 %v817, %v874
      %v878 = vmul.f32 %v821, %v874
      %v879 = vmul.f32 %v825, %v874
      %v880 = vmul.f32 %v829, %v874
      %v881 = vmul.f32 %v833, %v874
      %v882 = vmul.f32 %v837, %v874
      %v883 = vmul.f32 %v841, %v874
      %v884 = vmul.f32 %v845, %v874
      %v885 = vmul.f32 %v849, %v874
      %v886 = vmul.f32 %v853, %v874
      %v887 = vmul.f32 %v857, %v874
      %v888 = vmul.f32 %v861, %v874
      %v889 = vmul.f32 %v865, %v874
      %v890 = vmul.f32 %v869, %v874
      %v891 = vadd.f32 %v790, %v875
      %v892 = vadd.f32 %v791, %v876
      %v893 = vadd.f32 %v792, %v877
      %v894 = vadd.f32 %v793, %v878
      %v895 = vadd.f32 %v794, %v879
      %v896 = vadd.f32 %v795, %v880
      %v897 = vadd.f32 %v796, %v881
      %v898 = vadd.f32 %v797, %v882
      %v899 = vadd.f32 %v798, %v883
      %v900 = vadd.f32 %v799, %v884
      %v901 = vadd.f32 %v800, %v885
      %v902 = vadd.f32 %v801, %v886
      %v903 = vadd.f32 %v802, %v887
      %v904 = vadd.f32 %v803, %v888
      %v905 = vadd.f32 %v804, %v889
      %v906 = vadd.f32 %v805, %v890
      %v907 = vld [vmem:[%s4 + $0x3] sm:$0x1]
      %908 = vset.pattern.permute.xlu0 3
      %909 = vperm.xlu0 %908, %v588
      %v910 = vpop.permute.xlu0 %909
      %912 = vset.pattern.permute.xlu0 3
      %913 = vperm.xlu0 %912, %v589
      %v914 = vpop.permute.xlu0 %913
      %916 = vset.pattern.permute.xlu0 3
      %917 = vperm.xlu0 %916, %v590
      %v918 = vpop.permute.xlu0 %917
      %920 = vset.pattern.permute.xlu0 3
      %921 = vperm.xlu0 %920, %v591
      %v922 = vpop.permute.xlu0 %921
      %924 = vset.pattern.permute.xlu0 3
      %925 = vperm.xlu0 %924, %v592
      %v926 = vpop.permute.xlu0 %925
      %928 = vset.pattern.permute.xlu0 3
      %929 = vperm.xlu0 %928, %v593
      %v930 = vpop.permute.xlu0 %929
      %932 = vset.pattern.permute.xlu0 3
      %933 = vperm.xlu0 %932, %v594
      %v934 = vpop.permute.xlu0 %933
      %936 = vset.pattern.permute.xlu0 3
      %937 = vperm.xlu0 %936, %v595
      %v938 = vpop.permute.xlu0 %937
      %940 = vset.pattern.permute.xlu0 3
      %941 = vperm.xlu0 %940, %v596
      %v942 = vpop.permute.xlu0 %941
      %944 = vset.pattern.permute.xlu0 3
      %945 = vperm.xlu0 %944, %v597
      %v946 = vpop.permute.xlu0 %945
      %948 = vset.pattern.permute.xlu0 3
      %949 = vperm.xlu0 %948, %v598
      %v950 = vpop.permute.xlu0 %949
      %952 = vset.pattern.permute.xlu0 3
      %953 = vperm.xlu0 %952, %v599
      %v954 = vpop.permute.xlu0 %953
      %956 = vset.pattern.permute.xlu0 3
      %957 = vperm.xlu0 %956, %v600
      %v958 = vpop.permute.xlu0 %957
      %960 = vset.pattern.permute.xlu0 3
      %961 = vperm.xlu0 %960, %v601
      %v962 = vpop.permute.xlu0 %961
      %964 = vset.pattern.permute.xlu0 3
      %965 = vperm.xlu0 %964, %v602
      %v966 = vpop.permute.xlu0 %965
      %968 = vset.pattern.permute.xlu0 3
      %969 = vperm.xlu0 %968, %v603
      %v970 = vpop.permute.xlu0 %969
      %v972 = vlaneseq
      %v973 = vshrl.u32 %v972, 7
      %v974 = vsub.s32 0, %v973
      %v975 = vrot.slane %v907, %v974
      %v976 = vmul.f32 %v910, %v975
      %v977 = vmul.f32 %v914, %v975
      %v978 = vmul.f32 %v918, %v975
      %v979 = vmul.f32 %v922, %v975
      %v980 = vmul.f32 %v926, %v975
      %v981 = vmul.f32 %v930, %v975
      %v982 = vmul.f32 %v934, %v975
      %v983 = vmul.f32 %v938, %v975
      %v984 = vmul.f32 %v942, %v975
      %v985 = vmul.f32 %v946, %v975
      %v986 = vmul.f32 %v950, %v975
      %v987 = vmul.f32 %v954, %v975
      %v988 = vmul.f32 %v958, %v975
      %v989 = vmul.f32 %v962, %v975
      %v990 = vmul.f32 %v966, %v975
      %v991 = vmul.f32 %v970, %v975
      %v992 = vadd.f32 %v891, %v976
      %v993 = vadd.f32 %v892, %v977
      %v994 = vadd.f32 %v893, %v978
      %v995 = vadd.f32 %v894, %v979
      %v996 = vadd.f32 %v895, %v980
      %v997 = vadd.f32 %v896, %v981
      %v998 = vadd.f32 %v897, %v982
      %v999 = vadd.f32 %v898, %v983
      %v1000 = vadd.f32 %v899, %v984
      %v1001 = vadd.f32 %v900, %v985
      %v1002 = vadd.f32 %v901, %v986
      %v1003 = vadd.f32 %v902, %v987
      %v1004 = vadd.f32 %v903, %v988
      %v1005 = vadd.f32 %v904, %v989
      %v1006 = vadd.f32 %v905, %v990
      %v1007 = vadd.f32 %v906, %v991
      %v1008 = vld [vmem:[%s5] sm:$0x1]
      %v1010 = vlaneseq
      %v1011 = vshrl.u32 %v1010, 7
      %v1012 = vsub.s32 0, %v1011
      %v1013 = vrot.slane %v1008, %v1012
      %v1015 = vmul.f32 %v992, %v1013
      %v1016 = vmul.f32 %v993, %v1013
      %v1017 = vmul.f32 %v994, %v1013
      %v1018 = vmul.f32 %v995, %v1013
      %v1019 = vmul.f32 %v996, %v1013
      %v1020 = vmul.f32 %v997, %v1013
      %v1021 = vmul.f32 %v998, %v1013
      %v1022 = vmul.f32 %v999, %v1013
      %v1023 = vmul.f32 %v1000, %v1013
      %v1024 = vmul.f32 %v1001, %v1013
      %v1025 = vmul.f32 %v1002, %v1013
      %v1026 = vmul.f32 %v1003, %v1013
      %v1027 = vmul.f32 %v1004, %v1013
      %v1028 = vmul.f32 %v1005, %v1013
      %v1029 = vmul.f32 %v1006, %v1013
      %v1030 = vmul.f32 %v1007, %v1013
      %v1031 = vld [vmem:[%s6] sm:$0x1]
      %v1033 = vlaneseq
      %v1034 = vshrl.u32 %v1033, 7
      %v1035 = vsub.s32 0, %v1034
      %v1036 = vrot.slane %v1031, %v1035
      %v1038 = vadd.f32 %v1015, %v1036
      %v1039 = vadd.f32 %v1016, %v1036
      %v1040 = vadd.f32 %v1017, %v1036
      %v1041 = vadd.f32 %v1018, %v1036
      %v1042 = vadd.f32 %v1019, %v1036
      %v1043 = vadd.f32 %v1020, %v1036
      %v1044 = vadd.f32 %v1021, %v1036
      %v1045 = vadd.f32 %v1022, %v1036
      %v1046 = vadd.f32 %v1023, %v1036
      %v1047 = vadd.f32 %v1024, %v1036
      %v1048 = vadd.f32 %v1025, %v1036
      %v1049 = vadd.f32 %v1026, %v1036
      %v1050 = vadd.f32 %v1027, %v1036
      %v1051 = vadd.f32 %v1028, %v1036
      %v1052 = vadd.f32 %v1029, %v1036
      %v1053 = vadd.f32 %v1030, %v1036
      %v1054 = vmax.f32 %v1038, 0.0
      %v1055 = vmax.f32 %v1039, 0.0
      %v1056 = vmax.f32 %v1040, 0.0
      %v1057 = vmax.f32 %v1041, 0.0
      %v1058 = vmax.f32 %v1042, 0.0
      %v1059 = vmax.f32 %v1043, 0.0
      %v1060 = vmax.f32 %v1044, 0.0
      %v1061 = vmax.f32 %v1045, 0.0
      %v1062 = vmax.f32 %v1046, 0.0
      %v1063 = vmax.f32 %v1047, 0.0
      %v1064 = vmax.f32 %v1048, 0.0
      %v1065 = vmax.f32 %v1049, 0.0
      %v1066 = vmax.f32 %v1050, 0.0
      %v1067 = vmax.f32 %v1051, 0.0
      %v1068 = vmax.f32 %v1052, 0.0
      %v1069 = vmax.f32 %v1053, 0.0
      %s1070 = scalar_lea.vmem [#allocation2], 24
      %vm1071 = vcmask 31744
      %1072 = vst.msk [vmem:[%s1070 + $0x1] sm:$0xff] %vm1071, %v1054
      %1073 = vst.msk [vmem:[%s1070 + $0x9] sm:$0xff] %vm1071, %v1055
      %1074 = vst.msk [vmem:[%s1070 + $0x19] sm:$0xff] %vm1071, %v1056
      %1075 = vst.msk [vmem:[%s1070 + $0x21] sm:$0xff] %vm1071, %v1057
      %1076 = vst.msk [vmem:[%s1070 + $0x31] sm:$0xff] %vm1071, %v1058
      %1077 = vst.msk [vmem:[%s1070 + $0x39] sm:$0xff] %vm1071, %v1059
      %1078 = vst.msk [vmem:[%s1070 + $0x49] sm:$0xff] %vm1071, %v1060
      %1079 = vst.msk [vmem:[%s1070 + $0x51] sm:$0xff] %vm1071, %v1061
      %1080 = vst.msk [vmem:[%s1070 + $0x61] sm:$0xff] %vm1071, %v1062
      %1081 = vst.msk [vmem:[%s1070 + $0x69] sm:$0xff] %vm1071, %v1063
      %1082 = vst.msk [vmem:[%s1070 + $0x79] sm:$0xff] %vm1071, %v1064
      %1083 = vst.msk [vmem:[%s1070 + $0x81] sm:$0xff] %vm1071, %v1065
      %1084 = vst.msk [vmem:[%s1070 + $0x91] sm:$0xff] %vm1071, %v1066
      %1085 = vst.msk [vmem:[%s1070 + $0x99] sm:$0xff] %vm1071, %v1067
      %1086 = vst.msk [vmem:[%s1070 + $0xa9] sm:$0xff] %vm1071, %v1068
      %1087 = vst.msk [vmem:[%s1070 + $0xb1] sm:$0xff] %vm1071, %v1069
      %v1088 = vld [vmem:[%s523] sm:$0xff]
      %v1089 = vld [vmem:[%s523 + $0x8] sm:$0xff]
      %v1090 = vld [vmem:[%s4] sm:$0x1]
      %1092 = vset.pattern.permute.xlu0 0
      %1093 = vperm.xlu0 %1092, %v1088
      %v1094 = vpop.permute.xlu0 %1093
      %1097 = vset.pattern.permute.xlu0 0
      %1098 = vperm.xlu0 %1097, %v1089
      %v1099 = vpop.permute.xlu0 %1098
      %v1101 = vlaneseq
      %v1102 = vshrl.u32 %v1101, 7
      %v1103 = vsub.s32 0, %v1102
      %v1104 = vrot.slane %v1090, %v1103
      %v1105 = vmul.f32 %v1094, %v1104
      %v1106 = vmul.f32 %v1099, %v1104
      %v1107 = vld [vmem:[%s4 + $0x1] sm:$0x1]
      %1108 = vset.pattern.permute.xlu0 1
      %1109 = vperm.xlu0 %1108, %v1088
      %v1110 = vpop.permute.xlu0 %1109
      %1112 = vset.pattern.permute.xlu0 1
      %1113 = vperm.xlu0 %1112, %v1089
      %v1114 = vpop.permute.xlu0 %1113
      %v1116 = vlaneseq
      %v1117 = vshrl.u32 %v1116, 7
      %v1118 = vsub.s32 0, %v1117
      %v1119 = vrot.slane %v1107, %v1118
      %v1120 = vmul.f32 %v1110, %v1119
      %v1121 = vmul.f32 %v1114, %v1119
      %v1122 = vadd.f32 %v1105, %v1120
      %v1123 = vadd.f32 %v1106, %v1121
      %v1124 = vld [vmem:[%s4 + $0x2] sm:$0x1]
      %1125 = vset.pattern.permute.xlu0 2
      %1126 = vperm.xlu0 %1125, %v1088
      %v1127 = vpop.permute.xlu0 %1126
      %1129 = vset.pattern.permute.xlu0 2
      %1130 = vperm.xlu0 %1129, %v1089
      %v1131 = vpop.permute.xlu0 %1130
      %v1133 = vlaneseq
      %v1134 = vshrl.u32 %v1133, 7
      %v1135 = vsub.s32 0, %v1134
      %v1136 = vrot.slane %v1124, %v1135
      %v1137 = vmul.f32 %v1127, %v1136
      %v1138 = vmul.f32 %v1131, %v1136
      %v1139 = vadd.f32 %v1122, %v1137
      %v1140 = vadd.f32 %v1123, %v1138
      %v1141 = vld [vmem:[%s4 + $0x3] sm:$0x1]
      %1142 = vset.pattern.permute.xlu0 3
      %1143 = vperm.xlu0 %1142, %v1088
      %v1144 = vpop.permute.xlu0 %1143
      %1146 = vset.pattern.permute.xlu0 3
      %1147 = vperm.xlu0 %1146, %v1089
      %v1148 = vpop.permute.xlu0 %1147
      %v1150 = vlaneseq
      %v1151 = vshrl.u32 %v1150, 7
      %v1152 = vsub.s32 0, %v1151
      %v1153 = vrot.slane %v1141, %v1152
      %v1154 = vmul.f32 %v1144, %v1153
      %v1155 = vmul.f32 %v1148, %v1153
      %v1156 = vadd.f32 %v1139, %v1154
      %v1157 = vadd.f32 %v1140, %v1155
      %v1158 = vld [vmem:[%s5] sm:$0x1]
      %v1160 = vlaneseq
      %v1161 = vshrl.u32 %v1160, 7
      %v1162 = vsub.s32 0, %v1161
      %v1163 = vrot.slane %v1158, %v1162
      %v1165 = vmul.f32 %v1156, %v1163
      %v1166 = vmul.f32 %v1157, %v1163
      %v1167 = vld [vmem:[%s6] sm:$0x1]
      %v1169 = vlaneseq
      %v1170 = vshrl.u32 %v1169, 7
      %v1171 = vsub.s32 0, %v1170
      %v1172 = vrot.slane %v1167, %v1171
      %v1174 = vadd.f32 %v1165, %v1172
      %v1175 = vadd.f32 %v1166, %v1172
      %v1176 = vmax.f32 %v1174, 0.0
      %v1177 = vmax.f32 %v1175, 0.0
      %v1178 = vld [vmem:[%s540] sm:$0xff]
      %v1179 = vld [vmem:[%s540 + $0x8] sm:$0xff]
      %1181 = vset.pattern.permute.xlu0 0
      %1182 = vperm.xlu0 %1181, %v1178
      %v1183 = vpop.permute.xlu0 %1182
      %1186 = vset.pattern.permute.xlu0 0
      %1187 = vperm.xlu0 %1186, %v1179
      %v1188 = vpop.permute.xlu0 %1187
      %v1190 = vmul.f32 %v1183, %v1104
      %v1191 = vmul.f32 %v1188, %v1104
      %1192 = vset.pattern.permute.xlu0 1
      %1193 = vperm.xlu0 %1192, %v1178
      %v1194 = vpop.permute.xlu0 %1193
      %1196 = vset.pattern.permute.xlu0 1
      %1197 = vperm.xlu0 %1196, %v1179
      %v1198 = vpop.permute.xlu0 %1197
      %v1200 = vmul.f32 %v1194, %v1119
      %v1201 = vmul.f32 %v1198, %v1119
      %v1202 = vadd.f32 %v1190, %v1200
      %v1203 = vadd.f32 %v1191, %v1201
      %1204 = vset.pattern.permute.xlu0 2
      %1205 = vperm.xlu0 %1204, %v1178
      %v1206 = vpop.permute.xlu0 %1205
      %1208 = vset.pattern.permute.xlu0 2
      %1209 = vperm.xlu0 %1208, %v1179
      %v1210 = vpop.permute.xlu0 %1209
      %v1212 = vmul.f32 %v1206, %v1136
      %v1213 = vmul.f32 %v1210, %v1136
      %v1214 = vadd.f32 %v1202, %v1212
      %v1215 = vadd.f32 %v1203, %v1213
      %1216 = vset.pattern.permute.xlu0 3
      %1217 = vperm.xlu0 %1216, %v1178
      %v1218 = vpop.permute.xlu0 %1217
      %1220 = vset.pattern.permute.xlu0 3
      %1221 = vperm.xlu0 %1220, %v1179
      %v1222 = vpop.permute.xlu0 %1221
      %v1224 = vmul.f32 %v1218, %v1153
      %v1225 = vmul.f32 %v1222, %v1153
      %v1226 = vadd.f32 %v1214, %v1224
      %v1227 = vadd.f32 %v1215, %v1225
      %v1228 = vmul.f32 %v1226, %v1163
      %v1229 = vmul.f32 %v1227, %v1163
      %v1230 = vadd.f32 %v1228, %v1172
      %v1231 = vadd.f32 %v1229, %v1172
      %v1232 = vmax.f32 %v1230, 0.0
      %v1233 = vmax.f32 %v1231, 0.0
      %p1234 = scmp.gt.s32.totalorder %s26, 0
      %s1235 = scalar_select %p1234, 1, 0
      %s1236 = scvt.s32.f32 %s1235
      %v1237 = vstv %s1236
      %v1238 = vmul.f32 %v1176, %v1237
      %v1239 = vmul.f32 %v1177, %v1237
      %1240 = vst.msk [vmem:[#allocation2 + $0x1] sm:$0xff] %vm1071, %v1238
      %1241 = vst.msk [vmem:[#allocation2 + $0x9] sm:$0xff] %vm1071, %v1239
      %p1242 = scmp.lt.s32.totalorder %s26, 1
      %s1243 = scalar_select %p1242, 1, 0
      %s1244 = scvt.s32.f32 %s1243
      %v1245 = vstv %s1244
      %v1246 = vmul.f32 %v1232, %v1245
      %v1247 = vmul.f32 %v1233, %v1245
      %s1248 = scalar_lea.vmem [#allocation2], 216
      %1249 = vst.msk [vmem:[%s1248 + $0x1] sm:$0xff] %vm1071, %v1246
      %1250 = vst.msk [vmem:[%s1248 + $0x9] sm:$0xff] %vm1071, %v1247
      %v1251 = vld [vmem:[#allocation2] sm:$0xff]
      %v1252 = vld [vmem:[#allocation2 + $0x8] sm:$0xff]
      %v1253 = vld [vmem:[#allocation2 + $0x18] sm:$0xff]
      %v1254 = vld [vmem:[#allocation2 + $0x20] sm:$0xff]
      %v1255 = vld [vmem:[#allocation2 + $0x30] sm:$0xff]
      %v1256 = vld [vmem:[#allocation2 + $0x38] sm:$0xff]
      %v1257 = vld [vmem:[#allocation2 + $0x48] sm:$0xff]
      %v1258 = vld [vmem:[#allocation2 + $0x50] sm:$0xff]
      %v1259 = vld [vmem:[#allocation2 + $0x60] sm:$0xff]
      %v1260 = vld [vmem:[#allocation2 + $0x68] sm:$0xff]
      %v1261 = vld [vmem:[#allocation2 + $0x78] sm:$0xff]
      %v1262 = vld [vmem:[#allocation2 + $0x80] sm:$0xff]
      %v1263 = vld [vmem:[#allocation2 + $0x90] sm:$0xff]
      %v1264 = vld [vmem:[#allocation2 + $0x98] sm:$0xff]
      %v1265 = vld [vmem:[#allocation2 + $0xa8] sm:$0xff]
      %v1266 = vld [vmem:[#allocation2 + $0xb0] sm:$0xff]
      %v1267 = vld [vmem:[%s7] sm:$0x1]
      %v1268 = vlaneseq
      %v1269 = vshrl.u32 %v1268, 7
      %v1270 = vsub.s32 0, %v1269
      %v1271 = vrot.slane %v1267, %v1270
      %v1272 = vmul.f32 %v1251, %v1271
      %v1273 = vmul.f32 %v1252, %v1271
      %v1274 = vmul.f32 %v1253, %v1271
      %v1275 = vmul.f32 %v1254, %v1271
      %v1276 = vmul.f32 %v1255, %v1271
      %v1277 = vmul.f32 %v1256, %v1271
      %v1278 = vmul.f32 %v1257, %v1271
      %v1279 = vmul.f32 %v1258, %v1271
      %v1280 = vmul.f32 %v1259, %v1271
      %v1281 = vmul.f32 %v1260, %v1271
      %v1282 = vmul.f32 %v1261, %v1271
      %v1283 = vmul.f32 %v1262, %v1271
      %v1284 = vmul.f32 %v1263, %v1271
      %v1285 = vmul.f32 %v1264, %v1271
      %v1286 = vmul.f32 %v1265, %v1271
      %v1287 = vmul.f32 %v1266, %v1271
      %v1288 = vld [vmem:[#allocation2 + $0x1] sm:$0xff]
      %v1289 = vld [vmem:[#allocation2 + $0x9] sm:$0xff]
      %v1290 = vld [vmem:[#allocation2 + $0x19] sm:$0xff]
      %v1291 = vld [vmem:[#allocation2 + $0x21] sm:$0xff]
      %v1292 = vld [vmem:[#allocation2 + $0x31] sm:$0xff]
      %v1293 = vld [vmem:[#allocation2 + $0x39] sm:$0xff]
      %v1294 = vld [vmem:[#allocation2 + $0x49] sm:$0xff]
      %v1295 = vld [vmem:[#allocation2 + $0x51] sm:$0xff]
      %v1296 = vld [vmem:[#allocation2 + $0x61] sm:$0xff]
      %v1297 = vld [vmem:[#allocation2 + $0x69] sm:$0xff]
      %v1298 = vld [vmem:[#allocation2 + $0x79] sm:$0xff]
      %v1299 = vld [vmem:[#allocation2 + $0x81] sm:$0xff]
      %v1300 = vld [vmem:[#allocation2 + $0x91] sm:$0xff]
      %v1301 = vld [vmem:[#allocation2 + $0x99] sm:$0xff]
      %v1302 = vld [vmem:[#allocation2 + $0xa9] sm:$0xff]
      %v1303 = vld [vmem:[#allocation2 + $0xb1] sm:$0xff]
      %v1304 = vld [vmem:[%s7 + $0x1] sm:$0x1]
      %v1305 = vlaneseq
      %v1306 = vshrl.u32 %v1305, 7
      %v1307 = vsub.s32 0, %v1306
      %v1308 = vrot.slane %v1304, %v1307
      %v1309 = vmul.f32 %v1288, %v1308
      %v1310 = vmul.f32 %v1289, %v1308
      %v1311 = vmul.f32 %v1290, %v1308
      %v1312 = vmul.f32 %v1291, %v1308
      %v1313 = vmul.f32 %v1292, %v1308
      %v1314 = vmul.f32 %v1293, %v1308
      %v1315 = vmul.f32 %v1294, %v1308
      %v1316 = vmul.f32 %v1295, %v1308
      %v1317 = vmul.f32 %v1296, %v1308
      %v1318 = vmul.f32 %v1297, %v1308
      %v1319 = vmul.f32 %v1298, %v1308
      %v1320 = vmul.f32 %v1299, %v1308
      %v1321 = vmul.f32 %v1300, %v1308
      %v1322 = vmul.f32 %v1301, %v1308
      %v1323 = vmul.f32 %v1302, %v1308
      %v1324 = vmul.f32 %v1303, %v1308
      %v1325 = vadd.f32 %v1272, %v1309
      %v1326 = vadd.f32 %v1273, %v1310
      %v1327 = vadd.f32 %v1274, %v1311
      %v1328 = vadd.f32 %v1275, %v1312
      %v1329 = vadd.f32 %v1276, %v1313
      %v1330 = vadd.f32 %v1277, %v1314
      %v1331 = vadd.f32 %v1278, %v1315
      %v1332 = vadd.f32 %v1279, %v1316
      %v1333 = vadd.f32 %v1280, %v1317
      %v1334 = vadd.f32 %v1281, %v1318
      %v1335 = vadd.f32 %v1282, %v1319
      %v1336 = vadd.f32 %v1283, %v1320
      %v1337 = vadd.f32 %v1284, %v1321
      %v1338 = vadd.f32 %v1285, %v1322
      %v1339 = vadd.f32 %v1286, %v1323
      %v1340 = vadd.f32 %v1287, %v1324
      %v1341 = vld [vmem:[#allocation2 + $0x2] sm:$0xff]
      %v1342 = vld [vmem:[#allocation2 + $0xa] sm:$0xff]
      %v1343 = vld [vmem:[#allocation2 + $0x1a] sm:$0xff]
      %v1344 = vld [vmem:[#allocation2 + $0x22] sm:$0xff]
      %v1345 = vld [vmem:[#allocation2 + $0x32] sm:$0xff]
      %v1346 = vld [vmem:[#allocation2 + $0x3a] sm:$0xff]
      %v1347 = vld [vmem:[#allocation2 + $0x4a] sm:$0xff]
      %v1348 = vld [vmem:[#allocation2 + $0x52] sm:$0xff]
      %v1349 = vld [vmem:[#allocation2 + $0x62] sm:$0xff]
      %v1350 = vld [vmem:[#allocation2 + $0x6a] sm:$0xff]
      %v1351 = vld [vmem:[#allocation2 + $0x7a] sm:$0xff]
      %v1352 = vld [vmem:[#allocation2 + $0x82] sm:$0xff]
      %v1353 = vld [vmem:[#allocation2 + $0x92] sm:$0xff]
      %v1354 = vld [vmem:[#allocation2 + $0x9a] sm:$0xff]
      %v1355 = vld [vmem:[#allocation2 + $0xaa] sm:$0xff]
      %v1356 = vld [vmem:[#allocation2 + $0xb2] sm:$0xff]
      %v1357 = vld [vmem:[%s7 + $0x2] sm:$0x1]
      %v1358 = vlaneseq
      %v1359 = vshrl.u32 %v1358, 7
      %v1360 = vsub.s32 0, %v1359
      %v1361 = vrot.slane %v1357, %v1360
      %v1362 = vmul.f32 %v1341, %v1361
      %v1363 = vmul.f32 %v1342, %v1361
      %v1364 = vmul.f32 %v1343, %v1361
      %v1365 = vmul.f32 %v1344, %v1361
      %v1366 = vmul.f32 %v1345, %v1361
      %v1367 = vmul.f32 %v1346, %v1361
      %v1368 = vmul.f32 %v1347, %v1361
      %v1369 = vmul.f32 %v1348, %v1361
      %v1370 = vmul.f32 %v1349, %v1361
      %v1371 = vmul.f32 %v1350, %v1361
      %v1372 = vmul.f32 %v1351, %v1361
      %v1373 = vmul.f32 %v1352, %v1361
      %v1374 = vmul.f32 %v1353, %v1361
      %v1375 = vmul.f32 %v1354, %v1361
      %v1376 = vmul.f32 %v1355, %v1361
      %v1377 = vmul.f32 %v1356, %v1361
      %v1378 = vadd.f32 %v1325, %v1362
      %v1379 = vadd.f32 %v1326, %v1363
      %v1380 = vadd.f32 %v1327, %v1364
      %v1381 = vadd.f32 %v1328, %v1365
      %v1382 = vadd.f32 %v1329, %v1366
      %v1383 = vadd.f32 %v1330, %v1367
      %v1384 = vadd.f32 %v1331, %v1368
      %v1385 = vadd.f32 %v1332, %v1369
      %v1386 = vadd.f32 %v1333, %v1370
      %v1387 = vadd.f32 %v1334, %v1371
      %v1388 = vadd.f32 %v1335, %v1372
      %v1389 = vadd.f32 %v1336, %v1373
      %v1390 = vadd.f32 %v1337, %v1374
      %v1391 = vadd.f32 %v1338, %v1375
      %v1392 = vadd.f32 %v1339, %v1376
      %v1393 = vadd.f32 %v1340, %v1377
      %v1394 = vld [vmem:[%s1070] sm:$0xff]
      %v1395 = vld [vmem:[%s1070 + $0x8] sm:$0xff]
      %v1396 = vld [vmem:[%s1070 + $0x18] sm:$0xff]
      %v1397 = vld [vmem:[%s1070 + $0x20] sm:$0xff]
      %v1398 = vld [vmem:[%s1070 + $0x30] sm:$0xff]
      %v1399 = vld [vmem:[%s1070 + $0x38] sm:$0xff]
      %v1400 = vld [vmem:[%s1070 + $0x48] sm:$0xff]
      %v1401 = vld [vmem:[%s1070 + $0x50] sm:$0xff]
      %v1402 = vld [vmem:[%s1070 + $0x60] sm:$0xff]
      %v1403 = vld [vmem:[%s1070 + $0x68] sm:$0xff]
      %v1404 = vld [vmem:[%s1070 + $0x78] sm:$0xff]
      %v1405 = vld [vmem:[%s1070 + $0x80] sm:$0xff]
      %v1406 = vld [vmem:[%s1070 + $0x90] sm:$0xff]
      %v1407 = vld [vmem:[%s1070 + $0x98] sm:$0xff]
      %v1408 = vld [vmem:[%s1070 + $0xa8] sm:$0xff]
      %v1409 = vld [vmem:[%s1070 + $0xb0] sm:$0xff]
      %v1410 = vld [vmem:[%s7 + $0x3] sm:$0x1]
      %v1411 = vlaneseq
      %v1412 = vshrl.u32 %v1411, 7
      %v1413 = vsub.s32 0, %v1412
      %v1414 = vrot.slane %v1410, %v1413
      %v1415 = vmul.f32 %v1394, %v1414
      %v1416 = vmul.f32 %v1395, %v1414
      %v1417 = vmul.f32 %v1396, %v1414
      %v1418 = vmul.f32 %v1397, %v1414
      %v1419 = vmul.f32 %v1398, %v1414
      %v1420 = vmul.f32 %v1399, %v1414
      %v1421 = vmul.f32 %v1400, %v1414
      %v1422 = vmul.f32 %v1401, %v1414
      %v1423 = vmul.f32 %v1402, %v1414
      %v1424 = vmul.f32 %v1403, %v1414
      %v1425 = vmul.f32 %v1404, %v1414
      %v1426 = vmul.f32 %v1405, %v1414
      %v1427 = vmul.f32 %v1406, %v1414
      %v1428 = vmul.f32 %v1407, %v1414
      %v1429 = vmul.f32 %v1408, %v1414
      %v1430 = vmul.f32 %v1409, %v1414
      %v1431 = vadd.f32 %v1378, %v1415
      %v1432 = vadd.f32 %v1379, %v1416
      %v1433 = vadd.f32 %v1380, %v1417
      %v1434 = vadd.f32 %v1381, %v1418
      %v1435 = vadd.f32 %v1382, %v1419
      %v1436 = vadd.f32 %v1383, %v1420
      %v1437 = vadd.f32 %v1384, %v1421
      %v1438 = vadd.f32 %v1385, %v1422
      %v1439 = vadd.f32 %v1386, %v1423
      %v1440 = vadd.f32 %v1387, %v1424
      %v1441 = vadd.f32 %v1388, %v1425
      %v1442 = vadd.f32 %v1389, %v1426
      %v1443 = vadd.f32 %v1390, %v1427
      %v1444 = vadd.f32 %v1391, %v1428
      %v1445 = vadd.f32 %v1392, %v1429
      %v1446 = vadd.f32 %v1393, %v1430
      %v1447 = vld [vmem:[%s1070 + $0x1] sm:$0xff]
      %v1448 = vld [vmem:[%s1070 + $0x9] sm:$0xff]
      %v1449 = vld [vmem:[%s1070 + $0x19] sm:$0xff]
      %v1450 = vld [vmem:[%s1070 + $0x21] sm:$0xff]
      %v1451 = vld [vmem:[%s1070 + $0x31] sm:$0xff]
      %v1452 = vld [vmem:[%s1070 + $0x39] sm:$0xff]
      %v1453 = vld [vmem:[%s1070 + $0x49] sm:$0xff]
      %v1454 = vld [vmem:[%s1070 + $0x51] sm:$0xff]
      %v1455 = vld [vmem:[%s1070 + $0x61] sm:$0xff]
      %v1456 = vld [vmem:[%s1070 + $0x69] sm:$0xff]
      %v1457 = vld [vmem:[%s1070 + $0x79] sm:$0xff]
      %v1458 = vld [vmem:[%s1070 + $0x81] sm:$0xff]
      %v1459 = vld [vmem:[%s1070 + $0x91] sm:$0xff]
      %v1460 = vld [vmem:[%s1070 + $0x99] sm:$0xff]
      %v1461 = vld [vmem:[%s1070 + $0xa9] sm:$0xff]
      %v1462 = vld [vmem:[%s1070 + $0xb1] sm:$0xff]
      %v1463 = vld [vmem:[%s7 + $0x4] sm:$0x1]
      %v1464 = vlaneseq
      %v1465 = vshrl.u32 %v1464, 7
      %v1466 = vsub.s32 0, %v1465
      %v1467 = vrot.slane %v1463, %v1466
      %v1468 = vmul.f32 %v1447, %v1467
      %v1469 = vmul.f32 %v1448, %v1467
      %v1470 = vmul.f32 %v1449, %v1467
      %v1471 = vmul.f32 %v1450, %v1467
      %v1472 = vmul.f32 %v1451, %v1467
      %v1473 = vmul.f32 %v1452, %v1467
      %v1474 = vmul.f32 %v1453, %v1467
      %v1475 = vmul.f32 %v1454, %v1467
      %v1476 = vmul.f32 %v1455, %v1467
      %v1477 = vmul.f32 %v1456, %v1467
      %v1478 = vmul.f32 %v1457, %v1467
      %v1479 = vmul.f32 %v1458, %v1467
      %v1480 = vmul.f32 %v1459, %v1467
      %v1481 = vmul.f32 %v1460, %v1467
      %v1482 = vmul.f32 %v1461, %v1467
      %v1483 = vmul.f32 %v1462, %v1467
      %v1484 = vadd.f32 %v1431, %v1468
      %v1485 = vadd.f32 %v1432, %v1469
      %v1486 = vadd.f32 %v1433, %v1470
      %v1487 = vadd.f32 %v1434, %v1471
      %v1488 = vadd.f32 %v1435, %v1472
      %v1489 = vadd.f32 %v1436, %v1473
      %v1490 = vadd.f32 %v1437, %v1474
      %v1491 = vadd.f32 %v1438, %v1475
      %v1492 = vadd.f32 %v1439, %v1476
      %v1493 = vadd.f32 %v1440, %v1477
      %v1494 = vadd.f32 %v1441, %v1478
      %v1495 = vadd.f32 %v1442, %v1479
      %v1496 = vadd.f32 %v1443, %v1480
      %v1497 = vadd.f32 %v1444, %v1481
      %v1498 = vadd.f32 %v1445, %v1482
      %v1499 = vadd.f32 %v1446, %v1483
      %v1500 = vld [vmem:[%s1070 + $0x2] sm:$0xff]
      %v1501 = vld [vmem:[%s1070 + $0xa] sm:$0xff]
      %v1502 = vld [vmem:[%s1070 + $0x1a] sm:$0xff]
      %v1503 = vld [vmem:[%s1070 + $0x22] sm:$0xff]
      %v1504 = vld [vmem:[%s1070 + $0x32] sm:$0xff]
      %v1505 = vld [vmem:[%s1070 + $0x3a] sm:$0xff]
      %v1506 = vld [vmem:[%s1070 + $0x4a] sm:$0xff]
      %v1507 = vld [vmem:[%s1070 + $0x52] sm:$0xff]
      %v1508 = vld [vmem:[%s1070 + $0x62] sm:$0xff]
      %v1509 = vld [vmem:[%s1070 + $0x6a] sm:$0xff]
      %v1510 = vld [vmem:[%s1070 + $0x7a] sm:$0xff]
      %v1511 = vld [vmem:[%s1070 + $0x82] sm:$0xff]
      %v1512 = vld [vmem:[%s1070 + $0x92] sm:$0xff]
      %v1513 = vld [vmem:[%s1070 + $0x9a] sm:$0xff]
      %v1514 = vld [vmem:[%s1070 + $0xaa] sm:$0xff]
      %v1515 = vld [vmem:[%s1070 + $0xb2] sm:$0xff]
      %v1516 = vld [vmem:[%s7 + $0x5] sm:$0x1]
      %v1517 = vlaneseq
      %v1518 = vshrl.u32 %v1517, 7
      %v1519 = vsub.s32 0, %v1518
      %v1520 = vrot.slane %v1516, %v1519
      %v1521 = vmul.f32 %v1500, %v1520
      %v1522 = vmul.f32 %v1501, %v1520
      %v1523 = vmul.f32 %v1502, %v1520
      %v1524 = vmul.f32 %v1503, %v1520
      %v1525 = vmul.f32 %v1504, %v1520
      %v1526 = vmul.f32 %v1505, %v1520
      %v1527 = vmul.f32 %v1506, %v1520
      %v1528 = vmul.f32 %v1507, %v1520
      %v1529 = vmul.f32 %v1508, %v1520
      %v1530 = vmul.f32 %v1509, %v1520
      %v1531 = vmul.f32 %v1510, %v1520
      %v1532 = vmul.f32 %v1511, %v1520
      %v1533 = vmul.f32 %v1512, %v1520
      %v1534 = vmul.f32 %v1513, %v1520
      %v1535 = vmul.f32 %v1514, %v1520
      %v1536 = vmul.f32 %v1515, %v1520
      %v1537 = vadd.f32 %v1484, %v1521
      %v1538 = vadd.f32 %v1485, %v1522
      %v1539 = vadd.f32 %v1486, %v1523
      %v1540 = vadd.f32 %v1487, %v1524
      %v1541 = vadd.f32 %v1488, %v1525
      %v1542 = vadd.f32 %v1489, %v1526
      %v1543 = vadd.f32 %v1490, %v1527
      %v1544 = vadd.f32 %v1491, %v1528
      %v1545 = vadd.f32 %v1492, %v1529
      %v1546 = vadd.f32 %v1493, %v1530
      %v1547 = vadd.f32 %v1494, %v1531
      %v1548 = vadd.f32 %v1495, %v1532
      %v1549 = vadd.f32 %v1496, %v1533
      %v1550 = vadd.f32 %v1497, %v1534
      %v1551 = vadd.f32 %v1498, %v1535
      %v1552 = vadd.f32 %v1499, %v1536
      %s1553 = scalar_lea.vmem [#allocation2], 48
      %v1554 = vld [vmem:[%s1553] sm:$0xff]
      %v1555 = vld [vmem:[%s1553 + $0x8] sm:$0xff]
      %v1556 = vld [vmem:[%s1553 + $0x18] sm:$0xff]
      %v1557 = vld [vmem:[%s1553 + $0x20] sm:$0xff]
      %v1558 = vld [vmem:[%s1553 + $0x30] sm:$0xff]
      %v1559 = vld [vmem:[%s1553 + $0x38] sm:$0xff]
      %v1560 = vld [vmem:[%s1553 + $0x48] sm:$0xff]
      %v1561 = vld [vmem:[%s1553 + $0x50] sm:$0xff]
      %v1562 = vld [vmem:[%s1553 + $0x60] sm:$0xff]
      %v1563 = vld [vmem:[%s1553 + $0x68] sm:$0xff]
      %v1564 = vld [vmem:[%s1553 + $0x78] sm:$0xff]
      %v1565 = vld [vmem:[%s1553 + $0x80] sm:$0xff]
      %v1566 = vld [vmem:[%s1553 + $0x90] sm:$0xff]
      %v1567 = vld [vmem:[%s1553 + $0x98] sm:$0xff]
      %v1568 = vld [vmem:[%s1553 + $0xa8] sm:$0xff]
      %v1569 = vld [vmem:[%s1553 + $0xb0] sm:$0xff]
      %v1570 = vld [vmem:[%s7 + $0x6] sm:$0x1]
      %v1571 = vlaneseq
      %v1572 = vshrl.u32 %v1571, 7
      %v1573 = vsub.s32 0, %v1572
      %v1574 = vrot.slane %v1570, %v1573
      %v1575 = vmul.f32 %v1554, %v1574
      %v1576 = vmul.f32 %v1555, %v1574
      %v1577 = vmul.f32 %v1556, %v1574
      %v1578 = vmul.f32 %v1557, %v1574
      %v1579 = vmul.f32 %v1558, %v1574
      %v1580 = vmul.f32 %v1559, %v1574
      %v1581 = vmul.f32 %v1560, %v1574
      %v1582 = vmul.f32 %v1561, %v1574
      %v1583 = vmul.f32 %v1562, %v1574
      %v1584 = vmul.f32 %v1563, %v1574
      %v1585 = vmul.f32 %v1564, %v1574
      %v1586 = vmul.f32 %v1565, %v1574
      %v1587 = vmul.f32 %v1566, %v1574
      %v1588 = vmul.f32 %v1567, %v1574
      %v1589 = vmul.f32 %v1568, %v1574
      %v1590 = vmul.f32 %v1569, %v1574
      %v1591 = vadd.f32 %v1537, %v1575
      %v1592 = vadd.f32 %v1538, %v1576
      %v1593 = vadd.f32 %v1539, %v1577
      %v1594 = vadd.f32 %v1540, %v1578
      %v1595 = vadd.f32 %v1541, %v1579
      %v1596 = vadd.f32 %v1542, %v1580
      %v1597 = vadd.f32 %v1543, %v1581
      %v1598 = vadd.f32 %v1544, %v1582
      %v1599 = vadd.f32 %v1545, %v1583
      %v1600 = vadd.f32 %v1546, %v1584
      %v1601 = vadd.f32 %v1547, %v1585
      %v1602 = vadd.f32 %v1548, %v1586
      %v1603 = vadd.f32 %v1549, %v1587
      %v1604 = vadd.f32 %v1550, %v1588
      %v1605 = vadd.f32 %v1551, %v1589
      %v1606 = vadd.f32 %v1552, %v1590
      %v1607 = vld [vmem:[%s1553 + $0x1] sm:$0xff]
      %v1608 = vld [vmem:[%s1553 + $0x9] sm:$0xff]
      %v1609 = vld [vmem:[%s1553 + $0x19] sm:$0xff]
      %v1610 = vld [vmem:[%s1553 + $0x21] sm:$0xff]
      %v1611 = vld [vmem:[%s1553 + $0x31] sm:$0xff]
      %v1612 = vld [vmem:[%s1553 + $0x39] sm:$0xff]
      %v1613 = vld [vmem:[%s1553 + $0x49] sm:$0xff]
      %v1614 = vld [vmem:[%s1553 + $0x51] sm:$0xff]
      %v1615 = vld [vmem:[%s1553 + $0x61] sm:$0xff]
      %v1616 = vld [vmem:[%s1553 + $0x69] sm:$0xff]
      %v1617 = vld [vmem:[%s1553 + $0x79] sm:$0xff]
      %v1618 = vld [vmem:[%s1553 + $0x81] sm:$0xff]
      %v1619 = vld [vmem:[%s1553 + $0x91] sm:$0xff]
      %v1620 = vld [vmem:[%s1553 + $0x99] sm:$0xff]
      %v1621 = vld [vmem:[%s1553 + $0xa9] sm:$0xff]
      %v1622 = vld [vmem:[%s1553 + $0xb1] sm:$0xff]
      %v1623 = vld [vmem:[%s7 + $0x7] sm:$0x1]
      %v1624 = vlaneseq
      %v1625 = vshrl.u32 %v1624, 7
      %v1626 = vsub.s32 0, %v1625
      %v1627 = vrot.slane %v1623, %v1626
      %v1628 = vmul.f32 %v1607, %v1627
      %v1629 = vmul.f32 %v1608, %v1627
      %v1630 = vmul.f32 %v1609, %v1627
      %v1631 = vmul.f32 %v1610, %v1627
      %v1632 = vmul.f32 %v1611, %v1627
      %v1633 = vmul.f32 %v1612, %v1627
      %v1634 = vmul.f32 %v1613, %v1627
      %v1635 = vmul.f32 %v1614, %v1627
      %v1636 = vmul.f32 %v1615, %v1627
      %v1637 = vmul.f32 %v1616, %v1627
      %v1638 = vmul.f32 %v1617, %v1627
      %v1639 = vmul.f32 %v1618, %v1627
      %v1640 = vmul.f32 %v1619, %v1627
      %v1641 = vmul.f32 %v1620, %v1627
      %v1642 = vmul.f32 %v1621, %v1627
      %v1643 = vmul.f32 %v1622, %v1627
      %v1644 = vadd.f32 %v1591, %v1628
      %v1645 = vadd.f32 %v1592, %v1629
      %v1646 = vadd.f32 %v1593, %v1630
      %v1647 = vadd.f32 %v1594, %v1631
      %v1648 = vadd.f32 %v1595, %v1632
      %v1649 = vadd.f32 %v1596, %v1633
      %v1650 = vadd.f32 %v1597, %v1634
      %v1651 = vadd.f32 %v1598, %v1635
      %v1652 = vadd.f32 %v1599, %v1636
      %v1653 = vadd.f32 %v1600, %v1637
      %v1654 = vadd.f32 %v1601, %v1638
      %v1655 = vadd.f32 %v1602, %v1639
      %v1656 = vadd.f32 %v1603, %v1640
      %v1657 = vadd.f32 %v1604, %v1641
      %v1658 = vadd.f32 %v1605, %v1642
      %v1659 = vadd.f32 %v1606, %v1643
      %v1660 = vld [vmem:[%s1553 + $0x2] sm:$0xff]
      %v1661 = vld [vmem:[%s1553 + $0xa] sm:$0xff]
      %v1662 = vld [vmem:[%s1553 + $0x1a] sm:$0xff]
      %v1663 = vld [vmem:[%s1553 + $0x22] sm:$0xff]
      %v1664 = vld [vmem:[%s1553 + $0x32] sm:$0xff]
      %v1665 = vld [vmem:[%s1553 + $0x3a] sm:$0xff]
      %v1666 = vld [vmem:[%s1553 + $0x4a] sm:$0xff]
      %v1667 = vld [vmem:[%s1553 + $0x52] sm:$0xff]
      %v1668 = vld [vmem:[%s1553 + $0x62] sm:$0xff]
      %v1669 = vld [vmem:[%s1553 + $0x6a] sm:$0xff]
      %v1670 = vld [vmem:[%s1553 + $0x7a] sm:$0xff]
      %v1671 = vld [vmem:[%s1553 + $0x82] sm:$0xff]
      %v1672 = vld [vmem:[%s1553 + $0x92] sm:$0xff]
      %v1673 = vld [vmem:[%s1553 + $0x9a] sm:$0xff]
      %v1674 = vld [vmem:[%s1553 + $0xaa] sm:$0xff]
      %v1675 = vld [vmem:[%s1553 + $0xb2] sm:$0xff]
      %v1676 = vld [vmem:[%s7 + $0x8] sm:$0x1]
      %v1677 = vlaneseq
      %v1678 = vshrl.u32 %v1677, 7
      %v1679 = vsub.s32 0, %v1678
      %v1680 = vrot.slane %v1676, %v1679
      %v1681 = vmul.f32 %v1660, %v1680
      %v1682 = vmul.f32 %v1661, %v1680
      %v1683 = vmul.f32 %v1662, %v1680
      %v1684 = vmul.f32 %v1663, %v1680
      %v1685 = vmul.f32 %v1664, %v1680
      %v1686 = vmul.f32 %v1665, %v1680
      %v1687 = vmul.f32 %v1666, %v1680
      %v1688 = vmul.f32 %v1667, %v1680
      %v1689 = vmul.f32 %v1668, %v1680
      %v1690 = vmul.f32 %v1669, %v1680
      %v1691 = vmul.f32 %v1670, %v1680
      %v1692 = vmul.f32 %v1671, %v1680
      %v1693 = vmul.f32 %v1672, %v1680
      %v1694 = vmul.f32 %v1673, %v1680
      %v1695 = vmul.f32 %v1674, %v1680
      %v1696 = vmul.f32 %v1675, %v1680
      %v1697 = vadd.f32 %v1644, %v1681
      %v1698 = vadd.f32 %v1645, %v1682
      %v1699 = vadd.f32 %v1646, %v1683
      %v1700 = vadd.f32 %v1647, %v1684
      %v1701 = vadd.f32 %v1648, %v1685
      %v1702 = vadd.f32 %v1649, %v1686
      %v1703 = vadd.f32 %v1650, %v1687
      %v1704 = vadd.f32 %v1651, %v1688
      %v1705 = vadd.f32 %v1652, %v1689
      %v1706 = vadd.f32 %v1653, %v1690
      %v1707 = vadd.f32 %v1654, %v1691
      %v1708 = vadd.f32 %v1655, %v1692
      %v1709 = vadd.f32 %v1656, %v1693
      %v1710 = vadd.f32 %v1657, %v1694
      %v1711 = vadd.f32 %v1658, %v1695
      %v1712 = vadd.f32 %v1659, %v1696
      %v1713 = vld [vmem:[%s8] sm:$0x1]
      %v1715 = vlaneseq
      %v1716 = vshrl.u32 %v1715, 7
      %v1717 = vsub.s32 0, %v1716
      %v1718 = vrot.slane %v1713, %v1717
      %v1720 = vmul.f32 %v1697, %v1718
      %v1721 = vmul.f32 %v1698, %v1718
      %v1722 = vmul.f32 %v1699, %v1718
      %v1723 = vmul.f32 %v1700, %v1718
      %v1724 = vmul.f32 %v1701, %v1718
      %v1725 = vmul.f32 %v1702, %v1718
      %v1726 = vmul.f32 %v1703, %v1718
      %v1727 = vmul.f32 %v1704, %v1718
      %v1728 = vmul.f32 %v1705, %v1718
      %v1729 = vmul.f32 %v1706, %v1718
      %v1730 = vmul.f32 %v1707, %v1718
      %v1731 = vmul.f32 %v1708, %v1718
      %v1732 = vmul.f32 %v1709, %v1718
      %v1733 = vmul.f32 %v1710, %v1718
      %v1734 = vmul.f32 %v1711, %v1718
      %v1735 = vmul.f32 %v1712, %v1718
      %v1736 = vld [vmem:[%s9] sm:$0x1]
      %v1738 = vlaneseq
      %v1739 = vshrl.u32 %v1738, 7
      %v1740 = vsub.s32 0, %v1739
      %v1741 = vrot.slane %v1736, %v1740
      %v1743 = vadd.f32 %v1720, %v1741
      %v1744 = vadd.f32 %v1721, %v1741
      %v1745 = vadd.f32 %v1722, %v1741
      %v1746 = vadd.f32 %v1723, %v1741
      %v1747 = vadd.f32 %v1724, %v1741
      %v1748 = vadd.f32 %v1725, %v1741
      %v1749 = vadd.f32 %v1726, %v1741
      %v1750 = vadd.f32 %v1727, %v1741
      %v1751 = vadd.f32 %v1728, %v1741
      %v1752 = vadd.f32 %v1729, %v1741
      %v1753 = vadd.f32 %v1730, %v1741
      %v1754 = vadd.f32 %v1731, %v1741
      %v1755 = vadd.f32 %v1732, %v1741
      %v1756 = vadd.f32 %v1733, %v1741
      %v1757 = vadd.f32 %v1734, %v1741
      %v1758 = vadd.f32 %v1735, %v1741
      %v1759 = vmax.f32 %v1743, 0.0
      %v1760 = vmax.f32 %v1744, 0.0
      %v1761 = vmax.f32 %v1745, 0.0
      %v1762 = vmax.f32 %v1746, 0.0
      %v1763 = vmax.f32 %v1747, 0.0
      %v1764 = vmax.f32 %v1748, 0.0
      %v1765 = vmax.f32 %v1749, 0.0
      %v1766 = vmax.f32 %v1750, 0.0
      %v1767 = vmax.f32 %v1751, 0.0
      %v1768 = vmax.f32 %v1752, 0.0
      %v1769 = vmax.f32 %v1753, 0.0
      %v1770 = vmax.f32 %v1754, 0.0
      %v1771 = vmax.f32 %v1755, 0.0
      %v1772 = vmax.f32 %v1756, 0.0
      %v1773 = vmax.f32 %v1757, 0.0
      %v1774 = vmax.f32 %v1758, 0.0
      %1791 = vrot.lane.b32.xlu0 %v1759, 4
      %v1792 = vpop.permute.xlu0 %1791
      %1793 = vrot.lane.b32.xlu0 %v1760, 4
      %v1794 = vpop.permute.xlu0 %1793
      %1795 = vrot.lane.b32.xlu0 %v1761, 4
      %v1796 = vpop.permute.xlu0 %1795
      %1797 = vrot.lane.b32.xlu0 %v1762, 4
      %v1798 = vpop.permute.xlu0 %1797
      %1799 = vrot.lane.b32.xlu0 %v1763, 4
      %v1800 = vpop.permute.xlu0 %1799
      %1801 = vrot.lane.b32.xlu0 %v1764, 4
      %v1802 = vpop.permute.xlu0 %1801
      %1803 = vrot.lane.b32.xlu0 %v1765, 4
      %v1804 = vpop.permute.xlu0 %1803
      %1805 = vrot.lane.b32.xlu0 %v1766, 4
      %v1806 = vpop.permute.xlu0 %1805
      %1807 = vrot.lane.b32.xlu0 %v1767, 4
      %v1808 = vpop.permute.xlu0 %1807
      %1809 = vrot.lane.b32.xlu0 %v1768, 4
      %v1810 = vpop.permute.xlu0 %1809
      %1811 = vrot.lane.b32.xlu0 %v1769, 4
      %v1812 = vpop.permute.xlu0 %1811
      %1813 = vrot.lane.b32.xlu0 %v1770, 4
      %v1814 = vpop.permute.xlu0 %1813
      %1815 = vrot.lane.b32.xlu0 %v1771, 4
      %v1816 = vpop.permute.xlu0 %1815
      %1817 = vrot.lane.b32.xlu0 %v1772, 4
      %v1818 = vpop.permute.xlu0 %1817
      %1819 = vrot.lane.b32.xlu0 %v1773, 4
      %v1820 = vpop.permute.xlu0 %1819
      %1821 = vrot.lane.b32.xlu0 %v1774, 4
      %v1822 = vpop.permute.xlu0 %1821
      %v1839 = vsel %vm1071, %v1447, %v1792
      %v1840 = vsel %vm1071, %v1448, %v1794
      %v1841 = vsel %vm1071, %v1449, %v1796
      %v1842 = vsel %vm1071, %v1450, %v1798
      %v1843 = vsel %vm1071, %v1451, %v1800
      %v1844 = vsel %vm1071, %v1452, %v1802
      %v1845 = vsel %vm1071, %v1453, %v1804
      %v1846 = vsel %vm1071, %v1454, %v1806
      %v1847 = vsel %vm1071, %v1455, %v1808
      %v1848 = vsel %vm1071, %v1456, %v1810
      %v1849 = vsel %vm1071, %v1457, %v1812
      %v1850 = vsel %vm1071, %v1458, %v1814
      %v1851 = vsel %vm1071, %v1459, %v1816
      %v1852 = vsel %vm1071, %v1460, %v1818
      %v1853 = vsel %vm1071, %v1461, %v1820
      %v1854 = vsel %vm1071, %v1462, %v1822
      %v1855 = vld [vmem:[%s554] sm:$0xff]
      %v1856 = vld [vmem:[%s554 + $0x8] sm:$0xff]
      %v1857 = vld [vmem:[%s554 + $0x10] sm:$0xff]
      %v1858 = vld [vmem:[%s554 + $0x18] sm:$0xff]
      %v1859 = vld [vmem:[%s554 + $0x20] sm:$0xff]
      %v1860 = vld [vmem:[%s554 + $0x28] sm:$0xff]
      %v1861 = vld [vmem:[%s554 + $0x30] sm:$0xff]
      %v1862 = vld [vmem:[%s554 + $0x38] sm:$0xff]
      %v1863 = vxor.u32 %v1855, 2147483648
      %v1864 = vxor.u32 %v1856, 2147483648
      %v1865 = vxor.u32 %v1857, 2147483648
      %v1866 = vxor.u32 %v1858, 2147483648
      %v1867 = vxor.u32 %v1859, 2147483648
      %v1868 = vxor.u32 %v1860, 2147483648
      %v1869 = vxor.u32 %v1861, 2147483648
      %v1870 = vxor.u32 %v1862, 2147483648
      %v1871 = vmul.f32 %v1863, 1.442695
      %v1872 = vpow.pop %v1871
      %v1873 = vmul.f32 %v1864, 1.442695
      %v1874 = vpow.pop %v1873
      %v1875 = vmul.f32 %v1865, 1.442695
      %v1876 = vpow.pop %v1875
      %v1877 = vmul.f32 %v1866, 1.442695
      %v1878 = vpow.pop %v1877
      %v1879 = vmul.f32 %v1867, 1.442695
      %v1880 = vpow.pop %v1879
      %v1881 = vmul.f32 %v1868, 1.442695
      %v1882 = vpow.pop %v1881
      %v1883 = vmul.f32 %v1869, 1.442695
      %v1884 = vpow.pop %v1883
      %v1885 = vmul.f32 %v1870, 1.442695
      %v1886 = vpow.pop %v1885
      %v1887 = vadd.f32 %v1872, 1.0
      %v1888 = vadd.f32 %v1874, 1.0
      %v1889 = vadd.f32 %v1876, 1.0
      %v1890 = vadd.f32 %v1878, 1.0
      %v1891 = vadd.f32 %v1880, 1.0
      %v1892 = vadd.f32 %v1882, 1.0
      %v1893 = vadd.f32 %v1884, 1.0
      %v1894 = vadd.f32 %v1886, 1.0
      %v1895 = vrcp.pop %v1887
      %v1896 = vmul.f32 1.0, %v1895
      %v1897 = vrcp.pop %v1888
      %v1898 = vmul.f32 1.0, %v1897
      %v1899 = vrcp.pop %v1889
      %v1900 = vmul.f32 1.0, %v1899
      %v1901 = vrcp.pop %v1890
      %v1902 = vmul.f32 1.0, %v1901
      %v1903 = vrcp.pop %v1891
      %v1904 = vmul.f32 1.0, %v1903
      %v1905 = vrcp.pop %v1892
      %v1906 = vmul.f32 1.0, %v1905
      %v1907 = vrcp.pop %v1893
      %v1908 = vmul.f32 1.0, %v1907
      %v1909 = vrcp.pop %v1894
      %v1910 = vmul.f32 1.0, %v1909
      %v1911 = vmul.f32 %v1839, %v1896
      %v1912 = vmul.f32 %v1840, %v1898
      %v1913 = vmul.f32 %v1841, %v1896
      %v1914 = vmul.f32 %v1842, %v1898
      %v1915 = vmul.f32 %v1843, %v1900
      %v1916 = vmul.f32 %v1844, %v1902
      %v1917 = vmul.f32 %v1845, %v1900
      %v1918 = vmul.f32 %v1846, %v1902
      %v1919 = vmul.f32 %v1847, %v1904
      %v1920 = vmul.f32 %v1848, %v1906
      %v1921 = vmul.f32 %v1849, %v1904
      %v1922 = vmul.f32 %v1850, %v1906
      %v1923 = vmul.f32 %v1851, %v1908
      %v1924 = vmul.f32 %v1852, %v1910
      %v1925 = vmul.f32 %v1853, %v1908
      %v1926 = vmul.f32 %v1854, %v1910
      %vm1927 = vcmask 64512
      %1928 = vst.msk [vmem:[%s565] sm:$0xff] %vm1927, %v1911
      %1929 = vst.msk [vmem:[%s565 + $0x8] sm:$0xff] %vm1927, %v1912
      %1930 = vst.msk [vmem:[%s565 + $0x10] sm:$0xff] %vm1927, %v1913
      %1931 = vst.msk [vmem:[%s565 + $0x18] sm:$0xff] %vm1927, %v1914
      %1932 = vst.msk [vmem:[%s565 + $0x20] sm:$0xff] %vm1927, %v1915
      %1933 = vst.msk [vmem:[%s565 + $0x28] sm:$0xff] %vm1927, %v1916
      %1934 = vst.msk [vmem:[%s565 + $0x30] sm:$0xff] %vm1927, %v1917
      %1935 = vst.msk [vmem:[%s565 + $0x38] sm:$0xff] %vm1927, %v1918
      %1936 = vst.msk [vmem:[%s565 + $0x40] sm:$0xff] %vm1927, %v1919
      %1937 = vst.msk [vmem:[%s565 + $0x48] sm:$0xff] %vm1927, %v1920
      %1938 = vst.msk [vmem:[%s565 + $0x50] sm:$0xff] %vm1927, %v1921
      %1939 = vst.msk [vmem:[%s565 + $0x58] sm:$0xff] %vm1927, %v1922
      %1940 = vst.msk [vmem:[%s565 + $0x60] sm:$0xff] %vm1927, %v1923
      %1941 = vst.msk [vmem:[%s565 + $0x68] sm:$0xff] %vm1927, %v1924
      %1942 = vst.msk [vmem:[%s565 + $0x70] sm:$0xff] %vm1927, %v1925
      %1943 = vst.msk [vmem:[%s565 + $0x78] sm:$0xff] %vm1927, %v1926
      %s1944 = smul.u32 8, %s26
      %p1945 = scmp.lt.s32.totalorder %s25, 1
      %s1946 = scalar_select %p1945, %s25, 1
      %p1947 = scmp.lt.s32.totalorder %s1944, 15
      %s1948 = scalar_select %p1947, %s1944, 15
      %s1949 = smul.addr %s1948, 2
      %s1950 = smul.addr %s1946, 32
      %s1951 = sadd.s32 %s1949, %s1950
      %s1952 = smul.addr %s1951, 8
      %s1953 = scalar_lea.vmem %s10, %s1952
      // Predicated region
      $region61: #{_lambda_.3} parent=59 // pred_check
        %p1954 = pneg %p307
      $region62: #{_lambda_.3} parent=59 // pred_check_branch
        %1956 = sbr.rel (%p1954) target = $region64
      $region63: #{_lambda_.3} parent=59 // pred_region
        %s1957 = smul.u32 8, %s26
      $region64: #{_lambda_.3} parent=59 // pred_fallthru
        _
    $region60: #{_lambda_.3} parent=5 // pred_fallthru
      _
    %p1958 = scmp.le.s32.totalorder 2, %s16
    // Predicated region
    $region65: #{_lambda_.3} parent=5 // pred_check
      %p1959 = pneg %p1958
    $region66: #{_lambda_.3} parent=5 // pred_check_branch
      %1961 = sbr.rel (%p1959) target = $region68
    $region67: #{_lambda_.3} parent=5 // pred_region
      %s1962 = ssub.s32 %s16, 2
      // Predicated region
      $region69: #{_lambda_.3} parent=67 // pred_check
        %p1963 = pneg %p313
      $region70: #{_lambda_.3} parent=67 // pred_check_branch
        %1965 = sbr.rel (%p1963) target = $region72
      $region71: #{_lambda_.3} parent=67 // pred_region
        %s1966 = smul.u32 8, %s28
        %p1967 = scmp.lt.s32.totalorder %s27, 1
        %s1968 = scalar_select %p1967, %s27, 1
        %p1969 = scmp.lt.s32.totalorder %s1966, 15
        %s1970 = scalar_select %p1969, %s1966, 15
        %s1971 = smul.addr %s1970, 2
        %s1972 = smul.addr %s1968, 32
        %s1973 = sadd.s32 %s1971, %s1972
        %s1974 = smul.addr %s1973, 8
        %s1975 = scalar_lea.vmem %s10, %s1974
      $region72: #{_lambda_.3} parent=67 // pred_fallthru
        _
    $region68: #{_lambda_.3} parent=5 // pred_fallthru
      _
  $region6: #{_lambda_.3} parent=0 // loop_footer
    %s20 = sadd.s32 1, %s16
  $region7: #{_lambda_.3} parent=0 // loop_footer_branch
    %15 = sbr.rel target = $region3
  $region8: #{_lambda_.3} parent=0 // loop_exit
    _

</llo_original>
